<compile_context>
chip_gen: v6e
topology: v6e:2x2x1
jax: 0.10.0
libtpu: 0.0.40
codegen_flags: <defaults>
</compile_context>

<pallas_src>
import functools
import math

import jax
import jax.numpy as jnp
from jax.experimental import pallas as pl
from jax.experimental.pallas import tpu as pltpu

LEAKY_SLOPE = 0.01  # PyTorch nn.LeakyReLU default
LANE = 128


def _round_up(n, m):
    return ((n + m - 1) // m) * m


def _full_spec(shape):
    # Whole-array block (grid=(1,)); full-extent blocks are exempt from (8,128).
    return pl.BlockSpec(shape, lambda *_: (0,) * len(shape))


_ARBITRARY_1D = pltpu.CompilerParams(dimension_semantics=("arbitrary",))


# ------------------------------ Fused kernel --------------------------------

def _fused_forward_kernel(p1_ref, w1c_ref, b1c_ref, w2c_ref, b2c_ref,
                          w3c_ref, b3c_ref, w1h_ref, b1h_ref,
                          w2v_ref, b2v_ref, w2a_ref, b2a_ref, sup_ref, q_ref,
                          *, batch, group, h2, w2, h3, w3, k3, s3,
                          out_dim, num_atoms, atom_pad):
    """Whole RAINBOW_Q_net forward in one kernel.

    p1 rows are ordered (conv2-tap, conv2-out-pos(i2,j2), batch), each tap's rows
    zero-padded to `group` (multiple of 8) so every slice below is contiguous+aligned.
    """
    def leaky(v):
        return jnp.where(v > 0, v, LEAKY_SLOPE * v)

    # ---- conv1: one im2col matmul over the (tap-duplicated) patch rows ----
    y1 = jnp.dot(p1_ref[...], w1c_ref[...], preferred_element_type=jnp.float32)
    y1 = leaky(y1 + b1c_ref[...]).astype(jnp.bfloat16)          # (n_taps2*group, c1)

    # ---- conv2: per-tap implicit GEMM; each tap is one contiguous row group ----
    n_taps2 = w2c_ref.shape[0]
    c2 = w2c_ref.shape[2]
    acc2 = jnp.zeros((group, c2), jnp.float32)
    for t in range(n_taps2):
        acc2 = acc2 + jnp.dot(y1[t * group:(t + 1) * group, :], w2c_ref[t],
                              preferred_element_type=jnp.float32)
    y2 = leaky(acc2 + b2c_ref[...]).astype(jnp.bfloat16)        # rows ordered (i2, j2, b)

    # ---- conv3: per-tap implicit GEMM over (i3, j3, b)-ordered rows ----
    c3 = w3c_ref.shape[2]
    acc3 = jnp.zeros((h3 * w3 * batch, c3), jnp.float32)
    for a in range(k3):
        for bb in range(k3):
            t = a * k3 + bb
            pieces = []
            for i3 in range(h3):
                for j3 in range(w3):
                    r = ((i3 * s3 + a) * w2 + (j3 * s3 + bb)) * batch
                    pieces.append(y2[r:r + batch, :])
            xt = pieces[0] if len(pieces) == 1 else jnp.concatenate(pieces, axis=0)
            acc3 = acc3 + jnp.dot(xt, w3c_ref[t], preferred_element_type=jnp.float32)
    feat = leaky(acc3 + b3c_ref[...]).astype(jnp.bfloat16)      # (h3*w3*B, c3)

    # ---- noisy layer 1 (value || advantage fused on N); weights pre-folded ----
    two_hidden = w1h_ref.shape[1]
    hidden = two_hidden // 2
    acc_h = jnp.zeros((batch, two_hidden), jnp.float32)
    for p in range(h3 * w3):
        acc_h = acc_h + jnp.dot(feat[p * batch:(p + 1) * batch, :],
                                w1h_ref[p * c3:(p + 1) * c3, :],
                                preferred_element_type=jnp.float32)
    hcat = jnp.maximum(acc_h + b1h_ref[...], 0.0).astype(jnp.bfloat16)   # (B, 2*hidden)
    h_val = hcat[:, :hidden]
    h_adv = hcat[:, hidden:]

    # ---- noisy layer 2 (value + advantage, atoms lane-padded to 128 per action) ----
    val = jnp.dot(h_val, w2v_ref[...], preferred_element_type=jnp.float32) + b2v_ref[...]
    adv = jnp.dot(h_adv, w2a_ref[...], preferred_element_type=jnp.float32) + b2a_ref[...]
    adv3 = jnp.stack([adv[:, a * atom_pad:(a + 1) * atom_pad] for a in range(out_dim)],
                     axis=1)                                     # (B, A, atom_pad)
    adv_mean = jnp.mean(adv3, axis=1, keepdims=True)             # mean over actions
    q_atoms = val[:, None, :] + adv3 - adv_mean                  # (B, A, atom_pad)

    # ---- batched dueling softmax + clamp(0.001) + expected value ----
    lane = jax.lax.broadcasted_iota(jnp.int32, (1, 1, atom_pad), 2)
    q_atoms = jnp.where(lane < num_atoms, q_atoms, -1e30)        # mask pad atoms
    m = jnp.max(q_atoms, axis=-1, keepdims=True)
    e = jnp.exp(q_atoms - m)
    s = jnp.sum(e, axis=-1, keepdims=True)
    dist = e * pl.reciprocal(s, approx=True)                     # softmax(dim=-1)
    dist = jnp.maximum(dist, 0.001)                              # clamp(min=0.001)
    q_ref[...] = jnp.sum(dist * sup_ref[...][None], axis=-1)     # (B, A); pad support = 0


# ------------------------- Host-side patch building -------------------------

def _conv1_patches(x_nhwc, kh, kw, stride):
    """x: (B,H,W,C) -> (B, Ho, Wo, kh*kw*C) with static strided slices (no gather)."""
    B, H, W, C = x_nhwc.shape
    Ho = (H - kh) // stride + 1
    Wo = (W - kw) // stride + 1
    rows = jnp.stack([x_nhwc[:, di:di + stride * (Ho - 1) + 1:stride, :, :]
                      for di in range(kh)], axis=2)               # (B, Ho, kh, W, C)
    cols = jnp.stack([rows[:, :, :, dj:dj + stride * (Wo - 1) + 1:stride, :]
                      for dj in range(kw)], axis=4)               # (B, Ho, kh, Wo, kw, C)
    p = jnp.transpose(cols, (0, 1, 3, 2, 4, 5)).reshape(B, Ho, Wo, kh * kw * C)
    return p, Ho, Wo


def _group_patches_for_conv2(P, k2, s2, h2, w2, group):
    """Duplicate/reorder conv1 patch rows so each conv2 tap is one contiguous,
    8-aligned row group ordered (i2, j2, batch). Returns (k2*k2*group, K1)."""
    B, _, _, K1 = P.shape
    taps = []
    for a in range(k2):
        for b in range(k2):
            sl = P[:, a:a + s2 * (h2 - 1) + 1:s2, b:b + s2 * (w2 - 1) + 1:s2, :]
            sl = jnp.transpose(sl, (1, 2, 0, 3)).reshape(h2 * w2 * B, K1)
            sl = jnp.pad(sl, ((0, group - h2 * w2 * B), (0, 0)))
            taps.append(sl)
    return jnp.concatenate(taps, axis=0)


# ------------------------------ Parameter init ------------------------------
# (PyTorch-layout parameters, matching RAINBOW_Q_net / NoisyLinear semantics.)

def _scale_noise(key, n):
    x = jax.random.normal(key, (n,), jnp.float32)
    return jnp.sign(x) * jnp.sqrt(jnp.abs(x))


def init_noisy_linear(key, in_f, out_f, std_init=0.5):
    k1, k2, k3, k4 = jax.random.split(key, 4)
    mu_range = 1.0 / math.sqrt(in_f)
    eps_in = _scale_noise(k3, in_f)
    eps_out = _scale_noise(k4, out_f)
    return dict(
        w_mu=jax.random.uniform(k1, (out_f, in_f), jnp.float32, -mu_range, mu_range),
        w_sigma=jnp.full((out_f, in_f), std_init / math.sqrt(in_f), jnp.float32),
        w_eps=jnp.outer(eps_out, eps_in),
        b_mu=jax.random.uniform(k2, (out_f,), jnp.float32, -mu_range, mu_range),
        b_sigma=jnp.full((out_f,), std_init / math.sqrt(out_f), jnp.float32),
        b_eps=eps_out,
    )


def init_conv(key, cin, cout, k):
    k1, k2 = jax.random.split(key)
    bound = 1.0 / math.sqrt(cin * k * k)
    w = jax.random.uniform(k1, (cout, cin, k, k), jnp.float32, -bound, bound)
    b = jax.random.uniform(k2, (cout,), jnp.float32, -bound, bound)
    return w, b


def conv_out_hw(h, w):
    h, w = (h - 8) // 4 + 1, (w - 8) // 4 + 1
    h, w = (h - 4) // 2 + 1, (w - 4) // 2 + 1
    h, w = (h - 3) // 1 + 1, (w - 3) // 1 + 1
    return h, w


def init_params(key, in_dim, out_dim, num_atoms):
    ks = jax.random.split(key, 7)
    p = {}
    p["conv1_w"], p["conv1_b"] = init_conv(ks[0], in_dim[0], 32, 8)
    p["conv2_w"], p["conv2_b"] = init_conv(ks[1], 32, 64, 4)
    p["conv3_w"], p["conv3_b"] = init_conv(ks[2], 64, 64, 3)
    hf, wf = conv_out_hw(in_dim[1], in_dim[2])
    feat = 64 * hf * wf          # mirrors _feature_size() (NCHW flatten)
    p["noisy_value_1"] = init_noisy_linear(ks[3], feat, 512)
    p["noisy_value_2"] = init_noisy_linear(ks[4], 512, num_atoms)
    p["noisy_advantage_1"] = init_noisy_linear(ks[5], feat, 512)
    p["noisy_advantage_2"] = init_noisy_linear(ks[6], 512, out_dim * num_atoms)
    return p


# --------------------- One-time layout prep (hoisted) -----------------------

def _fold_noisy(p):
    # eps changes only on reset_noise(); fold in f32 once per noise reset.
    w = p["w_mu"] + p["w_sigma"] * p["w_eps"]
    b = p["b_mu"] + p["b_sigma"] * p["b_eps"]
    return w, b


def _prep_conv_im2col(w, b):
    """(Cout,Cin,kh,kw) -> (kh*kw*Cin, Cout) bf16 (no padding); bias (1,Cout) f32."""
    cout, cin, kh, kw = w.shape
    wt = jnp.transpose(w, (2, 3, 1, 0)).reshape(kh * kw * cin, cout).astype(jnp.bfloat16)
    return wt, b.reshape(1, cout).astype(jnp.float32)


def _prep_conv_taps(w, b):
    """(Cout,Cin,kh,kw) -> per-tap (kh*kw, Cin, Cout) bf16; bias (1,Cout) f32."""
    cout, cin, kh, kw = w.shape
    wt = jnp.transpose(w, (2, 3, 1, 0)).reshape(kh * kw, cin, cout).astype(jnp.bfloat16)
    return wt, b.reshape(1, cout).astype(jnp.float32)


def _prep_head_layer1(nv, na, c_feat, hf, wf):
    """Fold noisy, permute K from torch (c,h,w) flatten to kernel (h,w,c) flatten,
    transpose to (K, out), concat value||advantage on N."""
    def prep(w):
        out_f = w.shape[0]
        w4 = w.reshape(out_f, c_feat, hf, wf)
        w4 = jnp.transpose(w4, (0, 2, 3, 1)).reshape(out_f, hf * wf * c_feat)
        return w4.T
    wv, bv = _fold_noisy(nv)
    wa, ba = _fold_noisy(na)
    w = jnp.concatenate([prep(wv), prep(wa)], axis=1).astype(jnp.bfloat16)   # (Kf, 1024)
    b = jnp.concatenate([bv, ba]).reshape(1, -1).astype(jnp.float32)
    return w, b


def _prep_head_value2(nv2, num_atoms, atom_pad):
    w, b = _fold_noisy(nv2)                                    # (atoms, hid), (atoms,)
    w = jnp.pad(w.T, ((0, 0), (0, atom_pad - num_atoms))).astype(jnp.bfloat16)
    b = jnp.pad(b, (0, atom_pad - num_atoms)).reshape(1, -1).astype(jnp.float32)
    return w, b


def _prep_head_adv2(na2, out_dim, num_atoms, atom_pad):
    """Pad atoms to atom_pad per action so in-kernel per-action slices are lane-aligned."""
    w, b = _fold_noisy(na2)                                    # (A*atoms, hid), (A*atoms,)
    hid = w.shape[1]
    w = w.reshape(out_dim, num_atoms, hid)
    w = jnp.pad(w, ((0, 0), (0, atom_pad - num_atoms), (0, 0)))
    w = jnp.transpose(w, (2, 0, 1)).reshape(hid, out_dim * atom_pad).astype(jnp.bfloat16)
    b = jnp.pad(b.reshape(out_dim, num_atoms),
                ((0, 0), (0, atom_pad - num_atoms))).reshape(1, -1).astype(jnp.float32)
    return w, b


def prepare_params(params, in_dim, out_dim, num_atoms, vmin, vmax):
    hf, wf = conv_out_hw(in_dim[1], in_dim[2])
    atom_pad = _round_up(num_atoms, LANE)
    pr = {}
    pr["conv1_w"], pr["conv1_b"] = _prep_conv_im2col(params["conv1_w"], params["conv1_b"])
    pr["conv2_w"], pr["conv2_b"] = _prep_conv_taps(params["conv2_w"], params["conv2_b"])
    pr["conv3_w"], pr["conv3_b"] = _prep_conv_taps(params["conv3_w"], params["conv3_b"])
    pr["l1_w"], pr["l1_b"] = _prep_head_layer1(params["noisy_value_1"],
                                               params["noisy_advantage_1"], 64, hf, wf)
    pr["l2v_w"], pr["l2v_b"] = _prep_head_value2(params["noisy_value_2"], num_atoms, atom_pad)
    pr["l2a_w"], pr["l2a_b"] = _prep_head_adv2(params["noisy_advantage_2"],
                                               out_dim, num_atoms, atom_pad)
    sup = jnp.linspace(float(vmin), float(vmax), num_atoms, dtype=jnp.float32)
    pr["support"] = jnp.pad(sup, (0, atom_pad - num_atoms)).reshape(1, atom_pad)
    return pr


# ------------------------------- Forward pass --------------------------------

def rainbow_forward(prepared, x_nchw, *, out_dim, num_atoms):
    B = x_nchw.shape[0]
    # Single layout change: NCHW -> NHWC (+ bf16 for MXU inputs).
    x = jnp.transpose(x_nchw, (0, 2, 3, 1)).astype(jnp.bfloat16)
    P, h1, w1 = _conv1_patches(x, 8, 8, 4)                 # conv1 im2col (static slices)
    h2, w2 = (h1 - 4) // 2 + 1, (w1 - 4) // 2 + 1
    h3, w3 = (h2 - 3) // 1 + 1, (w2 - 3) // 1 + 1
    group = _round_up(h2 * w2 * B, 8)
    p1 = _group_patches_for_conv2(P, 4, 2, h2, w2, group)  # (16*group, kh*kw*Cin)
    atom_pad = prepared["support"].shape[1]

    kern = functools.partial(
        _fused_forward_kernel, batch=B, group=group, h2=h2, w2=w2, h3=h3, w3=w3,
        k3=3, s3=1, out_dim=out_dim, num_atoms=num_atoms, atom_pad=atom_pad)

    args = (p1,
            prepared["conv1_w"], prepared["conv1_b"],
            prepared["conv2_w"], prepared["conv2_b"],
            prepared["conv3_w"], prepared["conv3_b"],
            prepared["l1_w"], prepared["l1_b"],
            prepared["l2v_w"], prepared["l2v_b"],
            prepared["l2a_w"], prepared["l2a_b"],
            prepared["support"])
    # TODO(synk): for Twin-Q / online+target evaluation or B>=8, co-batch the extra
    # forward passes along the row (M) axis of p1 / the head (and add a "parallel"
    # grid axis to use v7x's second TensorCore) instead of a second launch.
    return pl.pallas_call(
        kern,
        out_shape=jax.ShapeDtypeStruct((B, out_dim), jnp.float32),
        grid=(1,),
        in_specs=[_full_spec(a.shape) for a in args],
        out_specs=_full_spec((B, out_dim)),
        compiler_params=_ARBITRARY_1D,
    )(*args)


# ------------------------------------ Main ------------------------------------

if __name__ == "__main__":
    key = jax.random.PRNGKey(0)

    B = 2
    in_dim = (4, 36, 36)       # (C, H, W): 36 -> 8 -> 3 -> 1 spatial under the conv stack
    out_dim = 6
    num_atoms = 51
    Vmin, Vmax = -2.0, 2.0

    kp, kx = jax.random.split(key)
    params = init_params(kp, in_dim, out_dim, num_atoms)
    prepared = prepare_params(params, in_dim, out_dim, num_atoms, Vmin, Vmax)
    x = jax.random.normal(kx, (B,) + in_dim, jnp.float32)

    fwd = jax.jit(functools.partial(rainbow_forward, out_dim=out_dim, num_atoms=num_atoms))
    q = jax.block_until_ready(fwd(prepared, x))

    assert q.shape == (B, out_dim) and q.dtype == jnp.float32
    assert bool(jnp.all(jnp.isfinite(q)))
    print("KERNEL_OK")
</pallas_src>

<mosaic_0001>
module attributes {stable_mosaic.version = 11 : i64} {
  func.func @_fused_forward_kernel(%arg0: i32, %arg1: memref<384x256xbf16, #tpu.memory_space<vmem>>, %arg2: memref<256x32xbf16, #tpu.memory_space<vmem>>, %arg3: memref<1x32xf32, #tpu.memory_space<vmem>>, %arg4: memref<16x32x64xbf16, #tpu.memory_space<vmem>>, %arg5: memref<1x64xf32, #tpu.memory_space<vmem>>, %arg6: memref<9x64x64xbf16, #tpu.memory_space<vmem>>, %arg7: memref<1x64xf32, #tpu.memory_space<vmem>>, %arg8: memref<64x1024xbf16, #tpu.memory_space<vmem>>, %arg9: memref<1x1024xf32, #tpu.memory_space<vmem>>, %arg10: memref<512x128xbf16, #tpu.memory_space<vmem>>, %arg11: memref<1x128xf32, #tpu.memory_space<vmem>>, %arg12: memref<512x768xbf16, #tpu.memory_space<vmem>>, %arg13: memref<1x768xf32, #tpu.memory_space<vmem>>, %arg14: memref<1x128xf32, #tpu.memory_space<vmem>>, %arg15: memref<2x6xf32, #tpu.memory_space<vmem>>) attributes {dimension_semantics = [#tpu.dimension_semantics<arbitrary>], iteration_bounds = array<i64: 1>, scalar_prefetch = 0 : i64, scratch_operands = 0 : i64, tpu.core_type = #tpu.core_type<tc>, window_params = [{pipeline_mode = #tpu.pipeline_mode<synchronous>, transform_indices = @transform_0, window_bounds = array<i64: 384, 256>}, {pipeline_mode = #tpu.pipeline_mode<synchronous>, transform_indices = @transform_1, window_bounds = array<i64: 256, 32>}, {pipeline_mode = #tpu.pipeline_mode<synchronous>, transform_indices = @transform_2, window_bounds = array<i64: 1, 32>}, {pipeline_mode = #tpu.pipeline_mode<synchronous>, transform_indices = @transform_3, window_bounds = array<i64: 16, 32, 64>}, {pipeline_mode = #tpu.pipeline_mode<synchronous>, transform_indices = @transform_4, window_bounds = array<i64: 1, 64>}, {pipeline_mode = #tpu.pipeline_mode<synchronous>, transform_indices = @transform_5, window_bounds = array<i64: 9, 64, 64>}, {pipeline_mode = #tpu.pipeline_mode<synchronous>, transform_indices = @transform_6, window_bounds = array<i64: 1, 64>}, {pipeline_mode = #tpu.pipeline_mode<synchronous>, transform_indices = @transform_7, window_bounds = array<i64: 64, 1024>}, {pipeline_mode = #tpu.pipeline_mode<synchronous>, transform_indices = @transform_8, window_bounds = array<i64: 1, 1024>}, {pipeline_mode = #tpu.pipeline_mode<synchronous>, transform_indices = @transform_9, window_bounds = array<i64: 512, 128>}, {pipeline_mode = #tpu.pipeline_mode<synchronous>, transform_indices = @transform_10, window_bounds = array<i64: 1, 128>}, {pipeline_mode = #tpu.pipeline_mode<synchronous>, transform_indices = @transform_11, window_bounds = array<i64: 512, 768>}, {pipeline_mode = #tpu.pipeline_mode<synchronous>, transform_indices = @transform_12, window_bounds = array<i64: 1, 768>}, {pipeline_mode = #tpu.pipeline_mode<synchronous>, transform_indices = @transform_13, window_bounds = array<i64: 1, 128>}, {pipeline_mode = #tpu.pipeline_mode<synchronous>, transform_indices = @transform_14, window_bounds = array<i64: 2, 6>}]} {
    %c0 = arith.constant 0 : index
    %c0_0 = arith.constant 0 : index
    %0 = vector.load %arg1[%c0, %c0_0] : memref<384x256xbf16, #tpu.memory_space<vmem>>, vector<384x256xbf16>
    %c0_1 = arith.constant 0 : index
    %c0_2 = arith.constant 0 : index
    %1 = vector.load %arg2[%c0_1, %c0_2] : memref<256x32xbf16, #tpu.memory_space<vmem>>, vector<256x32xbf16>
    %cst = arith.constant dense<0.000000e+00> : vector<384x32xf32>
    %2 = tpu.matmul %0, %1, %cst {dimension_numbers = #tpu.dot_dimension_numbers<[1], [0], [0], [1], [0, 0, 1, 1], [], []>} : vector<384x256xbf16>, vector<256x32xbf16>, vector<384x32xf32> -> vector<384x32xf32>
    %c0_3 = arith.constant 0 : index
    %c0_4 = arith.constant 0 : index
    %3 = vector.load %arg3[%c0_3, %c0_4] : memref<1x32xf32, #tpu.memory_space<vmem>>, vector<1x32xf32>
    %4 = vector.broadcast %3 : vector<1x32xf32> to vector<384x32xf32>
    %5 = arith.addf %2, %4 : vector<384x32xf32>
    %cst_5 = arith.constant 0.000000e+00 : f32
    %6 = vector.broadcast %cst_5 : f32 to vector<384x32xf32>
    %7 = arith.cmpf ogt, %5, %6 : vector<384x32xf32>
    %cst_6 = arith.constant 0.00999999977 : f32
    %8 = vector.broadcast %cst_6 : f32 to vector<384x32xf32>
    %9 = arith.mulf %8, %5 : vector<384x32xf32>
    %10 = arith.select %7, %5, %9 : vector<384x32xi1>, vector<384x32xf32>
    %11 = arith.truncf %10 : vector<384x32xf32> to vector<384x32xbf16>
    %cst_7 = arith.constant 0.000000e+00 : f32
    %12 = vector.broadcast %cst_7 : f32 to vector<24x64xf32>
    %13 = vector.extract_strided_slice %11 {offsets = [0, 0], sizes = [24, 32], strides = [1, 1]} : vector<384x32xbf16> to vector<24x32xbf16>
    %c0_8 = arith.constant 0 : index
    %c0_9 = arith.constant 0 : index
    %c0_10 = arith.constant 0 : index
    %14 = vector.load %arg4[%c0_8, %c0_9, %c0_10] : memref<16x32x64xbf16, #tpu.memory_space<vmem>>, vector<1x32x64xbf16>
    %15 = vector.shape_cast %14 : vector<1x32x64xbf16> to vector<32x64xbf16>
    %cst_11 = arith.constant dense<0.000000e+00> : vector<24x64xf32>
    %16 = tpu.matmul %13, %15, %cst_11 {dimension_numbers = #tpu.dot_dimension_numbers<[1], [0], [0], [1], [0, 0, 1, 1], [], []>} : vector<24x32xbf16>, vector<32x64xbf16>, vector<24x64xf32> -> vector<24x64xf32>
    %17 = arith.addf %12, %16 : vector<24x64xf32>
    %18 = vector.extract_strided_slice %11 {offsets = [24, 0], sizes = [24, 32], strides = [1, 1]} : vector<384x32xbf16> to vector<24x32xbf16>
    %c1 = arith.constant 1 : index
    %c0_12 = arith.constant 0 : index
    %c0_13 = arith.constant 0 : index
    %19 = vector.load %arg4[%c1, %c0_12, %c0_13] : memref<16x32x64xbf16, #tpu.memory_space<vmem>>, vector<1x32x64xbf16>
    %20 = vector.shape_cast %19 : vector<1x32x64xbf16> to vector<32x64xbf16>
    %cst_14 = arith.constant dense<0.000000e+00> : vector<24x64xf32>
    %21 = tpu.matmul %18, %20, %cst_14 {dimension_numbers = #tpu.dot_dimension_numbers<[1], [0], [0], [1], [0, 0, 1, 1], [], []>} : vector<24x32xbf16>, vector<32x64xbf16>, vector<24x64xf32> -> vector<24x64xf32>
    %22 = arith.addf %17, %21 : vector<24x64xf32>
    %23 = vector.extract_strided_slice %11 {offsets = [48, 0], sizes = [24, 32], strides = [1, 1]} : vector<384x32xbf16> to vector<24x32xbf16>
    %c2 = arith.constant 2 : index
    %c0_15 = arith.constant 0 : index
    %c0_16 = arith.constant 0 : index
    %24 = vector.load %arg4[%c2, %c0_15, %c0_16] : memref<16x32x64xbf16, #tpu.memory_space<vmem>>, vector<1x32x64xbf16>
    %25 = vector.shape_cast %24 : vector<1x32x64xbf16> to vector<32x64xbf16>
    %cst_17 = arith.constant dense<0.000000e+00> : vector<24x64xf32>
    %26 = tpu.matmul %23, %25, %cst_17 {dimension_numbers = #tpu.dot_dimension_numbers<[1], [0], [0], [1], [0, 0, 1, 1], [], []>} : vector<24x32xbf16>, vector<32x64xbf16>, vector<24x64xf32> -> vector<24x64xf32>
    %27 = arith.addf %22, %26 : vector<24x64xf32>
    %28 = vector.extract_strided_slice %11 {offsets = [72, 0], sizes = [24, 32], strides = [1, 1]} : vector<384x32xbf16> to vector<24x32xbf16>
    %c3 = arith.constant 3 : index
    %c0_18 = arith.constant 0 : index
    %c0_19 = arith.constant 0 : index
    %29 = vector.load %arg4[%c3, %c0_18, %c0_19] : memref<16x32x64xbf16, #tpu.memory_space<vmem>>, vector<1x32x64xbf16>
    %30 = vector.shape_cast %29 : vector<1x32x64xbf16> to vector<32x64xbf16>
    %cst_20 = arith.constant dense<0.000000e+00> : vector<24x64xf32>
    %31 = tpu.matmul %28, %30, %cst_20 {dimension_numbers = #tpu.dot_dimension_numbers<[1], [0], [0], [1], [0, 0, 1, 1], [], []>} : vector<24x32xbf16>, vector<32x64xbf16>, vector<24x64xf32> -> vector<24x64xf32>
    %32 = arith.addf %27, %31 : vector<24x64xf32>
    %33 = vector.extract_strided_slice %11 {offsets = [96, 0], sizes = [24, 32], strides = [1, 1]} : vector<384x32xbf16> to vector<24x32xbf16>
    %c4 = arith.constant 4 : index
    %c0_21 = arith.constant 0 : index
    %c0_22 = arith.constant 0 : index
    %34 = vector.load %arg4[%c4, %c0_21, %c0_22] : memref<16x32x64xbf16, #tpu.memory_space<vmem>>, vector<1x32x64xbf16>
    %35 = vector.shape_cast %34 : vector<1x32x64xbf16> to vector<32x64xbf16>
    %cst_23 = arith.constant dense<0.000000e+00> : vector<24x64xf32>
    %36 = tpu.matmul %33, %35, %cst_23 {dimension_numbers = #tpu.dot_dimension_numbers<[1], [0], [0], [1], [0, 0, 1, 1], [], []>} : vector<24x32xbf16>, vector<32x64xbf16>, vector<24x64xf32> -> vector<24x64xf32>
    %37 = arith.addf %32, %36 : vector<24x64xf32>
    %38 = vector.extract_strided_slice %11 {offsets = [120, 0], sizes = [24, 32], strides = [1, 1]} : vector<384x32xbf16> to vector<24x32xbf16>
    %c5 = arith.constant 5 : index
    %c0_24 = arith.constant 0 : index
    %c0_25 = arith.constant 0 : index
    %39 = vector.load %arg4[%c5, %c0_24, %c0_25] : memref<16x32x64xbf16, #tpu.memory_space<vmem>>, vector<1x32x64xbf16>
    %40 = vector.shape_cast %39 : vector<1x32x64xbf16> to vector<32x64xbf16>
    %cst_26 = arith.constant dense<0.000000e+00> : vector<24x64xf32>
    %41 = tpu.matmul %38, %40, %cst_26 {dimension_numbers = #tpu.dot_dimension_numbers<[1], [0], [0], [1], [0, 0, 1, 1], [], []>} : vector<24x32xbf16>, vector<32x64xbf16>, vector<24x64xf32> -> vector<24x64xf32>
    %42 = arith.addf %37, %41 : vector<24x64xf32>
    %43 = vector.extract_strided_slice %11 {offsets = [144, 0], sizes = [24, 32], strides = [1, 1]} : vector<384x32xbf16> to vector<24x32xbf16>
    %c6 = arith.constant 6 : index
    %c0_27 = arith.constant 0 : index
    %c0_28 = arith.constant 0 : index
    %44 = vector.load %arg4[%c6, %c0_27, %c0_28] : memref<16x32x64xbf16, #tpu.memory_space<vmem>>, vector<1x32x64xbf16>
    %45 = vector.shape_cast %44 : vector<1x32x64xbf16> to vector<32x64xbf16>
    %cst_29 = arith.constant dense<0.000000e+00> : vector<24x64xf32>
    %46 = tpu.matmul %43, %45, %cst_29 {dimension_numbers = #tpu.dot_dimension_numbers<[1], [0], [0], [1], [0, 0, 1, 1], [], []>} : vector<24x32xbf16>, vector<32x64xbf16>, vector<24x64xf32> -> vector<24x64xf32>
    %47 = arith.addf %42, %46 : vector<24x64xf32>
    %48 = vector.extract_strided_slice %11 {offsets = [168, 0], sizes = [24, 32], strides = [1, 1]} : vector<384x32xbf16> to vector<24x32xbf16>
    %c7 = arith.constant 7 : index
    %c0_30 = arith.constant 0 : index
    %c0_31 = arith.constant 0 : index
    %49 = vector.load %arg4[%c7, %c0_30, %c0_31] : memref<16x32x64xbf16, #tpu.memory_space<vmem>>, vector<1x32x64xbf16>
    %50 = vector.shape_cast %49 : vector<1x32x64xbf16> to vector<32x64xbf16>
    %cst_32 = arith.constant dense<0.000000e+00> : vector<24x64xf32>
    %51 = tpu.matmul %48, %50, %cst_32 {dimension_numbers = #tpu.dot_dimension_numbers<[1], [0], [0], [1], [0, 0, 1, 1], [], []>} : vector<24x32xbf16>, vector<32x64xbf16>, vector<24x64xf32> -> vector<24x64xf32>
    %52 = arith.addf %47, %51 : vector<24x64xf32>
    %53 = vector.extract_strided_slice %11 {offsets = [192, 0], sizes = [24, 32], strides = [1, 1]} : vector<384x32xbf16> to vector<24x32xbf16>
    %c8 = arith.constant 8 : index
    %c0_33 = arith.constant 0 : index
    %c0_34 = arith.constant 0 : index
    %54 = vector.load %arg4[%c8, %c0_33, %c0_34] : memref<16x32x64xbf16, #tpu.memory_space<vmem>>, vector<1x32x64xbf16>
    %55 = vector.shape_cast %54 : vector<1x32x64xbf16> to vector<32x64xbf16>
    %cst_35 = arith.constant dense<0.000000e+00> : vector<24x64xf32>
    %56 = tpu.matmul %53, %55, %cst_35 {dimension_numbers = #tpu.dot_dimension_numbers<[1], [0], [0], [1], [0, 0, 1, 1], [], []>} : vector<24x32xbf16>, vector<32x64xbf16>, vector<24x64xf32> -> vector<24x64xf32>
    %57 = arith.addf %52, %56 : vector<24x64xf32>
    %58 = vector.extract_strided_slice %11 {offsets = [216, 0], sizes = [24, 32], strides = [1, 1]} : vector<384x32xbf16> to vector<24x32xbf16>
    %c9 = arith.constant 9 : index
    %c0_36 = arith.constant 0 : index
    %c0_37 = arith.constant 0 : index
    %59 = vector.load %arg4[%c9, %c0_36, %c0_37] : memref<16x32x64xbf16, #tpu.memory_space<vmem>>, vector<1x32x64xbf16>
    %60 = vector.shape_cast %59 : vector<1x32x64xbf16> to vector<32x64xbf16>
    %cst_38 = arith.constant dense<0.000000e+00> : vector<24x64xf32>
    %61 = tpu.matmul %58, %60, %cst_38 {dimension_numbers = #tpu.dot_dimension_numbers<[1], [0], [0], [1], [0, 0, 1, 1], [], []>} : vector<24x32xbf16>, vector<32x64xbf16>, vector<24x64xf32> -> vector<24x64xf32>
    %62 = arith.addf %57, %61 : vector<24x64xf32>
    %63 = vector.extract_strided_slice %11 {offsets = [240, 0], sizes = [24, 32], strides = [1, 1]} : vector<384x32xbf16> to vector<24x32xbf16>
    %c10 = arith.constant 10 : index
    %c0_39 = arith.constant 0 : index
    %c0_40 = arith.constant 0 : index
    %64 = vector.load %arg4[%c10, %c0_39, %c0_40] : memref<16x32x64xbf16, #tpu.memory_space<vmem>>, vector<1x32x64xbf16>
    %65 = vector.shape_cast %64 : vector<1x32x64xbf16> to vector<32x64xbf16>
    %cst_41 = arith.constant dense<0.000000e+00> : vector<24x64xf32>
    %66 = tpu.matmul %63, %65, %cst_41 {dimension_numbers = #tpu.dot_dimension_numbers<[1], [0], [0], [1], [0, 0, 1, 1], [], []>} : vector<24x32xbf16>, vector<32x64xbf16>, vector<24x64xf32> -> vector<24x64xf32>
    %67 = arith.addf %62, %66 : vector<24x64xf32>
    %68 = vector.extract_strided_slice %11 {offsets = [264, 0], sizes = [24, 32], strides = [1, 1]} : vector<384x32xbf16> to vector<24x32xbf16>
    %c11 = arith.constant 11 : index
    %c0_42 = arith.constant 0 : index
    %c0_43 = arith.constant 0 : index
    %69 = vector.load %arg4[%c11, %c0_42, %c0_43] : memref<16x32x64xbf16, #tpu.memory_space<vmem>>, vector<1x32x64xbf16>
    %70 = vector.shape_cast %69 : vector<1x32x64xbf16> to vector<32x64xbf16>
    %cst_44 = arith.constant dense<0.000000e+00> : vector<24x64xf32>
    %71 = tpu.matmul %68, %70, %cst_44 {dimension_numbers = #tpu.dot_dimension_numbers<[1], [0], [0], [1], [0, 0, 1, 1], [], []>} : vector<24x32xbf16>, vector<32x64xbf16>, vector<24x64xf32> -> vector<24x64xf32>
    %72 = arith.addf %67, %71 : vector<24x64xf32>
    %73 = vector.extract_strided_slice %11 {offsets = [288, 0], sizes = [24, 32], strides = [1, 1]} : vector<384x32xbf16> to vector<24x32xbf16>
    %c12 = arith.constant 12 : index
    %c0_45 = arith.constant 0 : index
    %c0_46 = arith.constant 0 : index
    %74 = vector.load %arg4[%c12, %c0_45, %c0_46] : memref<16x32x64xbf16, #tpu.memory_space<vmem>>, vector<1x32x64xbf16>
    %75 = vector.shape_cast %74 : vector<1x32x64xbf16> to vector<32x64xbf16>
    %cst_47 = arith.constant dense<0.000000e+00> : vector<24x64xf32>
    %76 = tpu.matmul %73, %75, %cst_47 {dimension_numbers = #tpu.dot_dimension_numbers<[1], [0], [0], [1], [0, 0, 1, 1], [], []>} : vector<24x32xbf16>, vector<32x64xbf16>, vector<24x64xf32> -> vector<24x64xf32>
    %77 = arith.addf %72, %76 : vector<24x64xf32>
    %78 = vector.extract_strided_slice %11 {offsets = [312, 0], sizes = [24, 32], strides = [1, 1]} : vector<384x32xbf16> to vector<24x32xbf16>
    %c13 = arith.constant 13 : index
    %c0_48 = arith.constant 0 : index
    %c0_49 = arith.constant 0 : index
    %79 = vector.load %arg4[%c13, %c0_48, %c0_49] : memref<16x32x64xbf16, #tpu.memory_space<vmem>>, vector<1x32x64xbf16>
    %80 = vector.shape_cast %79 : vector<1x32x64xbf16> to vector<32x64xbf16>
    %cst_50 = arith.constant dense<0.000000e+00> : vector<24x64xf32>
    %81 = tpu.matmul %78, %80, %cst_50 {dimension_numbers = #tpu.dot_dimension_numbers<[1], [0], [0], [1], [0, 0, 1, 1], [], []>} : vector<24x32xbf16>, vector<32x64xbf16>, vector<24x64xf32> -> vector<24x64xf32>
    %82 = arith.addf %77, %81 : vector<24x64xf32>
    %83 = vector.extract_strided_slice %11 {offsets = [336, 0], sizes = [24, 32], strides = [1, 1]} : vector<384x32xbf16> to vector<24x32xbf16>
    %c14 = arith.constant 14 : index
    %c0_51 = arith.constant 0 : index
    %c0_52 = arith.constant 0 : index
    %84 = vector.load %arg4[%c14, %c0_51, %c0_52] : memref<16x32x64xbf16, #tpu.memory_space<vmem>>, vector<1x32x64xbf16>
    %85 = vector.shape_cast %84 : vector<1x32x64xbf16> to vector<32x64xbf16>
    %cst_53 = arith.constant dense<0.000000e+00> : vector<24x64xf32>
    %86 = tpu.matmul %83, %85, %cst_53 {dimension_numbers = #tpu.dot_dimension_numbers<[1], [0], [0], [1], [0, 0, 1, 1], [], []>} : vector<24x32xbf16>, vector<32x64xbf16>, vector<24x64xf32> -> vector<24x64xf32>
    %87 = arith.addf %82, %86 : vector<24x64xf32>
    %88 = vector.extract_strided_slice %11 {offsets = [360, 0], sizes = [24, 32], strides = [1, 1]} : vector<384x32xbf16> to vector<24x32xbf16>
    %c15 = arith.constant 15 : index
    %c0_54 = arith.constant 0 : index
    %c0_55 = arith.constant 0 : index
    %89 = vector.load %arg4[%c15, %c0_54, %c0_55] : memref<16x32x64xbf16, #tpu.memory_space<vmem>>, vector<1x32x64xbf16>
    %90 = vector.shape_cast %89 : vector<1x32x64xbf16> to vector<32x64xbf16>
    %cst_56 = arith.constant dense<0.000000e+00> : vector<24x64xf32>
    %91 = tpu.matmul %88, %90, %cst_56 {dimension_numbers = #tpu.dot_dimension_numbers<[1], [0], [0], [1], [0, 0, 1, 1], [], []>} : vector<24x32xbf16>, vector<32x64xbf16>, vector<24x64xf32> -> vector<24x64xf32>
    %92 = arith.addf %87, %91 : vector<24x64xf32>
    %c0_57 = arith.constant 0 : index
    %c0_58 = arith.constant 0 : index
    %93 = vector.load %arg5[%c0_57, %c0_58] : memref<1x64xf32, #tpu.memory_space<vmem>>, vector<1x64xf32>
    %94 = vector.broadcast %93 : vector<1x64xf32> to vector<24x64xf32>
    %95 = arith.addf %92, %94 : vector<24x64xf32>
    %cst_59 = arith.constant 0.000000e+00 : f32
    %96 = vector.broadcast %cst_59 : f32 to vector<24x64xf32>
    %97 = arith.cmpf ogt, %95, %96 : vector<24x64xf32>
    %cst_60 = arith.constant 0.00999999977 : f32
    %98 = vector.broadcast %cst_60 : f32 to vector<24x64xf32>
    %99 = arith.mulf %98, %95 : vector<24x64xf32>
    %100 = arith.select %97, %95, %99 : vector<24x64xi1>, vector<24x64xf32>
    %101 = arith.truncf %100 : vector<24x64xf32> to vector<24x64xbf16>
    %cst_61 = arith.constant 0.000000e+00 : f32
    %102 = vector.broadcast %cst_61 : f32 to vector<2x64xf32>
    %103 = vector.extract_strided_slice %101 {offsets = [0, 0], sizes = [2, 64], strides = [1, 1]} : vector<24x64xbf16> to vector<2x64xbf16>
    %c0_62 = arith.constant 0 : index
    %c0_63 = arith.constant 0 : index
    %c0_64 = arith.constant 0 : index
    %104 = vector.load %arg6[%c0_62, %c0_63, %c0_64] : memref<9x64x64xbf16, #tpu.memory_space<vmem>>, vector<1x64x64xbf16>
    %105 = vector.shape_cast %104 : vector<1x64x64xbf16> to vector<64x64xbf16>
    %cst_65 = arith.constant dense<0.000000e+00> : vector<2x64xf32>
    %106 = tpu.matmul %103, %105, %cst_65 {dimension_numbers = #tpu.dot_dimension_numbers<[1], [0], [0], [1], [0, 0, 1, 1], [], []>} : vector<2x64xbf16>, vector<64x64xbf16>, vector<2x64xf32> -> vector<2x64xf32>
    %107 = arith.addf %102, %106 : vector<2x64xf32>
    %108 = vector.extract_strided_slice %101 {offsets = [2, 0], sizes = [2, 64], strides = [1, 1]} : vector<24x64xbf16> to vector<2x64xbf16>
    %c1_66 = arith.constant 1 : index
    %c0_67 = arith.constant 0 : index
    %c0_68 = arith.constant 0 : index
    %109 = vector.load %arg6[%c1_66, %c0_67, %c0_68] : memref<9x64x64xbf16, #tpu.memory_space<vmem>>, vector<1x64x64xbf16>
    %110 = vector.shape_cast %109 : vector<1x64x64xbf16> to vector<64x64xbf16>
    %cst_69 = arith.constant dense<0.000000e+00> : vector<2x64xf32>
    %111 = tpu.matmul %108, %110, %cst_69 {dimension_numbers = #tpu.dot_dimension_numbers<[1], [0], [0], [1], [0, 0, 1, 1], [], []>} : vector<2x64xbf16>, vector<64x64xbf16>, vector<2x64xf32> -> vector<2x64xf32>
    %112 = arith.addf %107, %111 : vector<2x64xf32>
    %113 = vector.extract_strided_slice %101 {offsets = [4, 0], sizes = [2, 64], strides = [1, 1]} : vector<24x64xbf16> to vector<2x64xbf16>
    %c2_70 = arith.constant 2 : index
    %c0_71 = arith.constant 0 : index
    %c0_72 = arith.constant 0 : index
    %114 = vector.load %arg6[%c2_70, %c0_71, %c0_72] : memref<9x64x64xbf16, #tpu.memory_space<vmem>>, vector<1x64x64xbf16>
    %115 = vector.shape_cast %114 : vector<1x64x64xbf16> to vector<64x64xbf16>
    %cst_73 = arith.constant dense<0.000000e+00> : vector<2x64xf32>
    %116 = tpu.matmul %113, %115, %cst_73 {dimension_numbers = #tpu.dot_dimension_numbers<[1], [0], [0], [1], [0, 0, 1, 1], [], []>} : vector<2x64xbf16>, vector<64x64xbf16>, vector<2x64xf32> -> vector<2x64xf32>
    %117 = arith.addf %112, %116 : vector<2x64xf32>
    %118 = vector.extract_strided_slice %101 {offsets = [6, 0], sizes = [2, 64], strides = [1, 1]} : vector<24x64xbf16> to vector<2x64xbf16>
    %c3_74 = arith.constant 3 : index
    %c0_75 = arith.constant 0 : index
    %c0_76 = arith.constant 0 : index
    %119 = vector.load %arg6[%c3_74, %c0_75, %c0_76] : memref<9x64x64xbf16, #tpu.memory_space<vmem>>, vector<1x64x64xbf16>
    %120 = vector.shape_cast %119 : vector<1x64x64xbf16> to vector<64x64xbf16>
    %cst_77 = arith.constant dense<0.000000e+00> : vector<2x64xf32>
    %121 = tpu.matmul %118, %120, %cst_77 {dimension_numbers = #tpu.dot_dimension_numbers<[1], [0], [0], [1], [0, 0, 1, 1], [], []>} : vector<2x64xbf16>, vector<64x64xbf16>, vector<2x64xf32> -> vector<2x64xf32>
    %122 = arith.addf %117, %121 : vector<2x64xf32>
    %123 = vector.extract_strided_slice %101 {offsets = [8, 0], sizes = [2, 64], strides = [1, 1]} : vector<24x64xbf16> to vector<2x64xbf16>
    %c4_78 = arith.constant 4 : index
    %c0_79 = arith.constant 0 : index
    %c0_80 = arith.constant 0 : index
    %124 = vector.load %arg6[%c4_78, %c0_79, %c0_80] : memref<9x64x64xbf16, #tpu.memory_space<vmem>>, vector<1x64x64xbf16>
    %125 = vector.shape_cast %124 : vector<1x64x64xbf16> to vector<64x64xbf16>
    %cst_81 = arith.constant dense<0.000000e+00> : vector<2x64xf32>
    %126 = tpu.matmul %123, %125, %cst_81 {dimension_numbers = #tpu.dot_dimension_numbers<[1], [0], [0], [1], [0, 0, 1, 1], [], []>} : vector<2x64xbf16>, vector<64x64xbf16>, vector<2x64xf32> -> vector<2x64xf32>
    %127 = arith.addf %122, %126 : vector<2x64xf32>
    %128 = vector.extract_strided_slice %101 {offsets = [10, 0], sizes = [2, 64], strides = [1, 1]} : vector<24x64xbf16> to vector<2x64xbf16>
    %c5_82 = arith.constant 5 : index
    %c0_83 = arith.constant 0 : index
    %c0_84 = arith.constant 0 : index
    %129 = vector.load %arg6[%c5_82, %c0_83, %c0_84] : memref<9x64x64xbf16, #tpu.memory_space<vmem>>, vector<1x64x64xbf16>
    %130 = vector.shape_cast %129 : vector<1x64x64xbf16> to vector<64x64xbf16>
    %cst_85 = arith.constant dense<0.000000e+00> : vector<2x64xf32>
    %131 = tpu.matmul %128, %130, %cst_85 {dimension_numbers = #tpu.dot_dimension_numbers<[1], [0], [0], [1], [0, 0, 1, 1], [], []>} : vector<2x64xbf16>, vector<64x64xbf16>, vector<2x64xf32> -> vector<2x64xf32>
    %132 = arith.addf %127, %131 : vector<2x64xf32>
    %133 = vector.extract_strided_slice %101 {offsets = [12, 0], sizes = [2, 64], strides = [1, 1]} : vector<24x64xbf16> to vector<2x64xbf16>
    %c6_86 = arith.constant 6 : index
    %c0_87 = arith.constant 0 : index
    %c0_88 = arith.constant 0 : index
    %134 = vector.load %arg6[%c6_86, %c0_87, %c0_88] : memref<9x64x64xbf16, #tpu.memory_space<vmem>>, vector<1x64x64xbf16>
    %135 = vector.shape_cast %134 : vector<1x64x64xbf16> to vector<64x64xbf16>
    %cst_89 = arith.constant dense<0.000000e+00> : vector<2x64xf32>
    %136 = tpu.matmul %133, %135, %cst_89 {dimension_numbers = #tpu.dot_dimension_numbers<[1], [0], [0], [1], [0, 0, 1, 1], [], []>} : vector<2x64xbf16>, vector<64x64xbf16>, vector<2x64xf32> -> vector<2x64xf32>
    %137 = arith.addf %132, %136 : vector<2x64xf32>
    %138 = vector.extract_strided_slice %101 {offsets = [14, 0], sizes = [2, 64], strides = [1, 1]} : vector<24x64xbf16> to vector<2x64xbf16>
    %c7_90 = arith.constant 7 : index
    %c0_91 = arith.constant 0 : index
    %c0_92 = arith.constant 0 : index
    %139 = vector.load %arg6[%c7_90, %c0_91, %c0_92] : memref<9x64x64xbf16, #tpu.memory_space<vmem>>, vector<1x64x64xbf16>
    %140 = vector.shape_cast %139 : vector<1x64x64xbf16> to vector<64x64xbf16>
    %cst_93 = arith.constant dense<0.000000e+00> : vector<2x64xf32>
    %141 = tpu.matmul %138, %140, %cst_93 {dimension_numbers = #tpu.dot_dimension_numbers<[1], [0], [0], [1], [0, 0, 1, 1], [], []>} : vector<2x64xbf16>, vector<64x64xbf16>, vector<2x64xf32> -> vector<2x64xf32>
    %142 = arith.addf %137, %141 : vector<2x64xf32>
    %143 = vector.extract_strided_slice %101 {offsets = [16, 0], sizes = [2, 64], strides = [1, 1]} : vector<24x64xbf16> to vector<2x64xbf16>
    %c8_94 = arith.constant 8 : index
    %c0_95 = arith.constant 0 : index
    %c0_96 = arith.constant 0 : index
    %144 = vector.load %arg6[%c8_94, %c0_95, %c0_96] : memref<9x64x64xbf16, #tpu.memory_space<vmem>>, vector<1x64x64xbf16>
    %145 = vector.shape_cast %144 : vector<1x64x64xbf16> to vector<64x64xbf16>
    %cst_97 = arith.constant dense<0.000000e+00> : vector<2x64xf32>
    %146 = tpu.matmul %143, %145, %cst_97 {dimension_numbers = #tpu.dot_dimension_numbers<[1], [0], [0], [1], [0, 0, 1, 1], [], []>} : vector<2x64xbf16>, vector<64x64xbf16>, vector<2x64xf32> -> vector<2x64xf32>
    %147 = arith.addf %142, %146 : vector<2x64xf32>
    %c0_98 = arith.constant 0 : index
    %c0_99 = arith.constant 0 : index
    %148 = vector.load %arg7[%c0_98, %c0_99] : memref<1x64xf32, #tpu.memory_space<vmem>>, vector<1x64xf32>
    %149 = vector.broadcast %148 : vector<1x64xf32> to vector<2x64xf32>
    %150 = arith.addf %147, %149 : vector<2x64xf32>
    %cst_100 = arith.constant 0.000000e+00 : f32
    %151 = vector.broadcast %cst_100 : f32 to vector<2x64xf32>
    %152 = arith.cmpf ogt, %150, %151 : vector<2x64xf32>
    %cst_101 = arith.constant 0.00999999977 : f32
    %153 = vector.broadcast %cst_101 : f32 to vector<2x64xf32>
    %154 = arith.mulf %153, %150 : vector<2x64xf32>
    %155 = arith.select %152, %150, %154 : vector<2x64xi1>, vector<2x64xf32>
    %156 = arith.truncf %155 : vector<2x64xf32> to vector<2x64xbf16>
    %cst_102 = arith.constant 0.000000e+00 : f32
    %157 = vector.broadcast %cst_102 : f32 to vector<2x1024xf32>
    %c0_103 = arith.constant 0 : index
    %c0_104 = arith.constant 0 : index
    %158 = vector.load %arg8[%c0_103, %c0_104] : memref<64x1024xbf16, #tpu.memory_space<vmem>>, vector<64x1024xbf16>
    %cst_105 = arith.constant dense<0.000000e+00> : vector<2x1024xf32>
    %159 = tpu.matmul %156, %158, %cst_105 {dimension_numbers = #tpu.dot_dimension_numbers<[1], [0], [0], [1], [0, 0, 1, 1], [], []>} : vector<2x64xbf16>, vector<64x1024xbf16>, vector<2x1024xf32> -> vector<2x1024xf32>
    %160 = arith.addf %157, %159 : vector<2x1024xf32>
    %c0_106 = arith.constant 0 : index
    %c0_107 = arith.constant 0 : index
    %161 = vector.load %arg9[%c0_106, %c0_107] : memref<1x1024xf32, #tpu.memory_space<vmem>>, vector<1x1024xf32>
    %162 = vector.broadcast %161 : vector<1x1024xf32> to vector<2x1024xf32>
    %163 = arith.addf %160, %162 : vector<2x1024xf32>
    %cst_108 = arith.constant 0.000000e+00 : f32
    %164 = vector.broadcast %cst_108 : f32 to vector<2x1024xf32>
    %165 = arith.maximumf %163, %164 : vector<2x1024xf32>
    %166 = arith.truncf %165 : vector<2x1024xf32> to vector<2x1024xbf16>
    %167 = vector.extract_strided_slice %166 {offsets = [0, 0], sizes = [2, 512], strides = [1, 1]} : vector<2x1024xbf16> to vector<2x512xbf16>
    %168 = vector.extract_strided_slice %166 {offsets = [0, 512], sizes = [2, 512], strides = [1, 1]} : vector<2x1024xbf16> to vector<2x512xbf16>
    %c0_109 = arith.constant 0 : index
    %c0_110 = arith.constant 0 : index
    %169 = vector.load %arg10[%c0_109, %c0_110] : memref<512x128xbf16, #tpu.memory_space<vmem>>, vector<512x128xbf16>
    %cst_111 = arith.constant dense<0.000000e+00> : vector<2x128xf32>
    %170 = tpu.matmul %167, %169, %cst_111 {dimension_numbers = #tpu.dot_dimension_numbers<[1], [0], [0], [1], [0, 0, 1, 1], [], []>} : vector<2x512xbf16>, vector<512x128xbf16>, vector<2x128xf32> -> vector<2x128xf32>
    %c0_112 = arith.constant 0 : index
    %c0_113 = arith.constant 0 : index
    %171 = vector.load %arg11[%c0_112, %c0_113] : memref<1x128xf32, #tpu.memory_space<vmem>>, vector<1x128xf32>
    %172 = vector.broadcast %171 : vector<1x128xf32> to vector<2x128xf32>
    %173 = arith.addf %170, %172 : vector<2x128xf32>
    %c0_114 = arith.constant 0 : index
    %c0_115 = arith.constant 0 : index
    %174 = vector.load %arg12[%c0_114, %c0_115] : memref<512x768xbf16, #tpu.memory_space<vmem>>, vector<512x768xbf16>
    %cst_116 = arith.constant dense<0.000000e+00> : vector<2x768xf32>
    %175 = tpu.matmul %168, %174, %cst_116 {dimension_numbers = #tpu.dot_dimension_numbers<[1], [0], [0], [1], [0, 0, 1, 1], [], []>} : vector<2x512xbf16>, vector<512x768xbf16>, vector<2x768xf32> -> vector<2x768xf32>
    %c0_117 = arith.constant 0 : index
    %c0_118 = arith.constant 0 : index
    %176 = vector.load %arg13[%c0_117, %c0_118] : memref<1x768xf32, #tpu.memory_space<vmem>>, vector<1x768xf32>
    %177 = vector.broadcast %176 : vector<1x768xf32> to vector<2x768xf32>
    %178 = arith.addf %175, %177 : vector<2x768xf32>
    %179 = vector.extract_strided_slice %178 {offsets = [0, 0], sizes = [2, 128], strides = [1, 1]} : vector<2x768xf32> to vector<2x128xf32>
    %180 = vector.extract_strided_slice %178 {offsets = [0, 128], sizes = [2, 128], strides = [1, 1]} : vector<2x768xf32> to vector<2x128xf32>
    %181 = vector.extract_strided_slice %178 {offsets = [0, 256], sizes = [2, 128], strides = [1, 1]} : vector<2x768xf32> to vector<2x128xf32>
    %182 = vector.extract_strided_slice %178 {offsets = [0, 384], sizes = [2, 128], strides = [1, 1]} : vector<2x768xf32> to vector<2x128xf32>
    %183 = vector.extract_strided_slice %178 {offsets = [0, 512], sizes = [2, 128], strides = [1, 1]} : vector<2x768xf32> to vector<2x128xf32>
    %184 = vector.extract_strided_slice %178 {offsets = [0, 640], sizes = [2, 128], strides = [1, 1]} : vector<2x768xf32> to vector<2x128xf32>
    %185 = vector.shape_cast %179 : vector<2x128xf32> to vector<2x1x128xf32>
    %186 = vector.shape_cast %180 : vector<2x128xf32> to vector<2x1x128xf32>
    %187 = vector.shape_cast %181 : vector<2x128xf32> to vector<2x1x128xf32>
    %188 = vector.shape_cast %182 : vector<2x128xf32> to vector<2x1x128xf32>
    %189 = vector.shape_cast %183 : vector<2x128xf32> to vector<2x1x128xf32>
    %190 = vector.shape_cast %184 : vector<2x128xf32> to vector<2x1x128xf32>
    %191 = tpu.concatenate %185, %186, %187, %188, %189, %190 in 1 : vector<2x1x128xf32>, vector<2x1x128xf32>, vector<2x1x128xf32>, vector<2x1x128xf32>, vector<2x1x128xf32>, vector<2x1x128xf32> -> vector<2x6x128xf32>
    %cst_119 = arith.constant dense<0.000000e+00> : vector<2x128xf32>
    %192 = vector.multi_reduction <add>, %191, %cst_119 [1] : vector<2x6x128xf32> to vector<2x128xf32>
    %193 = vector.shape_cast %192 : vector<2x128xf32> to vector<2x1x128xf32>
    %cst_120 = arith.constant 6.000000e+00 : f32
    %194 = vector.broadcast %cst_120 : f32 to vector<2x1x128xf32>
    %195 = arith.divf %193, %194 : vector<2x1x128xf32>
    %196 = vector.shape_cast %173 : vector<2x128xf32> to vector<2x1x128xf32>
    %197 = vector.broadcast %196 : vector<2x1x128xf32> to vector<2x6x128xf32>
    %198 = arith.addf %197, %191 : vector<2x6x128xf32>
    %199 = vector.broadcast %195 : vector<2x1x128xf32> to vector<2x6x128xf32>
    %200 = arith.subf %198, %199 : vector<2x6x128xf32>
    %201 = tpu.iota {dimensions = array<i32: 2>} : vector<1x1x128xi32>
    %c51_i32 = arith.constant 51 : i32
    %202 = vector.broadcast %c51_i32 : i32 to vector<1x1x128xi32>
    %203 = arith.cmpi slt, %201, %202 : vector<1x1x128xi32>
    %cst_121 = arith.constant -1.000000e+30 : f32
    %204 = vector.shape_cast %203 : vector<1x1x128xi1> to vector<1x1x128xi1>
    %205 = vector.broadcast %204 : vector<1x1x128xi1> to vector<2x6x128xi1>
    %206 = vector.broadcast %cst_121 : f32 to vector<2x6x128xf32>
    %207 = arith.select %205, %200, %206 : vector<2x6x128xi1>, vector<2x6x128xf32>
    %cst_122 = arith.constant dense<0xFF800000> : vector<2x6xf32>
    %208 = vector.multi_reduction <maximumf>, %207, %cst_122 [2] : vector<2x6x128xf32> to vector<2x6xf32>
    %209 = vector.shape_cast %208 : vector<2x6xf32> to vector<2x6x1xf32>
    %210 = vector.broadcast %209 : vector<2x6x1xf32> to vector<2x6x128xf32>
    %211 = arith.subf %207, %210 : vector<2x6x128xf32>
    %212 = math.exp %211 : vector<2x6x128xf32>
    %cst_123 = arith.constant dense<0.000000e+00> : vector<2x6xf32>
    %213 = vector.multi_reduction <add>, %212, %cst_123 [2] : vector<2x6x128xf32> to vector<2x6xf32>
    %214 = vector.shape_cast %213 : vector<2x6xf32> to vector<2x6x1xf32>
    %215 = tpu.reciprocal %214 {approx = true} : vector<2x6x1xf32> -> vector<2x6x1xf32>
    %216 = vector.broadcast %215 : vector<2x6x1xf32> to vector<2x6x128xf32>
    %217 = arith.mulf %212, %216 : vector<2x6x128xf32>
    %cst_124 = arith.constant 1.000000e-03 : f32
    %218 = vector.broadcast %cst_124 : f32 to vector<2x6x128xf32>
    %219 = arith.maximumf %217, %218 : vector<2x6x128xf32>
    %c0_125 = arith.constant 0 : index
    %c0_126 = arith.constant 0 : index
    %220 = vector.load %arg14[%c0_125, %c0_126] : memref<1x128xf32, #tpu.memory_space<vmem>>, vector<1x128xf32>
    %221 = vector.shape_cast %220 : vector<1x128xf32> to vector<1x1x128xf32>
    %222 = vector.broadcast %221 : vector<1x1x128xf32> to vector<2x6x128xf32>
    %223 = arith.mulf %219, %222 : vector<2x6x128xf32>
    %cst_127 = arith.constant dense<0.000000e+00> : vector<2x6xf32>
    %224 = vector.multi_reduction <add>, %223, %cst_127 [2] : vector<2x6x128xf32> to vector<2x6xf32>
    %c0_128 = arith.constant 0 : index
    %c0_129 = arith.constant 0 : index
    %225 = vector.load %arg15[%c0_128, %c0_129] : memref<2x6xf32, #tpu.memory_space<vmem>>, vector<2x6xf32>
    tpu.vector_store %arg15[%c0_128, %c0_129], %224 {strides = array<i32>} : memref<2x6xf32, #tpu.memory_space<vmem>>, vector<2x6xf32>,
    return
  }
  func.func @transform_0(%arg0: i32) -> (i32, i32) {
    %c0_i32 = arith.constant 0 : i32
    %c0_i32_0 = arith.constant 0 : i32
    %c0_i32_1 = arith.constant 0 : i32
    return %c0_i32, %c0_i32_0 : i32, i32
  }
  func.func @transform_1(%arg0: i32) -> (i32, i32) {
    %c0_i32 = arith.constant 0 : i32
    %c0_i32_0 = arith.constant 0 : i32
    %c0_i32_1 = arith.constant 0 : i32
    return %c0_i32, %c0_i32_0 : i32, i32
  }
  func.func @transform_2(%arg0: i32) -> (i32, i32) {
    %c0_i32 = arith.constant 0 : i32
    %c0_i32_0 = arith.constant 0 : i32
    %c0_i32_1 = arith.constant 0 : i32
    return %c0_i32, %c0_i32_0 : i32, i32
  }
  func.func @transform_3(%arg0: i32) -> (i32, i32, i32) {
    %c0_i32 = arith.constant 0 : i32
    %c0_i32_0 = arith.constant 0 : i32
    %c0_i32_1 = arith.constant 0 : i32
    %c0_i32_2 = arith.constant 0 : i32
    return %c0_i32, %c0_i32_0, %c0_i32_1 : i32, i32, i32
  }
  func.func @transform_4(%arg0: i32) -> (i32, i32) {
    %c0_i32 = arith.constant 0 : i32
    %c0_i32_0 = arith.constant 0 : i32
    %c0_i32_1 = arith.constant 0 : i32
    return %c0_i32, %c0_i32_0 : i32, i32
  }
  func.func @transform_5(%arg0: i32) -> (i32, i32, i32) {
    %c0_i32 = arith.constant 0 : i32
    %c0_i32_0 = arith.constant 0 : i32
    %c0_i32_1 = arith.constant 0 : i32
    %c0_i32_2 = arith.constant 0 : i32
    return %c0_i32, %c0_i32_0, %c0_i32_1 : i32, i32, i32
  }
  func.func @transform_6(%arg0: i32) -> (i32, i32) {
    %c0_i32 = arith.constant 0 : i32
    %c0_i32_0 = arith.constant 0 : i32
    %c0_i32_1 = arith.constant 0 : i32
    return %c0_i32, %c0_i32_0 : i32, i32
  }
  func.func @transform_7(%arg0: i32) -> (i32, i32) {
    %c0_i32 = arith.constant 0 : i32
    %c0_i32_0 = arith.constant 0 : i32
    %c0_i32_1 = arith.constant 0 : i32
    return %c0_i32, %c0_i32_0 : i32, i32
  }
  func.func @transform_8(%arg0: i32) -> (i32, i32) {
    %c0_i32 = arith.constant 0 : i32
    %c0_i32_0 = arith.constant 0 : i32
    %c0_i32_1 = arith.constant 0 : i32
    return %c0_i32, %c0_i32_0 : i32, i32
  }
  func.func @transform_9(%arg0: i32) -> (i32, i32) {
    %c0_i32 = arith.constant 0 : i32
    %c0_i32_0 = arith.constant 0 : i32
    %c0_i32_1 = arith.constant 0 : i32
    return %c0_i32, %c0_i32_0 : i32, i32
  }
  func.func @transform_10(%arg0: i32) -> (i32, i32) {
    %c0_i32 = arith.constant 0 : i32
    %c0_i32_0 = arith.constant 0 : i32
    %c0_i32_1 = arith.constant 0 : i32
    return %c0_i32, %c0_i32_0 : i32, i32
  }
  func.func @transform_11(%arg0: i32) -> (i32, i32) {
    %c0_i32 = arith.constant 0 : i32
    %c0_i32_0 = arith.constant 0 : i32
    %c0_i32_1 = arith.constant 0 : i32
    return %c0_i32, %c0_i32_0 : i32, i32
  }
  func.func @transform_12(%arg0: i32) -> (i32, i32) {
    %c0_i32 = arith.constant 0 : i32
    %c0_i32_0 = arith.constant 0 : i32
    %c0_i32_1 = arith.constant 0 : i32
    return %c0_i32, %c0_i32_0 : i32, i32
  }
  func.func @transform_13(%arg0: i32) -> (i32, i32) {
    %c0_i32 = arith.constant 0 : i32
    %c0_i32_0 = arith.constant 0 : i32
    %c0_i32_1 = arith.constant 0 : i32
    return %c0_i32, %c0_i32_0 : i32, i32
  }
  func.func @transform_14(%arg0: i32) -> (i32, i32) {
    %c0_i32 = arith.constant 0 : i32
    %c0_i32_0 = arith.constant 0 : i32
    %c0_i32_1 = arith.constant 0 : i32
    return %c0_i32, %c0_i32_0 : i32, i32
  }
}

</mosaic_0001>

<llo_original>
// kernel: rainbow_forward.1
$region0: #{rainbow_forward.1}
  #allocation0 [shape = 'u32[]', space=smem, size = 0x4, offset = 0x4, fixed_abs, tag = 'smem constant byte address 0x4 - core index']
  #allocation1 [shape = 'u32[144,128]{1,0:T(1,128)}', space=vmem, size = 0x12000, scoped, tag = 'internal scratch']
  %s0 = inlined_call_operand.vmem [shape: bf16[384,256], index: 0, kind: input, shape index: {}]
  %s1 = inlined_call_operand.vmem [shape: bf16[256,32], index: 1, kind: input, shape index: {}]
  %s2 = inlined_call_operand.vmem [shape: f32[1,32], index: 2, kind: input, shape index: {}]
  %s3 = inlined_call_operand.vmem [shape: bf16[16,32,64], index: 3, kind: input, shape index: {}]
  %s4 = inlined_call_operand.vmem [shape: f32[1,64], index: 4, kind: input, shape index: {}]
  %s5 = inlined_call_operand.vmem [shape: bf16[9,64,64], index: 5, kind: input, shape index: {}]
  %s6 = inlined_call_operand.vmem [shape: f32[1,64], index: 6, kind: input, shape index: {}]
  %s7 = inlined_call_operand.vmem [shape: bf16[64,1024], index: 7, kind: input, shape index: {}]
  %s8 = inlined_call_operand.vmem [shape: f32[1,1024], index: 8, kind: input, shape index: {}]
  %s9 = inlined_call_operand.vmem [shape: bf16[512,128], index: 9, kind: input, shape index: {}]
  %s10 = inlined_call_operand.vmem [shape: f32[1,128], index: 10, kind: input, shape index: {}]
  %s11 = inlined_call_operand.vmem [shape: bf16[512,768], index: 11, kind: input, shape index: {}]
  %s12 = inlined_call_operand.vmem [shape: f32[1,768], index: 12, kind: input, shape index: {}]
  %s13 = inlined_call_operand.vmem [shape: f32[1,128], index: 13, kind: input, shape index: {}]
  %s14 = inlined_call_operand.hbm [shape: f32[2,6], index: 14, kind: output, shape index: {}]
  %s15 = sld [smem:[#allocation0]]
  $region66: #{rainbow_forward.1} parent=0
    _
  %s17 = ssub.s32 1, %s15
  %s18 = scalar_select 0, %s17, %s15
  $region1: #{rainbow_forward.1} parent=0
    #allocation2 [shape = 'u8[1024]{0}', space=vmem, size = 0x400, scoped, tag = 'output window, operand 0, single buffered']
    #allocation3 [shape = 's32[1]{0}', space=sflag, size = 0x4, scoped, tag = 'scoped memory for rainbow_forward.1']
    %19 = vsyncpa [#allocation3], 0
    // Predicated region
    $region2: #{rainbow_forward.1} parent=1 // pred_check
      _
    $region3: #{rainbow_forward.1} parent=1 // pred_check_branch
      %21 = sbr.rel (0) target = $region5
    $region4: #{rainbow_forward.1} parent=1 // pred_region
      _
    $region5: #{rainbow_forward.1} parent=1 // pred_fallthru
      _
    // Predicated region
    $region6: #{rainbow_forward.1} parent=1 // pred_check
      _
    $region7: #{rainbow_forward.1} parent=1 // pred_check_branch
      %23 = sbr.rel (0) target = $region9
    $region8: #{rainbow_forward.1} parent=1 // pred_region
      _
    $region9: #{rainbow_forward.1} parent=1 // pred_fallthru
      _
    // Predicated region
    $region10: #{rainbow_forward.1} parent=1 // pred_check
      _
    $region11: #{rainbow_forward.1} parent=1 // pred_check_branch
      %25 = sbr.rel (0) target = $region13
    $region12: #{rainbow_forward.1} parent=1 // pred_region
      _
    $region13: #{rainbow_forward.1} parent=1 // pred_fallthru
      _
    // Predicated region
    $region14: #{rainbow_forward.1} parent=1 // pred_check
      _
    $region15: #{rainbow_forward.1} parent=1 // pred_check_branch
      %27 = sbr.rel (0) target = $region17
    $region16: #{rainbow_forward.1} parent=1 // pred_region
      _
    $region17: #{rainbow_forward.1} parent=1 // pred_fallthru
      _
    // Predicated region
    $region18: #{rainbow_forward.1} parent=1 // pred_check
      _
    $region19: #{rainbow_forward.1} parent=1 // pred_check_branch
      %29 = sbr.rel (0) target = $region21
    $region20: #{rainbow_forward.1} parent=1 // pred_region
      _
    $region21: #{rainbow_forward.1} parent=1 // pred_fallthru
      _
    // Predicated region
    $region22: #{rainbow_forward.1} parent=1 // pred_check
      _
    $region23: #{rainbow_forward.1} parent=1 // pred_check_branch
      %31 = sbr.rel (0) target = $region25
    $region24: #{rainbow_forward.1} parent=1 // pred_region
      _
    $region25: #{rainbow_forward.1} parent=1 // pred_fallthru
      _
    // Predicated region
    $region26: #{rainbow_forward.1} parent=1 // pred_check
      _
    $region27: #{rainbow_forward.1} parent=1 // pred_check_branch
      %33 = sbr.rel (0) target = $region29
    $region28: #{rainbow_forward.1} parent=1 // pred_region
      _
    $region29: #{rainbow_forward.1} parent=1 // pred_fallthru
      _
    // Predicated region
    $region30: #{rainbow_forward.1} parent=1 // pred_check
      _
    $region31: #{rainbow_forward.1} parent=1 // pred_check_branch
      %35 = sbr.rel (0) target = $region33
    $region32: #{rainbow_forward.1} parent=1 // pred_region
      _
    $region33: #{rainbow_forward.1} parent=1 // pred_fallthru
      _
    // Predicated region
    $region34: #{rainbow_forward.1} parent=1 // pred_check
      _
    $region35: #{rainbow_forward.1} parent=1 // pred_check_branch
      %37 = sbr.rel (0) target = $region37
    $region36: #{rainbow_forward.1} parent=1 // pred_region
      _
    $region37: #{rainbow_forward.1} parent=1 // pred_fallthru
      _
    // Predicated region
    $region38: #{rainbow_forward.1} parent=1 // pred_check
      _
    $region39: #{rainbow_forward.1} parent=1 // pred_check_branch
      %39 = sbr.rel (0) target = $region41
    $region40: #{rainbow_forward.1} parent=1 // pred_region
      _
    $region41: #{rainbow_forward.1} parent=1 // pred_fallthru
      _
    // Predicated region
    $region42: #{rainbow_forward.1} parent=1 // pred_check
      _
    $region43: #{rainbow_forward.1} parent=1 // pred_check_branch
      %41 = sbr.rel (0) target = $region45
    $region44: #{rainbow_forward.1} parent=1 // pred_region
      _
    $region45: #{rainbow_forward.1} parent=1 // pred_fallthru
      _
    // Predicated region
    $region46: #{rainbow_forward.1} parent=1 // pred_check
      _
    $region47: #{rainbow_forward.1} parent=1 // pred_check_branch
      %43 = sbr.rel (0) target = $region49
    $region48: #{rainbow_forward.1} parent=1 // pred_region
      _
    $region49: #{rainbow_forward.1} parent=1 // pred_fallthru
      _
    // Predicated region
    $region50: #{rainbow_forward.1} parent=1 // pred_check
      _
    $region51: #{rainbow_forward.1} parent=1 // pred_check_branch
      %45 = sbr.rel (0) target = $region53
    $region52: #{rainbow_forward.1} parent=1 // pred_region
      _
    $region53: #{rainbow_forward.1} parent=1 // pred_fallthru
      _
    // Predicated region
    $region54: #{rainbow_forward.1} parent=1 // pred_check
      _
    $region55: #{rainbow_forward.1} parent=1 // pred_check_branch
      %47 = sbr.rel (0) target = $region57
    $region56: #{rainbow_forward.1} parent=1 // pred_region
      _
    $region57: #{rainbow_forward.1} parent=1 // pred_fallthru
      _
    %v49 = vld [vmem:[%s0] sm:$0xff]
    %v50 = vld [vmem:[%s0 + $0x8] sm:$0xff]
    %v51 = vld [vmem:[%s0 + $0x10] sm:$0xff]
    %v52 = vld [vmem:[%s0 + $0x18] sm:$0xff]
    %v53 = vld [vmem:[%s0 + $0x20] sm:$0xff]
    %v54 = vld [vmem:[%s0 + $0x28] sm:$0xff]
    %v55 = vld [vmem:[%s0 + $0x30] sm:$0xff]
    %v56 = vld [vmem:[%s0 + $0x38] sm:$0xff]
    %v57 = vld [vmem:[%s0 + $0x40] sm:$0xff]
    %v58 = vld [vmem:[%s0 + $0x48] sm:$0xff]
    %v59 = vld [vmem:[%s0 + $0x50] sm:$0xff]
    %v60 = vld [vmem:[%s0 + $0x58] sm:$0xff]
    %v61 = vld [vmem:[%s0 + $0x60] sm:$0xff]
    %v62 = vld [vmem:[%s0 + $0x68] sm:$0xff]
    %v63 = vld [vmem:[%s0 + $0x70] sm:$0xff]
    %v64 = vld [vmem:[%s0 + $0x78] sm:$0xff]
    %v65 = vld [vmem:[%s0 + $0x80] sm:$0xff]
    %v66 = vld [vmem:[%s0 + $0x88] sm:$0xff]
    %v67 = vld [vmem:[%s0 + $0x90] sm:$0xff]
    %v68 = vld [vmem:[%s0 + $0x98] sm:$0xff]
    %v69 = vld [vmem:[%s0 + $0xa0] sm:$0xff]
    %v70 = vld [vmem:[%s0 + $0xa8] sm:$0xff]
    %v71 = vld [vmem:[%s0 + $0xb0] sm:$0xff]
    %v72 = vld [vmem:[%s0 + $0xb8] sm:$0xff]
    %v73 = vld [vmem:[%s0 + $0xc0] sm:$0xff]
    %v74 = vld [vmem:[%s0 + $0xc8] sm:$0xff]
    %v75 = vld [vmem:[%s0 + $0xd0] sm:$0xff]
    %v76 = vld [vmem:[%s0 + $0xd8] sm:$0xff]
    %v77 = vld [vmem:[%s0 + $0xe0] sm:$0xff]
    %v78 = vld [vmem:[%s0 + $0xe8] sm:$0xff]
    %v79 = vld [vmem:[%s0 + $0xf0] sm:$0xff]
    %v80 = vld [vmem:[%s0 + $0xf8] sm:$0xff]
    %v81 = vld [vmem:[%s0 + $0x100] sm:$0xff]
    %v82 = vld [vmem:[%s0 + $0x108] sm:$0xff]
    %v83 = vld [vmem:[%s0 + $0x110] sm:$0xff]
    %v84 = vld [vmem:[%s0 + $0x118] sm:$0xff]
    %v85 = vld [vmem:[%s0 + $0x120] sm:$0xff]
    %v86 = vld [vmem:[%s0 + $0x128] sm:$0xff]
    %v87 = vld [vmem:[%s0 + $0x130] sm:$0xff]
    %v88 = vld [vmem:[%s0 + $0x138] sm:$0xff]
    %v89 = vld [vmem:[%s0 + $0x140] sm:$0xff]
    %v90 = vld [vmem:[%s0 + $0x148] sm:$0xff]
    %v91 = vld [vmem:[%s0 + $0x150] sm:$0xff]
    %v92 = vld [vmem:[%s0 + $0x158] sm:$0xff]
    %v93 = vld [vmem:[%s0 + $0x160] sm:$0xff]
    %v94 = vld [vmem:[%s0 + $0x168] sm:$0xff]
    %v95 = vld [vmem:[%s0 + $0x170] sm:$0xff]
    %v96 = vld [vmem:[%s0 + $0x178] sm:$0xff]
    %v97 = vld [vmem:[%s1] sm:$0xf]
    %v98 = vld [vmem:[%s1 + $0x4] sm:$0xf]
    %v99 = vld [vmem:[%s1 + $0x8] sm:$0xf]
    %v100 = vld [vmem:[%s1 + $0xc] sm:$0xf]
    %v101 = vld [vmem:[%s1 + $0x10] sm:$0xf]
    %v102 = vld [vmem:[%s1 + $0x14] sm:$0xf]
    %v103 = vld [vmem:[%s1 + $0x18] sm:$0xf]
    %v104 = vld [vmem:[%s1 + $0x1c] sm:$0xf]
    %v105 = vld [vmem:[%s1 + $0x20] sm:$0xf]
    %v106 = vld [vmem:[%s1 + $0x24] sm:$0xf]
    %v107 = vld [vmem:[%s1 + $0x28] sm:$0xf]
    %v108 = vld [vmem:[%s1 + $0x2c] sm:$0xf]
    %v109 = vld [vmem:[%s1 + $0x30] sm:$0xf]
    %v110 = vld [vmem:[%s1 + $0x34] sm:$0xf]
    %v111 = vld [vmem:[%s1 + $0x38] sm:$0xf]
    %v112 = vld [vmem:[%s1 + $0x3c] sm:$0xf]
    %v113 = vld [vmem:[%s1 + $0x40] sm:$0xf]
    %v114 = vld [vmem:[%s1 + $0x44] sm:$0xf]
    %v115 = vld [vmem:[%s1 + $0x48] sm:$0xf]
    %v116 = vld [vmem:[%s1 + $0x4c] sm:$0xf]
    %v117 = vld [vmem:[%s1 + $0x50] sm:$0xf]
    %v118 = vld [vmem:[%s1 + $0x54] sm:$0xf]
    %v119 = vld [vmem:[%s1 + $0x58] sm:$0xf]
    %v120 = vld [vmem:[%s1 + $0x5c] sm:$0xf]
    %v121 = vld [vmem:[%s1 + $0x60] sm:$0xf]
    %v122 = vld [vmem:[%s1 + $0x64] sm:$0xf]
    %v123 = vld [vmem:[%s1 + $0x68] sm:$0xf]
    %v124 = vld [vmem:[%s1 + $0x6c] sm:$0xf]
    %v125 = vld [vmem:[%s1 + $0x70] sm:$0xf]
    %v126 = vld [vmem:[%s1 + $0x74] sm:$0xf]
    %v127 = vld [vmem:[%s1 + $0x78] sm:$0xf]
    %v128 = vld [vmem:[%s1 + $0x7c] sm:$0xf]
    %v129 = vld [vmem:[%s2] sm:$0x1]
    %v131 = vlaneseq
    %v132 = vshrl.u32 %v131, 7
    %v133 = vsub.s32 0, %v132
    %v134 = vrot.slane %v129, %v133
    %v184 = vunpack.c.l.b16 %v49
    %v185 = vunpack.c.h.b16 %v49
    %v186 = vunpack.c.l.b16 %v50
    %v187 = vunpack.c.h.b16 %v50
    %v188 = vunpack.c.l.b16 %v51
    %v189 = vunpack.c.h.b16 %v51
    %v190 = vunpack.c.l.b16 %v52
    %v191 = vunpack.c.h.b16 %v52
    %v192 = vunpack.c.l.b16 %v53
    %v193 = vunpack.c.h.b16 %v53
    %v194 = vunpack.c.l.b16 %v54
    %v195 = vunpack.c.h.b16 %v54
    %v196 = vunpack.c.l.b16 %v55
    %v197 = vunpack.c.h.b16 %v55
    %v198 = vunpack.c.l.b16 %v56
    %v199 = vunpack.c.h.b16 %v56
    %v200 = vunpack.c.l.b16 %v57
    %v201 = vunpack.c.h.b16 %v57
    %v202 = vunpack.c.l.b16 %v58
    %v203 = vunpack.c.h.b16 %v58
    %v204 = vunpack.c.l.b16 %v59
    %v205 = vunpack.c.h.b16 %v59
    %v206 = vunpack.c.l.b16 %v60
    %v207 = vunpack.c.h.b16 %v60
    %v208 = vunpack.c.l.b16 %v61
    %v209 = vunpack.c.h.b16 %v61
    %v210 = vunpack.c.l.b16 %v62
    %v211 = vunpack.c.h.b16 %v62
    %v212 = vunpack.c.l.b16 %v63
    %v213 = vunpack.c.h.b16 %v63
    %v214 = vunpack.c.l.b16 %v64
    %v215 = vunpack.c.h.b16 %v64
    %v216 = vunpack.c.l.b16 %v65
    %v217 = vunpack.c.h.b16 %v65
    %v218 = vunpack.c.l.b16 %v66
    %v219 = vunpack.c.h.b16 %v66
    %v220 = vunpack.c.l.b16 %v67
    %v221 = vunpack.c.h.b16 %v67
    %v222 = vunpack.c.l.b16 %v68
    %v223 = vunpack.c.h.b16 %v68
    %v224 = vunpack.c.l.b16 %v69
    %v225 = vunpack.c.h.b16 %v69
    %v226 = vunpack.c.l.b16 %v70
    %v227 = vunpack.c.h.b16 %v70
    %v228 = vunpack.c.l.b16 %v71
    %v229 = vunpack.c.h.b16 %v71
    %v230 = vunpack.c.l.b16 %v72
    %v231 = vunpack.c.h.b16 %v72
    %v232 = vunpack.c.l.b16 %v73
    %v233 = vunpack.c.h.b16 %v73
    %v234 = vunpack.c.l.b16 %v74
    %v235 = vunpack.c.h.b16 %v74
    %v236 = vunpack.c.l.b16 %v75
    %v237 = vunpack.c.h.b16 %v75
    %v238 = vunpack.c.l.b16 %v76
    %v239 = vunpack.c.h.b16 %v76
    %v240 = vunpack.c.l.b16 %v77
    %v241 = vunpack.c.h.b16 %v77
    %v242 = vunpack.c.l.b16 %v78
    %v243 = vunpack.c.h.b16 %v78
    %v244 = vunpack.c.l.b16 %v79
    %v245 = vunpack.c.h.b16 %v79
    %v246 = vunpack.c.l.b16 %v80
    %v247 = vunpack.c.h.b16 %v80
    %v248 = vunpack.c.l.b16 %v81
    %v249 = vunpack.c.h.b16 %v81
    %v250 = vunpack.c.l.b16 %v82
    %v251 = vunpack.c.h.b16 %v82
    %v252 = vunpack.c.l.b16 %v83
    %v253 = vunpack.c.h.b16 %v83
    %v254 = vunpack.c.l.b16 %v84
    %v255 = vunpack.c.h.b16 %v84
    %v256 = vunpack.c.l.b16 %v85
    %v257 = vunpack.c.h.b16 %v85
    %v258 = vunpack.c.l.b16 %v86
    %v259 = vunpack.c.h.b16 %v86
    %v260 = vunpack.c.l.b16 %v87
    %v261 = vunpack.c.h.b16 %v87
    %v262 = vunpack.c.l.b16 %v88
    %v263 = vunpack.c.h.b16 %v88
    %v264 = vunpack.c.l.b16 %v89
    %v265 = vunpack.c.h.b16 %v89
    %v266 = vunpack.c.l.b16 %v90
    %v267 = vunpack.c.h.b16 %v90
    %v268 = vunpack.c.l.b16 %v91
    %v269 = vunpack.c.h.b16 %v91
    %v270 = vunpack.c.l.b16 %v92
    %v271 = vunpack.c.h.b16 %v92
    %v272 = vunpack.c.l.b16 %v93
    %v273 = vunpack.c.h.b16 %v93
    %v274 = vunpack.c.l.b16 %v94
    %v275 = vunpack.c.h.b16 %v94
    %v276 = vunpack.c.l.b16 %v95
    %v277 = vunpack.c.h.b16 %v95
    %v278 = vunpack.c.l.b16 %v96
    %v279 = vunpack.c.h.b16 %v96
    %v280 = vpack.c.b16 %v186, %v184
    %v281 = vpack.c.b16 %v187, %v185
    %v282 = vpack.c.b16 %v190, %v188
    %v283 = vpack.c.b16 %v191, %v189
    %v284 = vpack.c.b16 %v194, %v192
    %v285 = vpack.c.b16 %v195, %v193
    %v286 = vpack.c.b16 %v198, %v196
    %v287 = vpack.c.b16 %v199, %v197
    %v288 = vpack.c.b16 %v202, %v200
    %v289 = vpack.c.b16 %v203, %v201
    %v290 = vpack.c.b16 %v206, %v204
    %v291 = vpack.c.b16 %v207, %v205
    %v292 = vpack.c.b16 %v210, %v208
    %v293 = vpack.c.b16 %v211, %v209
    %v294 = vpack.c.b16 %v214, %v212
    %v295 = vpack.c.b16 %v215, %v213
    %v296 = vpack.c.b16 %v218, %v216
    %v297 = vpack.c.b16 %v219, %v217
    %v298 = vpack.c.b16 %v222, %v220
    %v299 = vpack.c.b16 %v223, %v221
    %v300 = vpack.c.b16 %v226, %v224
    %v301 = vpack.c.b16 %v227, %v225
    %v302 = vpack.c.b16 %v230, %v228
    %v303 = vpack.c.b16 %v231, %v229
    %v304 = vpack.c.b16 %v234, %v232
    %v305 = vpack.c.b16 %v235, %v233
    %v306 = vpack.c.b16 %v238, %v236
    %v307 = vpack.c.b16 %v239, %v237
    %v308 = vpack.c.b16 %v242, %v240
    %v309 = vpack.c.b16 %v243, %v241
    %v310 = vpack.c.b16 %v246, %v244
    %v311 = vpack.c.b16 %v247, %v245
    %v312 = vpack.c.b16 %v250, %v248
    %v313 = vpack.c.b16 %v251, %v249
    %v314 = vpack.c.b16 %v254, %v252
    %v315 = vpack.c.b16 %v255, %v253
    %v316 = vpack.c.b16 %v258, %v256
    %v317 = vpack.c.b16 %v259, %v257
    %v318 = vpack.c.b16 %v262, %v260
    %v319 = vpack.c.b16 %v263, %v261
    %v320 = vpack.c.b16 %v266, %v264
    %v321 = vpack.c.b16 %v267, %v265
    %v322 = vpack.c.b16 %v270, %v268
    %v323 = vpack.c.b16 %v271, %v269
    %v324 = vpack.c.b16 %v274, %v272
    %v325 = vpack.c.b16 %v275, %v273
    %v326 = vpack.c.b16 %v278, %v276
    %v327 = vpack.c.b16 %v279, %v277
    %v408 = vunpack.c.l.b16 %v97
    %v409 = vunpack.c.l.b16 %v98
    %v410 = vunpack.c.l.b16 %v99
    %v411 = vunpack.c.l.b16 %v100
    %v412 = vunpack.c.l.b16 %v101
    %v413 = vunpack.c.l.b16 %v102
    %v414 = vunpack.c.l.b16 %v103
    %v415 = vunpack.c.l.b16 %v104
    %v416 = vunpack.c.l.b16 %v105
    %v417 = vunpack.c.l.b16 %v106
    %v418 = vunpack.c.l.b16 %v107
    %v419 = vunpack.c.l.b16 %v108
    %v420 = vunpack.c.l.b16 %v109
    %v421 = vunpack.c.l.b16 %v110
    %v422 = vunpack.c.l.b16 %v111
    %v423 = vunpack.c.l.b16 %v112
    %v424 = vunpack.c.l.b16 %v113
    %v425 = vunpack.c.l.b16 %v114
    %v426 = vunpack.c.l.b16 %v115
    %v427 = vunpack.c.l.b16 %v116
    %v428 = vunpack.c.l.b16 %v117
    %v429 = vunpack.c.l.b16 %v118
    %v430 = vunpack.c.l.b16 %v119
    %v431 = vunpack.c.l.b16 %v120
    %v432 = vunpack.c.l.b16 %v121
    %v433 = vunpack.c.l.b16 %v122
    %v434 = vunpack.c.l.b16 %v123
    %v435 = vunpack.c.l.b16 %v124
    %v436 = vunpack.c.l.b16 %v125
    %v437 = vunpack.c.l.b16 %v126
    %v438 = vunpack.c.l.b16 %v127
    %v439 = vunpack.c.l.b16 %v128
    %v440 = vpack.c.b16 %v409, %v408
    %v441 = vpack.c.b16 %v411, %v410
    %v442 = vpack.c.b16 %v413, %v412
    %v443 = vpack.c.b16 %v415, %v414
    %v444 = vpack.c.b16 %v417, %v416
    %v445 = vpack.c.b16 %v419, %v418
    %v446 = vpack.c.b16 %v421, %v420
    %v447 = vpack.c.b16 %v423, %v422
    %v448 = vpack.c.b16 %v425, %v424
    %v449 = vpack.c.b16 %v427, %v426
    %v450 = vpack.c.b16 %v429, %v428
    %v451 = vpack.c.b16 %v431, %v430
    %v452 = vpack.c.b16 %v433, %v432
    %v453 = vpack.c.b16 %v435, %v434
    %v454 = vpack.c.b16 %v437, %v436
    %v455 = vpack.c.b16 %v439, %v438
    %472 = vmatprep.subr.bf16.mxu0 0
    %473 = vmatpush1.bf16.msra.mxu0 %v447
    %474 = vmatprep.subr.bf16.mxu0 0
    %475 = vmatpush1.bf16.msra.mxu0 %v446
    %476 = vmatprep.subr.bf16.mxu0 0
    %477 = vmatpush1.bf16.msra.mxu0 %v445
    %478 = vmatprep.subr.bf16.mxu0 0
    %479 = vmatpush1.bf16.msra.mxu0 %v444
    %480 = vmatprep.subr.bf16.mxu0 0
    %481 = vmatpush1.bf16.msra.mxu0 %v443
    %482 = vmatprep.subr.bf16.mxu0 0
    %483 = vmatpush1.bf16.msra.mxu0 %v442
    %484 = vmatprep.subr.bf16.mxu0 0
    %485 = vmatpush1.bf16.msra.mxu0 %v441
    %486 = vmatprep.subr.bf16.mxu0 0
    %487 = vmatpush1.bf16.msra.mxu0 %v440
    %488 = vmatprep.subr.bf16.mxu0 0
    %489 = vmatpush2.bf16.msra.mxu0 %v455
    %490 = vmatprep.subr.bf16.mxu0 0
    %491 = vmatpush2.bf16.msra.mxu0 %v454
    %492 = vmatprep.subr.bf16.mxu0 0
    %493 = vmatpush2.bf16.msra.mxu0 %v453
    %494 = vmatprep.subr.bf16.mxu0 0
    %495 = vmatpush2.bf16.msra.mxu0 %v452
    %496 = vmatprep.subr.bf16.mxu0 0
    %497 = vmatpush2.bf16.msra.mxu0 %v451
    %498 = vmatprep.subr.bf16.mxu0 0
    %499 = vmatpush2.bf16.msra.mxu0 %v450
    %500 = vmatprep.subr.bf16.mxu0 0
    %501 = vmatpush2.bf16.msra.mxu0 %v449
    %502 = vmatprep.subr.bf16.mxu0 0
    %503 = vmatpush2.bf16.msra.mxu0 %v448
    %504 = vmatprep.mubr.bf16.mxu0 %v281
    %505 = vmatmul.mubr.bf16.gmra.mxu0 %v280
    %v506 = vpop.f32.mrf.mxu0
    %v507 = vadd.f32 %v134, %v506
    %v508 = vpop.f32.mrf.mxu0
    %v509 = vpop.f32.mrf.mxu0
    %v510 = vadd.f32 %v134, %v509
    %v511 = vpop.f32.mrf.mxu0
    %512 = vmatprep.mubr.bf16.mxu0 %v283
    %513 = vmatmul.mubr.bf16.gmra.mxu0 %v282
    %v514 = vpop.f32.mrf.mxu0
    %v515 = vadd.f32 %v134, %v514
    %v516 = vpop.f32.mrf.mxu0
    %v517 = vpop.f32.mrf.mxu0
    %v518 = vadd.f32 %v134, %v517
    %v519 = vpop.f32.mrf.mxu0
    %520 = vmatprep.mubr.bf16.mxu0 %v285
    %521 = vmatmul.mubr.bf16.gmra.mxu0 %v284
    %v522 = vpop.f32.mrf.mxu0
    %v523 = vadd.f32 %v134, %v522
    %v524 = vpop.f32.mrf.mxu0
    %v525 = vpop.f32.mrf.mxu0
    %v526 = vadd.f32 %v134, %v525
    %v527 = vpop.f32.mrf.mxu0
    %528 = vmatprep.mubr.bf16.mxu0 %v287
    %529 = vmatmul.mubr.bf16.gmra.mxu0 %v286
    %v530 = vpop.f32.mrf.mxu0
    %v531 = vadd.f32 %v134, %v530
    %v532 = vpop.f32.mrf.mxu0
    %v533 = vpop.f32.mrf.mxu0
    %v534 = vadd.f32 %v134, %v533
    %v535 = vpop.f32.mrf.mxu0
    %536 = vmatprep.mubr.bf16.mxu0 %v289
    %537 = vmatmul.mubr.bf16.gmra.mxu0 %v288
    %v538 = vpop.f32.mrf.mxu0
    %v539 = vadd.f32 %v134, %v538
    %v540 = vpop.f32.mrf.mxu0
    %v541 = vpop.f32.mrf.mxu0
    %v542 = vadd.f32 %v134, %v541
    %v543 = vpop.f32.mrf.mxu0
    %544 = vmatprep.mubr.bf16.mxu0 %v291
    %545 = vmatmul.mubr.bf16.gmra.mxu0 %v290
    %v546 = vpop.f32.mrf.mxu0
    %v547 = vadd.f32 %v134, %v546
    %v548 = vpop.f32.mrf.mxu0
    %v549 = vpop.f32.mrf.mxu0
    %v550 = vadd.f32 %v134, %v549
    %v551 = vpop.f32.mrf.mxu0
    %552 = vmatprep.mubr.bf16.mxu0 %v293
    %553 = vmatmul.mubr.bf16.gmra.mxu0 %v292
    %v554 = vpop.f32.mrf.mxu0
    %v555 = vadd.f32 %v134, %v554
    %v556 = vpop.f32.mrf.mxu0
    %v557 = vpop.f32.mrf.mxu0
    %v558 = vadd.f32 %v134, %v557
    %v559 = vpop.f32.mrf.mxu0
    %560 = vmatprep.mubr.bf16.mxu0 %v295
    %561 = vmatmul.mubr.bf16.gmra.mxu0 %v294
    %v562 = vpop.f32.mrf.mxu0
    %v563 = vadd.f32 %v134, %v562
    %v564 = vpop.f32.mrf.mxu0
    %v565 = vpop.f32.mrf.mxu0
    %v566 = vadd.f32 %v134, %v565
    %v567 = vpop.f32.mrf.mxu0
    %568 = vmatprep.mubr.bf16.mxu0 %v297
    %569 = vmatmul.mubr.bf16.gmra.mxu0 %v296
    %v570 = vpop.f32.mrf.mxu0
    %v571 = vadd.f32 %v134, %v570
    %v572 = vpop.f32.mrf.mxu0
    %v573 = vpop.f32.mrf.mxu0
    %v574 = vadd.f32 %v134, %v573
    %v575 = vpop.f32.mrf.mxu0
    %576 = vmatprep.mubr.bf16.mxu0 %v299
    %577 = vmatmul.mubr.bf16.gmra.mxu0 %v298
    %v578 = vpop.f32.mrf.mxu0
    %v579 = vadd.f32 %v134, %v578
    %v580 = vpop.f32.mrf.mxu0
    %v581 = vpop.f32.mrf.mxu0
    %v582 = vadd.f32 %v134, %v581
    %v583 = vpop.f32.mrf.mxu0
    %584 = vmatprep.mubr.bf16.mxu0 %v301
    %585 = vmatmul.mubr.bf16.gmra.mxu0 %v300
    %v586 = vpop.f32.mrf.mxu0
    %v587 = vadd.f32 %v134, %v586
    %v588 = vpop.f32.mrf.mxu0
    %v589 = vpop.f32.mrf.mxu0
    %v590 = vadd.f32 %v134, %v589
    %v591 = vpop.f32.mrf.mxu0
    %592 = vmatprep.mubr.bf16.mxu0 %v303
    %593 = vmatmul.mubr.bf16.gmra.mxu0 %v302
    %v594 = vpop.f32.mrf.mxu0
    %v595 = vadd.f32 %v134, %v594
    %v596 = vpop.f32.mrf.mxu0
    %v597 = vpop.f32.mrf.mxu0
    %v598 = vadd.f32 %v134, %v597
    %v599 = vpop.f32.mrf.mxu0
    %600 = vmatprep.mubr.bf16.mxu0 %v305
    %601 = vmatmul.mubr.bf16.gmra.mxu0 %v304
    %v602 = vpop.f32.mrf.mxu0
    %v603 = vadd.f32 %v134, %v602
    %v604 = vpop.f32.mrf.mxu0
    %v605 = vpop.f32.mrf.mxu0
    %v606 = vadd.f32 %v134, %v605
    %v607 = vpop.f32.mrf.mxu0
    %608 = vmatprep.mubr.bf16.mxu0 %v307
    %609 = vmatmul.mubr.bf16.gmra.mxu0 %v306
    %v610 = vpop.f32.mrf.mxu0
    %v611 = vadd.f32 %v134, %v610
    %v612 = vpop.f32.mrf.mxu0
    %v613 = vpop.f32.mrf.mxu0
    %v614 = vadd.f32 %v134, %v613
    %v615 = vpop.f32.mrf.mxu0
    %616 = vmatprep.mubr.bf16.mxu0 %v309
    %617 = vmatmul.mubr.bf16.gmra.mxu0 %v308
    %v618 = vpop.f32.mrf.mxu0
    %v619 = vadd.f32 %v134, %v618
    %v620 = vpop.f32.mrf.mxu0
    %v621 = vpop.f32.mrf.mxu0
    %v622 = vadd.f32 %v134, %v621
    %v623 = vpop.f32.mrf.mxu0
    %624 = vmatprep.mubr.bf16.mxu0 %v311
    %625 = vmatmul.mubr.bf16.gmra.mxu0 %v310
    %v626 = vpop.f32.mrf.mxu0
    %v627 = vadd.f32 %v134, %v626
    %v628 = vpop.f32.mrf.mxu0
    %v629 = vpop.f32.mrf.mxu0
    %v630 = vadd.f32 %v134, %v629
    %v631 = vpop.f32.mrf.mxu0
    %632 = vmatprep.mubr.bf16.mxu0 %v313
    %633 = vmatmul.mubr.bf16.gmra.mxu0 %v312
    %v634 = vpop.f32.mrf.mxu0
    %v635 = vadd.f32 %v134, %v634
    %v636 = vpop.f32.mrf.mxu0
    %v637 = vpop.f32.mrf.mxu0
    %v638 = vadd.f32 %v134, %v637
    %v639 = vpop.f32.mrf.mxu0
    %640 = vmatprep.mubr.bf16.mxu0 %v315
    %641 = vmatmul.mubr.bf16.gmra.mxu0 %v314
    %v642 = vpop.f32.mrf.mxu0
    %v643 = vadd.f32 %v134, %v642
    %v644 = vpop.f32.mrf.mxu0
    %v645 = vpop.f32.mrf.mxu0
    %v646 = vadd.f32 %v134, %v645
    %v647 = vpop.f32.mrf.mxu0
    %648 = vmatprep.mubr.bf16.mxu0 %v317
    %649 = vmatmul.mubr.bf16.gmra.mxu0 %v316
    %v650 = vpop.f32.mrf.mxu0
    %v651 = vadd.f32 %v134, %v650
    %v652 = vpop.f32.mrf.mxu0
    %v653 = vpop.f32.mrf.mxu0
    %v654 = vadd.f32 %v134, %v653
    %v655 = vpop.f32.mrf.mxu0
    %656 = vmatprep.mubr.bf16.mxu0 %v319
    %657 = vmatmul.mubr.bf16.gmra.mxu0 %v318
    %v658 = vpop.f32.mrf.mxu0
    %v659 = vadd.f32 %v134, %v658
    %v660 = vpop.f32.mrf.mxu0
    %v661 = vpop.f32.mrf.mxu0
    %v662 = vadd.f32 %v134, %v661
    %v663 = vpop.f32.mrf.mxu0
    %664 = vmatprep.mubr.bf16.mxu0 %v321
    %665 = vmatmul.mubr.bf16.gmra.mxu0 %v320
    %v666 = vpop.f32.mrf.mxu0
    %v667 = vadd.f32 %v134, %v666
    %v668 = vpop.f32.mrf.mxu0
    %v669 = vpop.f32.mrf.mxu0
    %v670 = vadd.f32 %v134, %v669
    %v671 = vpop.f32.mrf.mxu0
    %672 = vmatprep.mubr.bf16.mxu0 %v323
    %673 = vmatmul.mubr.bf16.gmra.mxu0 %v322
    %v674 = vpop.f32.mrf.mxu0
    %v675 = vadd.f32 %v134, %v674
    %v676 = vpop.f32.mrf.mxu0
    %v677 = vpop.f32.mrf.mxu0
    %v678 = vadd.f32 %v134, %v677
    %v679 = vpop.f32.mrf.mxu0
    %680 = vmatprep.mubr.bf16.mxu0 %v325
    %681 = vmatmul.mubr.bf16.gmra.mxu0 %v324
    %v682 = vpop.f32.mrf.mxu0
    %v683 = vadd.f32 %v134, %v682
    %v684 = vpop.f32.mrf.mxu0
    %v685 = vpop.f32.mrf.mxu0
    %v686 = vadd.f32 %v134, %v685
    %v687 = vpop.f32.mrf.mxu0
    %688 = vmatprep.mubr.bf16.mxu0 %v327
    %689 = vmatmul.mubr.bf16.gmra.mxu0 %v326
    %v690 = vpop.f32.mrf.mxu0
    %v691 = vadd.f32 %v134, %v690
    %v692 = vpop.f32.mrf.mxu0
    %v693 = vpop.f32.mrf.mxu0
    %v694 = vadd.f32 %v134, %v693
    %v695 = vpop.f32.mrf.mxu0
    %696 = vdwg.mxu0
    %vm697 = vcmp.gt.f32.partialorder %v507, 0.0
    %vm698 = vcmp.gt.f32.partialorder %v510, 0.0
    %vm699 = vcmp.gt.f32.partialorder %v515, 0.0
    %vm700 = vcmp.gt.f32.partialorder %v518, 0.0
    %vm701 = vcmp.gt.f32.partialorder %v523, 0.0
    %vm702 = vcmp.gt.f32.partialorder %v526, 0.0
    %vm703 = vcmp.gt.f32.partialorder %v531, 0.0
    %vm704 = vcmp.gt.f32.partialorder %v534, 0.0
    %vm705 = vcmp.gt.f32.partialorder %v539, 0.0
    %vm706 = vcmp.gt.f32.partialorder %v542, 0.0
    %vm707 = vcmp.gt.f32.partialorder %v547, 0.0
    %vm708 = vcmp.gt.f32.partialorder %v550, 0.0
    %vm709 = vcmp.gt.f32.partialorder %v555, 0.0
    %vm710 = vcmp.gt.f32.partialorder %v558, 0.0
    %vm711 = vcmp.gt.f32.partialorder %v563, 0.0
    %vm712 = vcmp.gt.f32.partialorder %v566, 0.0
    %vm713 = vcmp.gt.f32.partialorder %v571, 0.0
    %vm714 = vcmp.gt.f32.partialorder %v574, 0.0
    %vm715 = vcmp.gt.f32.partialorder %v579, 0.0
    %vm716 = vcmp.gt.f32.partialorder %v582, 0.0
    %vm717 = vcmp.gt.f32.partialorder %v587, 0.0
    %vm718 = vcmp.gt.f32.partialorder %v590, 0.0
    %vm719 = vcmp.gt.f32.partialorder %v595, 0.0
    %vm720 = vcmp.gt.f32.partialorder %v598, 0.0
    %vm721 = vcmp.gt.f32.partialorder %v603, 0.0
    %vm722 = vcmp.gt.f32.partialorder %v606, 0.0
    %vm723 = vcmp.gt.f32.partialorder %v611, 0.0
    %vm724 = vcmp.gt.f32.partialorder %v614, 0.0
    %vm725 = vcmp.gt.f32.partialorder %v619, 0.0
    %vm726 = vcmp.gt.f32.partialorder %v622, 0.0
    %vm727 = vcmp.gt.f32.partialorder %v627, 0.0
    %vm728 = vcmp.gt.f32.partialorder %v630, 0.0
    %vm729 = vcmp.gt.f32.partialorder %v635, 0.0
    %vm730 = vcmp.gt.f32.partialorder %v638, 0.0
    %vm731 = vcmp.gt.f32.partialorder %v643, 0.0
    %vm732 = vcmp.gt.f32.partialorder %v646, 0.0
    %vm733 = vcmp.gt.f32.partialorder %v651, 0.0
    %vm734 = vcmp.gt.f32.partialorder %v654, 0.0
    %vm735 = vcmp.gt.f32.partialorder %v659, 0.0
    %vm736 = vcmp.gt.f32.partialorder %v662, 0.0
    %vm737 = vcmp.gt.f32.partialorder %v667, 0.0
    %vm738 = vcmp.gt.f32.partialorder %v670, 0.0
    %vm739 = vcmp.gt.f32.partialorder %v675, 0.0
    %vm740 = vcmp.gt.f32.partialorder %v678, 0.0
    %vm741 = vcmp.gt.f32.partialorder %v683, 0.0
    %vm742 = vcmp.gt.f32.partialorder %v686, 0.0
    %vm743 = vcmp.gt.f32.partialorder %v691, 0.0
    %vm744 = vcmp.gt.f32.partialorder %v694, 0.0
    %v745 = vmul.f32 %v507, 0.01
    %v746 = vmul.f32 %v510, 0.01
    %v747 = vmul.f32 %v515, 0.01
    %v748 = vmul.f32 %v518, 0.01
    %v749 = vmul.f32 %v523, 0.01
    %v750 = vmul.f32 %v526, 0.01
    %v751 = vmul.f32 %v531, 0.01
    %v752 = vmul.f32 %v534, 0.01
    %v753 = vmul.f32 %v539, 0.01
    %v754 = vmul.f32 %v542, 0.01
    %v755 = vmul.f32 %v547, 0.01
    %v756 = vmul.f32 %v550, 0.01
    %v757 = vmul.f32 %v555, 0.01
    %v758 = vmul.f32 %v558, 0.01
    %v759 = vmul.f32 %v563, 0.01
    %v760 = vmul.f32 %v566, 0.01
    %v761 = vmul.f32 %v571, 0.01
    %v762 = vmul.f32 %v574, 0.01
    %v763 = vmul.f32 %v579, 0.01
    %v764 = vmul.f32 %v582, 0.01
    %v765 = vmul.f32 %v587, 0.01
    %v766 = vmul.f32 %v590, 0.01
    %v767 = vmul.f32 %v595, 0.01
    %v768 = vmul.f32 %v598, 0.01
    %v769 = vmul.f32 %v603, 0.01
    %v770 = vmul.f32 %v606, 0.01
    %v771 = vmul.f32 %v611, 0.01
    %v772 = vmul.f32 %v614, 0.01
    %v773 = vmul.f32 %v619, 0.01
    %v774 = vmul.f32 %v622, 0.01
    %v775 = vmul.f32 %v627, 0.01
    %v776 = vmul.f32 %v630, 0.01
    %v777 = vmul.f32 %v635, 0.01
    %v778 = vmul.f32 %v638, 0.01
    %v779 = vmul.f32 %v643, 0.01
    %v780 = vmul.f32 %v646, 0.01
    %v781 = vmul.f32 %v651, 0.01
    %v782 = vmul.f32 %v654, 0.01
    %v783 = vmul.f32 %v659, 0.01
    %v784 = vmul.f32 %v662, 0.01
    %v785 = vmul.f32 %v667, 0.01
    %v786 = vmul.f32 %v670, 0.01
    %v787 = vmul.f32 %v675, 0.01
    %v788 = vmul.f32 %v678, 0.01
    %v789 = vmul.f32 %v683, 0.01
    %v790 = vmul.f32 %v686, 0.01
    %v791 = vmul.f32 %v691, 0.01
    %v792 = vmul.f32 %v694, 0.01
    %v793 = vsel %vm697, %v507, %v745
    %v794 = vsel %vm698, %v510, %v746
    %v795 = vsel %vm699, %v515, %v747
    %v796 = vsel %vm700, %v518, %v748
    %v797 = vsel %vm701, %v523, %v749
    %v798 = vsel %vm702, %v526, %v750
    %v799 = vsel %vm703, %v531, %v751
    %v800 = vsel %vm704, %v534, %v752
    %v801 = vsel %vm705, %v539, %v753
    %v802 = vsel %vm706, %v542, %v754
    %v803 = vsel %vm707, %v547, %v755
    %v804 = vsel %vm708, %v550, %v756
    %v805 = vsel %vm709, %v555, %v757
    %v806 = vsel %vm710, %v558, %v758
    %v807 = vsel %vm711, %v563, %v759
    %v808 = vsel %vm712, %v566, %v760
    %v809 = vsel %vm713, %v571, %v761
    %v810 = vsel %vm714, %v574, %v762
    %v811 = vsel %vm715, %v579, %v763
    %v812 = vsel %vm716, %v582, %v764
    %v813 = vsel %vm717, %v587, %v765
    %v814 = vsel %vm718, %v590, %v766
    %v815 = vsel %vm719, %v595, %v767
    %v816 = vsel %vm720, %v598, %v768
    %v817 = vsel %vm721, %v603, %v769
    %v818 = vsel %vm722, %v606, %v770
    %v819 = vsel %vm723, %v611, %v771
    %v820 = vsel %vm724, %v614, %v772
    %v821 = vsel %vm725, %v619, %v773
    %v822 = vsel %vm726, %v622, %v774
    %v823 = vsel %vm727, %v627, %v775
    %v824 = vsel %vm728, %v630, %v776
    %v825 = vsel %vm729, %v635, %v777
    %v826 = vsel %vm730, %v638, %v778
    %v827 = vsel %vm731, %v643, %v779
    %v828 = vsel %vm732, %v646, %v780
    %v829 = vsel %vm733, %v651, %v781
    %v830 = vsel %vm734, %v654, %v782
    %v831 = vsel %vm735, %v659, %v783
    %v832 = vsel %vm736, %v662, %v784
    %v833 = vsel %vm737, %v667, %v785
    %v834 = vsel %vm738, %v670, %v786
    %v835 = vsel %vm739, %v675, %v787
    %v836 = vsel %vm740, %v678, %v788
    %v837 = vsel %vm741, %v683, %v789
    %v838 = vsel %vm742, %v686, %v790
    %v839 = vsel %vm743, %v691, %v791
    %v840 = vsel %vm744, %v694, %v792
    %v841 = vpack.c.bf16 %v794, %v793
    %v842 = vpack.c.bf16 %v796, %v795
    %v843 = vpack.c.bf16 %v798, %v797
    %v844 = vpack.c.bf16 %v800, %v799
    %v845 = vpack.c.bf16 %v802, %v801
    %v846 = vpack.c.bf16 %v804, %v803
    %v847 = vpack.c.bf16 %v806, %v805
    %v848 = vpack.c.bf16 %v808, %v807
    %v849 = vpack.c.bf16 %v810, %v809
    %v850 = vpack.c.bf16 %v812, %v811
    %v851 = vpack.c.bf16 %v814, %v813
    %v852 = vpack.c.bf16 %v816, %v815
    %v853 = vpack.c.bf16 %v818, %v817
    %v854 = vpack.c.bf16 %v820, %v819
    %v855 = vpack.c.bf16 %v822, %v821
    %v856 = vpack.c.bf16 %v824, %v823
    %v857 = vpack.c.bf16 %v826, %v825
    %v858 = vpack.c.bf16 %v828, %v827
    %v859 = vpack.c.bf16 %v830, %v829
    %v860 = vpack.c.bf16 %v832, %v831
    %v861 = vpack.c.bf16 %v834, %v833
    %v862 = vpack.c.bf16 %v836, %v835
    %v863 = vpack.c.bf16 %v838, %v837
    %v864 = vpack.c.bf16 %v840, %v839
    %v865 = vld [vmem:[%s3] sm:$0xf]
    %v866 = vld [vmem:[%s3 + $0x4] sm:$0xf]
    %v867 = vld [vmem:[%s3 + $0x8] sm:$0xf]
    %v868 = vld [vmem:[%s3 + $0xc] sm:$0xf]
    %s869 = scalar_lea.vmem %s3, 16
    %v870 = vld [vmem:[%s869] sm:$0xf]
    %v871 = vld [vmem:[%s869 + $0x4] sm:$0xf]
    %v872 = vld [vmem:[%s869 + $0x8] sm:$0xf]
    %v873 = vld [vmem:[%s869 + $0xc] sm:$0xf]
    %vm876 = vcmask 1043456
    %v877 = vrot.slane %v842, 4
    %v878 = vrot.slane %v843, 4
    %v879 = vsel %vm876, %v877, %v878
    %v884 = vunpack.c.l.b16 %v870
    %v885 = vunpack.c.l.b16 %v871
    %v886 = vunpack.c.l.b16 %v872
    %v887 = vunpack.c.l.b16 %v873
    %v888 = vpack.c.b16 %v885, %v884
    %v889 = vpack.c.b16 %v887, %v886
    %vm892 = vcmask 261120
    %v894 = vsel %vm892, %v879, 0
    %v897 = vsel %vm892, %v878, 0
    %899 = vmatprep.subr.bf16.mxu0 0
    %900 = vmatpush1.bf16.msra.mxu0 0
    %901 = vmatprep.subr.bf16.mxu0 0
    %902 = vmatpush1.bf16.msra.mxu0 0
    %903 = vmatprep.subr.bf16.mxu0 0
    %904 = vmatpush1.bf16.msra.mxu0 0
    %905 = vmatprep.subr.bf16.mxu0 0
    %906 = vmatpush1.bf16.msra.mxu0 0
    %907 = vmatprep.subr.bf16.mxu0 0
    %908 = vmatpush1.bf16.msra.mxu0 0
    %909 = vmatprep.subr.bf16.mxu0 0
    %910 = vmatpush1.bf16.msra.mxu0 0
    %911 = vmatprep.subr.bf16.mxu0 0
    %912 = vmatpush1.bf16.msra.mxu0 %v889
    %913 = vmatprep.subr.bf16.mxu0 0
    %914 = vmatpush1.bf16.msra.mxu0 %v888
    %915 = vmatprep.subr.bf16.mxu0 0
    %916 = vmatpush2.bf16.msra.mxu0 0
    %917 = vmatprep.subr.bf16.mxu0 0
    %918 = vmatpush2.bf16.msra.mxu0 0
    %919 = vmatprep.subr.bf16.mxu0 0
    %920 = vmatpush2.bf16.msra.mxu0 0
    %921 = vmatprep.subr.bf16.mxu0 0
    %922 = vmatpush2.bf16.msra.mxu0 0
    %923 = vmatprep.subr.bf16.mxu0 0
    %924 = vmatpush2.bf16.msra.mxu0 0
    %925 = vmatprep.subr.bf16.mxu0 0
    %926 = vmatpush2.bf16.msra.mxu0 0
    %927 = vmatprep.subr.bf16.mxu0 0
    %928 = vmatpush2.bf16.msra.mxu0 0
    %929 = vmatprep.subr.bf16.mxu0 0
    %930 = vmatpush2.bf16.msra.mxu0 0
    %931 = vmatprep.mubr.bf16.mxu0 0
    %932 = vmatmul.mubr.bf16.gmra.mxu0 %v894
    %v933 = vpop.f32.mrf.mxu0
    %v934 = vadd.f32 0.0, %v933
    %v935 = vpop.f32.mrf.mxu0
    %v936 = vpop.f32.mrf.mxu0
    %v937 = vadd.f32 0.0, %v936
    %v938 = vpop.f32.mrf.mxu0
    %939 = vmatprep.mubr.bf16.mxu0 0
    %940 = vmatmul.mubr.bf16.gmra.mxu0 %v897
    %v941 = vpop.f32.mrf.mxu0
    %v942 = vadd.f32 0.0, %v941
    %v943 = vpop.f32.mrf.mxu0
    %v944 = vpop.f32.mrf.mxu0
    %v945 = vpop.f32.mrf.mxu0
    %946 = vdwg.mxu0
    %v951 = vunpack.c.l.b16 %v865
    %v952 = vunpack.c.l.b16 %v866
    %v953 = vunpack.c.l.b16 %v867
    %v954 = vunpack.c.l.b16 %v868
    %v955 = vpack.c.b16 %v952, %v951
    %v956 = vpack.c.b16 %v954, %v953
    %v960 = vsel %vm892, %v841, 0
    %v963 = vsel %vm892, %v842, 0
    %965 = vmatprep.subr.bf16.mxu0 0
    %966 = vmatpush1.bf16.msra.mxu0 0
    %967 = vmatprep.subr.bf16.mxu0 0
    %968 = vmatpush1.bf16.msra.mxu0 0
    %969 = vmatprep.subr.bf16.mxu0 0
    %970 = vmatpush1.bf16.msra.mxu0 0
    %971 = vmatprep.subr.bf16.mxu0 0
    %972 = vmatpush1.bf16.msra.mxu0 0
    %973 = vmatprep.subr.bf16.mxu0 0
    %974 = vmatpush1.bf16.msra.mxu0 0
    %975 = vmatprep.subr.bf16.mxu0 0
    %976 = vmatpush1.bf16.msra.mxu0 0
    %977 = vmatprep.subr.bf16.mxu0 0
    %978 = vmatpush1.bf16.msra.mxu0 %v956
    %979 = vmatprep.subr.bf16.mxu0 0
    %980 = vmatpush1.bf16.msra.mxu0 %v955
    %981 = vmatprep.subr.bf16.mxu0 0
    %982 = vmatpush2.bf16.msra.mxu0 0
    %983 = vmatprep.subr.bf16.mxu0 0
    %984 = vmatpush2.bf16.msra.mxu0 0
    %985 = vmatprep.subr.bf16.mxu0 0
    %986 = vmatpush2.bf16.msra.mxu0 0
    %987 = vmatprep.subr.bf16.mxu0 0
    %988 = vmatpush2.bf16.msra.mxu0 0
    %989 = vmatprep.subr.bf16.mxu0 0
    %990 = vmatpush2.bf16.msra.mxu0 0
    %991 = vmatprep.subr.bf16.mxu0 0
    %992 = vmatpush2.bf16.msra.mxu0 0
    %993 = vmatprep.subr.bf16.mxu0 0
    %994 = vmatpush2.bf16.msra.mxu0 0
    %995 = vmatprep.subr.bf16.mxu0 0
    %996 = vmatpush2.bf16.msra.mxu0 0
    %997 = vmatprep.mubr.bf16.mxu0 0
    %998 = vmatmul.mubr.bf16.gmra.mxu0 %v960
    %v999 = vpop.f32.mrf.mxu0
    %v1000 = vadd.f32 %v934, %v999
    %v1001 = vpop.f32.mrf.mxu0
    %v1002 = vpop.f32.mrf.mxu0
    %v1003 = vadd.f32 %v937, %v1002
    %v1004 = vpop.f32.mrf.mxu0
    %1005 = vmatprep.mubr.bf16.mxu0 0
    %1006 = vmatmul.mubr.bf16.gmra.mxu0 %v963
    %v1007 = vpop.f32.mrf.mxu0
    %v1008 = vadd.f32 %v942, %v1007
    %v1009 = vpop.f32.mrf.mxu0
    %v1010 = vpop.f32.mrf.mxu0
    %v1011 = vpop.f32.mrf.mxu0
    %1012 = vdwg.mxu0
    %s1013 = scalar_lea.vmem %s3, 32
    %v1014 = vld [vmem:[%s1013] sm:$0xf]
    %v1015 = vld [vmem:[%s1013 + $0x4] sm:$0xf]
    %v1016 = vld [vmem:[%s1013 + $0x8] sm:$0xf]
    %v1017 = vld [vmem:[%s1013 + $0xc] sm:$0xf]
    %v1022 = vunpack.c.l.b16 %v1014
    %v1023 = vunpack.c.l.b16 %v1015
    %v1024 = vunpack.c.l.b16 %v1016
    %v1025 = vunpack.c.l.b16 %v1017
    %v1026 = vpack.c.b16 %v1023, %v1022
    %v1027 = vpack.c.b16 %v1025, %v1024
    %v1031 = vsel %vm892, %v844, 0
    %v1034 = vsel %vm892, %v845, 0
    %1036 = vmatprep.subr.bf16.mxu0 0
    %1037 = vmatpush1.bf16.msra.mxu0 0
    %1038 = vmatprep.subr.bf16.mxu0 0
    %1039 = vmatpush1.bf16.msra.mxu0 0
    %1040 = vmatprep.subr.bf16.mxu0 0
    %1041 = vmatpush1.bf16.msra.mxu0 0
    %1042 = vmatprep.subr.bf16.mxu0 0
    %1043 = vmatpush1.bf16.msra.mxu0 0
    %1044 = vmatprep.subr.bf16.mxu0 0
    %1045 = vmatpush1.bf16.msra.mxu0 0
    %1046 = vmatprep.subr.bf16.mxu0 0
    %1047 = vmatpush1.bf16.msra.mxu0 0
    %1048 = vmatprep.subr.bf16.mxu0 0
    %1049 = vmatpush1.bf16.msra.mxu0 %v1027
    %1050 = vmatprep.subr.bf16.mxu0 0
    %1051 = vmatpush1.bf16.msra.mxu0 %v1026
    %1052 = vmatprep.subr.bf16.mxu0 0
    %1053 = vmatpush2.bf16.msra.mxu0 0
    %1054 = vmatprep.subr.bf16.mxu0 0
    %1055 = vmatpush2.bf16.msra.mxu0 0
    %1056 = vmatprep.subr.bf16.mxu0 0
    %1057 = vmatpush2.bf16.msra.mxu0 0
    %1058 = vmatprep.subr.bf16.mxu0 0
    %1059 = vmatpush2.bf16.msra.mxu0 0
    %1060 = vmatprep.subr.bf16.mxu0 0
    %1061 = vmatpush2.bf16.msra.mxu0 0
    %1062 = vmatprep.subr.bf16.mxu0 0
    %1063 = vmatpush2.bf16.msra.mxu0 0
    %1064 = vmatprep.subr.bf16.mxu0 0
    %1065 = vmatpush2.bf16.msra.mxu0 0
    %1066 = vmatprep.subr.bf16.mxu0 0
    %1067 = vmatpush2.bf16.msra.mxu0 0
    %1068 = vmatprep.mubr.bf16.mxu0 0
    %1069 = vmatmul.mubr.bf16.gmra.mxu0 %v1031
    %v1070 = vpop.f32.mrf.mxu0
    %v1071 = vadd.f32 0.0, %v1070
    %v1072 = vpop.f32.mrf.mxu0
    %v1073 = vpop.f32.mrf.mxu0
    %v1074 = vadd.f32 0.0, %v1073
    %v1075 = vpop.f32.mrf.mxu0
    %1076 = vmatprep.mubr.bf16.mxu0 0
    %1077 = vmatmul.mubr.bf16.gmra.mxu0 %v1034
    %v1078 = vpop.f32.mrf.mxu0
    %v1079 = vadd.f32 0.0, %v1078
    %v1080 = vpop.f32.mrf.mxu0
    %v1081 = vpop.f32.mrf.mxu0
    %v1082 = vpop.f32.mrf.mxu0
    %1083 = vdwg.mxu0
    %v1084 = vadd.f32 %v1000, %v1071
    %v1085 = vadd.f32 %v1003, %v1074
    %v1086 = vadd.f32 %v1008, %v1079
    %s1087 = scalar_lea.vmem %s3, 48
    %v1088 = vld [vmem:[%s1087] sm:$0xf]
    %v1089 = vld [vmem:[%s1087 + $0x4] sm:$0xf]
    %v1090 = vld [vmem:[%s1087 + $0x8] sm:$0xf]
    %v1091 = vld [vmem:[%s1087 + $0xc] sm:$0xf]
    %v1094 = vrot.slane %v845, 4
    %v1095 = vrot.slane %v846, 4
    %v1096 = vsel %vm876, %v1094, %v1095
    %v1101 = vunpack.c.l.b16 %v1088
    %v1102 = vunpack.c.l.b16 %v1089
    %v1103 = vunpack.c.l.b16 %v1090
    %v1104 = vunpack.c.l.b16 %v1091
    %v1105 = vpack.c.b16 %v1102, %v1101
    %v1106 = vpack.c.b16 %v1104, %v1103
    %v1110 = vsel %vm892, %v1096, 0
    %v1113 = vsel %vm892, %v1095, 0
    %1115 = vmatprep.subr.bf16.mxu0 0
    %1116 = vmatpush1.bf16.msra.mxu0 0
    %1117 = vmatprep.subr.bf16.mxu0 0
    %1118 = vmatpush1.bf16.msra.mxu0 0
    %1119 = vmatprep.subr.bf16.mxu0 0
    %1120 = vmatpush1.bf16.msra.mxu0 0
    %1121 = vmatprep.subr.bf16.mxu0 0
    %1122 = vmatpush1.bf16.msra.mxu0 0
    %1123 = vmatprep.subr.bf16.mxu0 0
    %1124 = vmatpush1.bf16.msra.mxu0 0
    %1125 = vmatprep.subr.bf16.mxu0 0
    %1126 = vmatpush1.bf16.msra.mxu0 0
    %1127 = vmatprep.subr.bf16.mxu0 0
    %1128 = vmatpush1.bf16.msra.mxu0 %v1106
    %1129 = vmatprep.subr.bf16.mxu0 0
    %1130 = vmatpush1.bf16.msra.mxu0 %v1105
    %1131 = vmatprep.subr.bf16.mxu0 0
    %1132 = vmatpush2.bf16.msra.mxu0 0
    %1133 = vmatprep.subr.bf16.mxu0 0
    %1134 = vmatpush2.bf16.msra.mxu0 0
    %1135 = vmatprep.subr.bf16.mxu0 0
    %1136 = vmatpush2.bf16.msra.mxu0 0
    %1137 = vmatprep.subr.bf16.mxu0 0
    %1138 = vmatpush2.bf16.msra.mxu0 0
    %1139 = vmatprep.subr.bf16.mxu0 0
    %1140 = vmatpush2.bf16.msra.mxu0 0
    %1141 = vmatprep.subr.bf16.mxu0 0
    %1142 = vmatpush2.bf16.msra.mxu0 0
    %1143 = vmatprep.subr.bf16.mxu0 0
    %1144 = vmatpush2.bf16.msra.mxu0 0
    %1145 = vmatprep.subr.bf16.mxu0 0
    %1146 = vmatpush2.bf16.msra.mxu0 0
    %1147 = vmatprep.mubr.bf16.mxu0 0
    %1148 = vmatmul.mubr.bf16.gmra.mxu0 %v1110
    %v1149 = vpop.f32.mrf.mxu0
    %v1150 = vadd.f32 0.0, %v1149
    %v1151 = vpop.f32.mrf.mxu0
    %v1152 = vpop.f32.mrf.mxu0
    %v1153 = vadd.f32 0.0, %v1152
    %v1154 = vpop.f32.mrf.mxu0
    %1155 = vmatprep.mubr.bf16.mxu0 0
    %1156 = vmatmul.mubr.bf16.gmra.mxu0 %v1113
    %v1157 = vpop.f32.mrf.mxu0
    %v1158 = vadd.f32 0.0, %v1157
    %v1159 = vpop.f32.mrf.mxu0
    %v1160 = vpop.f32.mrf.mxu0
    %v1161 = vpop.f32.mrf.mxu0
    %1162 = vdwg.mxu0
    %v1163 = vadd.f32 %v1084, %v1150
    %v1164 = vadd.f32 %v1085, %v1153
    %v1165 = vadd.f32 %v1086, %v1158
    %s1166 = scalar_lea.vmem %s3, 64
    %v1167 = vld [vmem:[%s1166] sm:$0xf]
    %v1168 = vld [vmem:[%s1166 + $0x4] sm:$0xf]
    %v1169 = vld [vmem:[%s1166 + $0x8] sm:$0xf]
    %v1170 = vld [vmem:[%s1166 + $0xc] sm:$0xf]
    %v1175 = vunpack.c.l.b16 %v1167
    %v1176 = vunpack.c.l.b16 %v1168
    %v1177 = vunpack.c.l.b16 %v1169
    %v1178 = vunpack.c.l.b16 %v1170
    %v1179 = vpack.c.b16 %v1176, %v1175
    %v1180 = vpack.c.b16 %v1178, %v1177
    %v1184 = vsel %vm892, %v847, 0
    %v1187 = vsel %vm892, %v848, 0
    %1189 = vmatprep.subr.bf16.mxu0 0
    %1190 = vmatpush1.bf16.msra.mxu0 0
    %1191 = vmatprep.subr.bf16.mxu0 0
    %1192 = vmatpush1.bf16.msra.mxu0 0
    %1193 = vmatprep.subr.bf16.mxu0 0
    %1194 = vmatpush1.bf16.msra.mxu0 0
    %1195 = vmatprep.subr.bf16.mxu0 0
    %1196 = vmatpush1.bf16.msra.mxu0 0
    %1197 = vmatprep.subr.bf16.mxu0 0
    %1198 = vmatpush1.bf16.msra.mxu0 0
    %1199 = vmatprep.subr.bf16.mxu0 0
    %1200 = vmatpush1.bf16.msra.mxu0 0
    %1201 = vmatprep.subr.bf16.mxu0 0
    %1202 = vmatpush1.bf16.msra.mxu0 %v1180
    %1203 = vmatprep.subr.bf16.mxu0 0
    %1204 = vmatpush1.bf16.msra.mxu0 %v1179
    %1205 = vmatprep.subr.bf16.mxu0 0
    %1206 = vmatpush2.bf16.msra.mxu0 0
    %1207 = vmatprep.subr.bf16.mxu0 0
    %1208 = vmatpush2.bf16.msra.mxu0 0
    %1209 = vmatprep.subr.bf16.mxu0 0
    %1210 = vmatpush2.bf16.msra.mxu0 0
    %1211 = vmatprep.subr.bf16.mxu0 0
    %1212 = vmatpush2.bf16.msra.mxu0 0
    %1213 = vmatprep.subr.bf16.mxu0 0
    %1214 = vmatpush2.bf16.msra.mxu0 0
    %1215 = vmatprep.subr.bf16.mxu0 0
    %1216 = vmatpush2.bf16.msra.mxu0 0
    %1217 = vmatprep.subr.bf16.mxu0 0
    %1218 = vmatpush2.bf16.msra.mxu0 0
    %1219 = vmatprep.subr.bf16.mxu0 0
    %1220 = vmatpush2.bf16.msra.mxu0 0
    %1221 = vmatprep.mubr.bf16.mxu0 0
    %1222 = vmatmul.mubr.bf16.gmra.mxu0 %v1184
    %v1223 = vpop.f32.mrf.mxu0
    %v1224 = vadd.f32 0.0, %v1223
    %v1225 = vpop.f32.mrf.mxu0
    %v1226 = vpop.f32.mrf.mxu0
    %v1227 = vadd.f32 0.0, %v1226
    %v1228 = vpop.f32.mrf.mxu0
    %1229 = vmatprep.mubr.bf16.mxu0 0
    %1230 = vmatmul.mubr.bf16.gmra.mxu0 %v1187
    %v1231 = vpop.f32.mrf.mxu0
    %v1232 = vadd.f32 0.0, %v1231
    %v1233 = vpop.f32.mrf.mxu0
    %v1234 = vpop.f32.mrf.mxu0
    %v1235 = vpop.f32.mrf.mxu0
    %1236 = vdwg.mxu0
    %v1237 = vadd.f32 %v1163, %v1224
    %v1238 = vadd.f32 %v1164, %v1227
    %v1239 = vadd.f32 %v1165, %v1232
    %s1240 = scalar_lea.vmem %s3, 80
    %v1241 = vld [vmem:[%s1240] sm:$0xf]
    %v1242 = vld [vmem:[%s1240 + $0x4] sm:$0xf]
    %v1243 = vld [vmem:[%s1240 + $0x8] sm:$0xf]
    %v1244 = vld [vmem:[%s1240 + $0xc] sm:$0xf]
    %v1247 = vrot.slane %v848, 4
    %v1248 = vrot.slane %v849, 4
    %v1249 = vsel %vm876, %v1247, %v1248
    %v1254 = vunpack.c.l.b16 %v1241
    %v1255 = vunpack.c.l.b16 %v1242
    %v1256 = vunpack.c.l.b16 %v1243
    %v1257 = vunpack.c.l.b16 %v1244
    %v1258 = vpack.c.b16 %v1255, %v1254
    %v1259 = vpack.c.b16 %v1257, %v1256
    %v1263 = vsel %vm892, %v1249, 0
    %v1266 = vsel %vm892, %v1248, 0
    %1268 = vmatprep.subr.bf16.mxu0 0
    %1269 = vmatpush1.bf16.msra.mxu0 0
    %1270 = vmatprep.subr.bf16.mxu0 0
    %1271 = vmatpush1.bf16.msra.mxu0 0
    %1272 = vmatprep.subr.bf16.mxu0 0
    %1273 = vmatpush1.bf16.msra.mxu0 0
    %1274 = vmatprep.subr.bf16.mxu0 0
    %1275 = vmatpush1.bf16.msra.mxu0 0
    %1276 = vmatprep.subr.bf16.mxu0 0
    %1277 = vmatpush1.bf16.msra.mxu0 0
    %1278 = vmatprep.subr.bf16.mxu0 0
    %1279 = vmatpush1.bf16.msra.mxu0 0
    %1280 = vmatprep.subr.bf16.mxu0 0
    %1281 = vmatpush1.bf16.msra.mxu0 %v1259
    %1282 = vmatprep.subr.bf16.mxu0 0
    %1283 = vmatpush1.bf16.msra.mxu0 %v1258
    %1284 = vmatprep.subr.bf16.mxu0 0
    %1285 = vmatpush2.bf16.msra.mxu0 0
    %1286 = vmatprep.subr.bf16.mxu0 0
    %1287 = vmatpush2.bf16.msra.mxu0 0
    %1288 = vmatprep.subr.bf16.mxu0 0
    %1289 = vmatpush2.bf16.msra.mxu0 0
    %1290 = vmatprep.subr.bf16.mxu0 0
    %1291 = vmatpush2.bf16.msra.mxu0 0
    %1292 = vmatprep.subr.bf16.mxu0 0
    %1293 = vmatpush2.bf16.msra.mxu0 0
    %1294 = vmatprep.subr.bf16.mxu0 0
    %1295 = vmatpush2.bf16.msra.mxu0 0
    %1296 = vmatprep.subr.bf16.mxu0 0
    %1297 = vmatpush2.bf16.msra.mxu0 0
    %1298 = vmatprep.subr.bf16.mxu0 0
    %1299 = vmatpush2.bf16.msra.mxu0 0
    %1300 = vmatprep.mubr.bf16.mxu0 0
    %1301 = vmatmul.mubr.bf16.gmra.mxu0 %v1263
    %v1302 = vpop.f32.mrf.mxu0
    %v1303 = vadd.f32 0.0, %v1302
    %v1304 = vpop.f32.mrf.mxu0
    %v1305 = vpop.f32.mrf.mxu0
    %v1306 = vadd.f32 0.0, %v1305
    %v1307 = vpop.f32.mrf.mxu0
    %1308 = vmatprep.mubr.bf16.mxu0 0
    %1309 = vmatmul.mubr.bf16.gmra.mxu0 %v1266
    %v1310 = vpop.f32.mrf.mxu0
    %v1311 = vadd.f32 0.0, %v1310
    %v1312 = vpop.f32.mrf.mxu0
    %v1313 = vpop.f32.mrf.mxu0
    %v1314 = vpop.f32.mrf.mxu0
    %1315 = vdwg.mxu0
    %v1316 = vadd.f32 %v1237, %v1303
    %v1317 = vadd.f32 %v1238, %v1306
    %v1318 = vadd.f32 %v1239, %v1311
    %s1319 = scalar_lea.vmem %s3, 96
    %v1320 = vld [vmem:[%s1319] sm:$0xf]
    %v1321 = vld [vmem:[%s1319 + $0x4] sm:$0xf]
    %v1322 = vld [vmem:[%s1319 + $0x8] sm:$0xf]
    %v1323 = vld [vmem:[%s1319 + $0xc] sm:$0xf]
    %v1328 = vunpack.c.l.b16 %v1320
    %v1329 = vunpack.c.l.b16 %v1321
    %v1330 = vunpack.c.l.b16 %v1322
    %v1331 = vunpack.c.l.b16 %v1323
    %v1332 = vpack.c.b16 %v1329, %v1328
    %v1333 = vpack.c.b16 %v1331, %v1330
    %v1337 = vsel %vm892, %v850, 0
    %v1340 = vsel %vm892, %v851, 0
    %1342 = vmatprep.subr.bf16.mxu0 0
    %1343 = vmatpush1.bf16.msra.mxu0 0
    %1344 = vmatprep.subr.bf16.mxu0 0
    %1345 = vmatpush1.bf16.msra.mxu0 0
    %1346 = vmatprep.subr.bf16.mxu0 0
    %1347 = vmatpush1.bf16.msra.mxu0 0
    %1348 = vmatprep.subr.bf16.mxu0 0
    %1349 = vmatpush1.bf16.msra.mxu0 0
    %1350 = vmatprep.subr.bf16.mxu0 0
    %1351 = vmatpush1.bf16.msra.mxu0 0
    %1352 = vmatprep.subr.bf16.mxu0 0
    %1353 = vmatpush1.bf16.msra.mxu0 0
    %1354 = vmatprep.subr.bf16.mxu0 0
    %1355 = vmatpush1.bf16.msra.mxu0 %v1333
    %1356 = vmatprep.subr.bf16.mxu0 0
    %1357 = vmatpush1.bf16.msra.mxu0 %v1332
    %1358 = vmatprep.subr.bf16.mxu0 0
    %1359 = vmatpush2.bf16.msra.mxu0 0
    %1360 = vmatprep.subr.bf16.mxu0 0
    %1361 = vmatpush2.bf16.msra.mxu0 0
    %1362 = vmatprep.subr.bf16.mxu0 0
    %1363 = vmatpush2.bf16.msra.mxu0 0
    %1364 = vmatprep.subr.bf16.mxu0 0
    %1365 = vmatpush2.bf16.msra.mxu0 0
    %1366 = vmatprep.subr.bf16.mxu0 0
    %1367 = vmatpush2.bf16.msra.mxu0 0
    %1368 = vmatprep.subr.bf16.mxu0 0
    %1369 = vmatpush2.bf16.msra.mxu0 0
    %1370 = vmatprep.subr.bf16.mxu0 0
    %1371 = vmatpush2.bf16.msra.mxu0 0
    %1372 = vmatprep.subr.bf16.mxu0 0
    %1373 = vmatpush2.bf16.msra.mxu0 0
    %1374 = vmatprep.mubr.bf16.mxu0 0
    %1375 = vmatmul.mubr.bf16.gmra.mxu0 %v1337
    %v1376 = vpop.f32.mrf.mxu0
    %v1377 = vadd.f32 0.0, %v1376
    %v1378 = vpop.f32.mrf.mxu0
    %v1379 = vpop.f32.mrf.mxu0
    %v1380 = vadd.f32 0.0, %v1379
    %v1381 = vpop.f32.mrf.mxu0
    %1382 = vmatprep.mubr.bf16.mxu0 0
    %1383 = vmatmul.mubr.bf16.gmra.mxu0 %v1340
    %v1384 = vpop.f32.mrf.mxu0
    %v1385 = vadd.f32 0.0, %v1384
    %v1386 = vpop.f32.mrf.mxu0
    %v1387 = vpop.f32.mrf.mxu0
    %v1388 = vpop.f32.mrf.mxu0
    %1389 = vdwg.mxu0
    %v1390 = vadd.f32 %v1316, %v1377
    %v1391 = vadd.f32 %v1317, %v1380
    %v1392 = vadd.f32 %v1318, %v1385
    %s1393 = scalar_lea.vmem %s3, 112
    %v1394 = vld [vmem:[%s1393] sm:$0xf]
    %v1395 = vld [vmem:[%s1393 + $0x4] sm:$0xf]
    %v1396 = vld [vmem:[%s1393 + $0x8] sm:$0xf]
    %v1397 = vld [vmem:[%s1393 + $0xc] sm:$0xf]
    %v1400 = vrot.slane %v851, 4
    %v1401 = vrot.slane %v852, 4
    %v1402 = vsel %vm876, %v1400, %v1401
    %v1407 = vunpack.c.l.b16 %v1394
    %v1408 = vunpack.c.l.b16 %v1395
    %v1409 = vunpack.c.l.b16 %v1396
    %v1410 = vunpack.c.l.b16 %v1397
    %v1411 = vpack.c.b16 %v1408, %v1407
    %v1412 = vpack.c.b16 %v1410, %v1409
    %v1416 = vsel %vm892, %v1402, 0
    %v1419 = vsel %vm892, %v1401, 0
    %1421 = vmatprep.subr.bf16.mxu0 0
    %1422 = vmatpush1.bf16.msra.mxu0 0
    %1423 = vmatprep.subr.bf16.mxu0 0
    %1424 = vmatpush1.bf16.msra.mxu0 0
    %1425 = vmatprep.subr.bf16.mxu0 0
    %1426 = vmatpush1.bf16.msra.mxu0 0
    %1427 = vmatprep.subr.bf16.mxu0 0
    %1428 = vmatpush1.bf16.msra.mxu0 0
    %1429 = vmatprep.subr.bf16.mxu0 0
    %1430 = vmatpush1.bf16.msra.mxu0 0
    %1431 = vmatprep.subr.bf16.mxu0 0
    %1432 = vmatpush1.bf16.msra.mxu0 0
    %1433 = vmatprep.subr.bf16.mxu0 0
    %1434 = vmatpush1.bf16.msra.mxu0 %v1412
    %1435 = vmatprep.subr.bf16.mxu0 0
    %1436 = vmatpush1.bf16.msra.mxu0 %v1411
    %1437 = vmatprep.subr.bf16.mxu0 0
    %1438 = vmatpush2.bf16.msra.mxu0 0
    %1439 = vmatprep.subr.bf16.mxu0 0
    %1440 = vmatpush2.bf16.msra.mxu0 0
    %1441 = vmatprep.subr.bf16.mxu0 0
    %1442 = vmatpush2.bf16.msra.mxu0 0
    %1443 = vmatprep.subr.bf16.mxu0 0
    %1444 = vmatpush2.bf16.msra.mxu0 0
    %1445 = vmatprep.subr.bf16.mxu0 0
    %1446 = vmatpush2.bf16.msra.mxu0 0
    %1447 = vmatprep.subr.bf16.mxu0 0
    %1448 = vmatpush2.bf16.msra.mxu0 0
    %1449 = vmatprep.subr.bf16.mxu0 0
    %1450 = vmatpush2.bf16.msra.mxu0 0
    %1451 = vmatprep.subr.bf16.mxu0 0
    %1452 = vmatpush2.bf16.msra.mxu0 0
    %1453 = vmatprep.mubr.bf16.mxu0 0
    %1454 = vmatmul.mubr.bf16.gmra.mxu0 %v1416
    %v1455 = vpop.f32.mrf.mxu0
    %v1456 = vadd.f32 0.0, %v1455
    %v1457 = vpop.f32.mrf.mxu0
    %v1458 = vpop.f32.mrf.mxu0
    %v1459 = vadd.f32 0.0, %v1458
    %v1460 = vpop.f32.mrf.mxu0
    %1461 = vmatprep.mubr.bf16.mxu0 0
    %1462 = vmatmul.mubr.bf16.gmra.mxu0 %v1419
    %v1463 = vpop.f32.mrf.mxu0
    %v1464 = vadd.f32 0.0, %v1463
    %v1465 = vpop.f32.mrf.mxu0
    %v1466 = vpop.f32.mrf.mxu0
    %v1467 = vpop.f32.mrf.mxu0
    %1468 = vdwg.mxu0
    %v1469 = vadd.f32 %v1390, %v1456
    %v1470 = vadd.f32 %v1391, %v1459
    %v1471 = vadd.f32 %v1392, %v1464
    %s1472 = scalar_lea.vmem %s3, 128
    %v1473 = vld [vmem:[%s1472] sm:$0xf]
    %v1474 = vld [vmem:[%s1472 + $0x4] sm:$0xf]
    %v1475 = vld [vmem:[%s1472 + $0x8] sm:$0xf]
    %v1476 = vld [vmem:[%s1472 + $0xc] sm:$0xf]
    %v1481 = vunpack.c.l.b16 %v1473
    %v1482 = vunpack.c.l.b16 %v1474
    %v1483 = vunpack.c.l.b16 %v1475
    %v1484 = vunpack.c.l.b16 %v1476
    %v1485 = vpack.c.b16 %v1482, %v1481
    %v1486 = vpack.c.b16 %v1484, %v1483
    %v1490 = vsel %vm892, %v853, 0
    %v1493 = vsel %vm892, %v854, 0
    %1495 = vmatprep.subr.bf16.mxu0 0
    %1496 = vmatpush1.bf16.msra.mxu0 0
    %1497 = vmatprep.subr.bf16.mxu0 0
    %1498 = vmatpush1.bf16.msra.mxu0 0
    %1499 = vmatprep.subr.bf16.mxu0 0
    %1500 = vmatpush1.bf16.msra.mxu0 0
    %1501 = vmatprep.subr.bf16.mxu0 0
    %1502 = vmatpush1.bf16.msra.mxu0 0
    %1503 = vmatprep.subr.bf16.mxu0 0
    %1504 = vmatpush1.bf16.msra.mxu0 0
    %1505 = vmatprep.subr.bf16.mxu0 0
    %1506 = vmatpush1.bf16.msra.mxu0 0
    %1507 = vmatprep.subr.bf16.mxu0 0
    %1508 = vmatpush1.bf16.msra.mxu0 %v1486
    %1509 = vmatprep.subr.bf16.mxu0 0
    %1510 = vmatpush1.bf16.msra.mxu0 %v1485
    %1511 = vmatprep.subr.bf16.mxu0 0
    %1512 = vmatpush2.bf16.msra.mxu0 0
    %1513 = vmatprep.subr.bf16.mxu0 0
    %1514 = vmatpush2.bf16.msra.mxu0 0
    %1515 = vmatprep.subr.bf16.mxu0 0
    %1516 = vmatpush2.bf16.msra.mxu0 0
    %1517 = vmatprep.subr.bf16.mxu0 0
    %1518 = vmatpush2.bf16.msra.mxu0 0
    %1519 = vmatprep.subr.bf16.mxu0 0
    %1520 = vmatpush2.bf16.msra.mxu0 0
    %1521 = vmatprep.subr.bf16.mxu0 0
    %1522 = vmatpush2.bf16.msra.mxu0 0
    %1523 = vmatprep.subr.bf16.mxu0 0
    %1524 = vmatpush2.bf16.msra.mxu0 0
    %1525 = vmatprep.subr.bf16.mxu0 0
    %1526 = vmatpush2.bf16.msra.mxu0 0
    %1527 = vmatprep.mubr.bf16.mxu0 0
    %1528 = vmatmul.mubr.bf16.gmra.mxu0 %v1490
    %v1529 = vpop.f32.mrf.mxu0
    %v1530 = vadd.f32 0.0, %v1529
    %v1531 = vpop.f32.mrf.mxu0
    %v1532 = vpop.f32.mrf.mxu0
    %v1533 = vadd.f32 0.0, %v1532
    %v1534 = vpop.f32.mrf.mxu0
    %1535 = vmatprep.mubr.bf16.mxu0 0
    %1536 = vmatmul.mubr.bf16.gmra.mxu0 %v1493
    %v1537 = vpop.f32.mrf.mxu0
    %v1538 = vadd.f32 0.0, %v1537
    %v1539 = vpop.f32.mrf.mxu0
    %v1540 = vpop.f32.mrf.mxu0
    %v1541 = vpop.f32.mrf.mxu0
    %1542 = vdwg.mxu0
    %v1543 = vadd.f32 %v1469, %v1530
    %v1544 = vadd.f32 %v1470, %v1533
    %v1545 = vadd.f32 %v1471, %v1538
    %s1546 = scalar_lea.vmem %s3, 144
    %v1547 = vld [vmem:[%s1546] sm:$0xf]
    %v1548 = vld [vmem:[%s1546 + $0x4] sm:$0xf]
    %v1549 = vld [vmem:[%s1546 + $0x8] sm:$0xf]
    %v1550 = vld [vmem:[%s1546 + $0xc] sm:$0xf]
    %v1553 = vrot.slane %v854, 4
    %v1554 = vrot.slane %v855, 4
    %v1555 = vsel %vm876, %v1553, %v1554
    %v1560 = vunpack.c.l.b16 %v1547
    %v1561 = vunpack.c.l.b16 %v1548
    %v1562 = vunpack.c.l.b16 %v1549
    %v1563 = vunpack.c.l.b16 %v1550
    %v1564 = vpack.c.b16 %v1561, %v1560
    %v1565 = vpack.c.b16 %v1563, %v1562
    %v1569 = vsel %vm892, %v1555, 0
    %v1572 = vsel %vm892, %v1554, 0
    %1574 = vmatprep.subr.bf16.mxu0 0
    %1575 = vmatpush1.bf16.msra.mxu0 0
    %1576 = vmatprep.subr.bf16.mxu0 0
    %1577 = vmatpush1.bf16.msra.mxu0 0
    %1578 = vmatprep.subr.bf16.mxu0 0
    %1579 = vmatpush1.bf16.msra.mxu0 0
    %1580 = vmatprep.subr.bf16.mxu0 0
    %1581 = vmatpush1.bf16.msra.mxu0 0
    %1582 = vmatprep.subr.bf16.mxu0 0
    %1583 = vmatpush1.bf16.msra.mxu0 0
    %1584 = vmatprep.subr.bf16.mxu0 0
    %1585 = vmatpush1.bf16.msra.mxu0 0
    %1586 = vmatprep.subr.bf16.mxu0 0
    %1587 = vmatpush1.bf16.msra.mxu0 %v1565
    %1588 = vmatprep.subr.bf16.mxu0 0
    %1589 = vmatpush1.bf16.msra.mxu0 %v1564
    %1590 = vmatprep.subr.bf16.mxu0 0
    %1591 = vmatpush2.bf16.msra.mxu0 0
    %1592 = vmatprep.subr.bf16.mxu0 0
    %1593 = vmatpush2.bf16.msra.mxu0 0
    %1594 = vmatprep.subr.bf16.mxu0 0
    %1595 = vmatpush2.bf16.msra.mxu0 0
    %1596 = vmatprep.subr.bf16.mxu0 0
    %1597 = vmatpush2.bf16.msra.mxu0 0
    %1598 = vmatprep.subr.bf16.mxu0 0
    %1599 = vmatpush2.bf16.msra.mxu0 0
    %1600 = vmatprep.subr.bf16.mxu0 0
    %1601 = vmatpush2.bf16.msra.mxu0 0
    %1602 = vmatprep.subr.bf16.mxu0 0
    %1603 = vmatpush2.bf16.msra.mxu0 0
    %1604 = vmatprep.subr.bf16.mxu0 0
    %1605 = vmatpush2.bf16.msra.mxu0 0
    %1606 = vmatprep.mubr.bf16.mxu0 0
    %1607 = vmatmul.mubr.bf16.gmra.mxu0 %v1569
    %v1608 = vpop.f32.mrf.mxu0
    %v1609 = vadd.f32 0.0, %v1608
    %v1610 = vpop.f32.mrf.mxu0
    %v1611 = vpop.f32.mrf.mxu0
    %v1612 = vadd.f32 0.0, %v1611
    %v1613 = vpop.f32.mrf.mxu0
    %1614 = vmatprep.mubr.bf16.mxu0 0
    %1615 = vmatmul.mubr.bf16.gmra.mxu0 %v1572
    %v1616 = vpop.f32.mrf.mxu0
    %v1617 = vadd.f32 0.0, %v1616
    %v1618 = vpop.f32.mrf.mxu0
    %v1619 = vpop.f32.mrf.mxu0
    %v1620 = vpop.f32.mrf.mxu0
    %1621 = vdwg.mxu0
    %v1622 = vadd.f32 %v1543, %v1609
    %v1623 = vadd.f32 %v1544, %v1612
    %v1624 = vadd.f32 %v1545, %v1617
    %s1625 = scalar_lea.vmem %s3, 160
    %v1626 = vld [vmem:[%s1625] sm:$0xf]
    %v1627 = vld [vmem:[%s1625 + $0x4] sm:$0xf]
    %v1628 = vld [vmem:[%s1625 + $0x8] sm:$0xf]
    %v1629 = vld [vmem:[%s1625 + $0xc] sm:$0xf]
    %v1634 = vunpack.c.l.b16 %v1626
    %v1635 = vunpack.c.l.b16 %v1627
    %v1636 = vunpack.c.l.b16 %v1628
    %v1637 = vunpack.c.l.b16 %v1629
    %v1638 = vpack.c.b16 %v1635, %v1634
    %v1639 = vpack.c.b16 %v1637, %v1636
    %v1643 = vsel %vm892, %v856, 0
    %v1646 = vsel %vm892, %v857, 0
    %1648 = vmatprep.subr.bf16.mxu0 0
    %1649 = vmatpush1.bf16.msra.mxu0 0
    %1650 = vmatprep.subr.bf16.mxu0 0
    %1651 = vmatpush1.bf16.msra.mxu0 0
    %1652 = vmatprep.subr.bf16.mxu0 0
    %1653 = vmatpush1.bf16.msra.mxu0 0
    %1654 = vmatprep.subr.bf16.mxu0 0
    %1655 = vmatpush1.bf16.msra.mxu0 0
    %1656 = vmatprep.subr.bf16.mxu0 0
    %1657 = vmatpush1.bf16.msra.mxu0 0
    %1658 = vmatprep.subr.bf16.mxu0 0
    %1659 = vmatpush1.bf16.msra.mxu0 0
    %1660 = vmatprep.subr.bf16.mxu0 0
    %1661 = vmatpush1.bf16.msra.mxu0 %v1639
    %1662 = vmatprep.subr.bf16.mxu0 0
    %1663 = vmatpush1.bf16.msra.mxu0 %v1638
    %1664 = vmatprep.subr.bf16.mxu0 0
    %1665 = vmatpush2.bf16.msra.mxu0 0
    %1666 = vmatprep.subr.bf16.mxu0 0
    %1667 = vmatpush2.bf16.msra.mxu0 0
    %1668 = vmatprep.subr.bf16.mxu0 0
    %1669 = vmatpush2.bf16.msra.mxu0 0
    %1670 = vmatprep.subr.bf16.mxu0 0
    %1671 = vmatpush2.bf16.msra.mxu0 0
    %1672 = vmatprep.subr.bf16.mxu0 0
    %1673 = vmatpush2.bf16.msra.mxu0 0
    %1674 = vmatprep.subr.bf16.mxu0 0
    %1675 = vmatpush2.bf16.msra.mxu0 0
    %1676 = vmatprep.subr.bf16.mxu0 0
    %1677 = vmatpush2.bf16.msra.mxu0 0
    %1678 = vmatprep.subr.bf16.mxu0 0
    %1679 = vmatpush2.bf16.msra.mxu0 0
    %1680 = vmatprep.mubr.bf16.mxu0 0
    %1681 = vmatmul.mubr.bf16.gmra.mxu0 %v1643
    %v1682 = vpop.f32.mrf.mxu0
    %v1683 = vadd.f32 0.0, %v1682
    %v1684 = vpop.f32.mrf.mxu0
    %v1685 = vpop.f32.mrf.mxu0
    %v1686 = vadd.f32 0.0, %v1685
    %v1687 = vpop.f32.mrf.mxu0
    %1688 = vmatprep.mubr.bf16.mxu0 0
    %1689 = vmatmul.mubr.bf16.gmra.mxu0 %v1646
    %v1690 = vpop.f32.mrf.mxu0
    %v1691 = vadd.f32 0.0, %v1690
    %v1692 = vpop.f32.mrf.mxu0
    %v1693 = vpop.f32.mrf.mxu0
    %v1694 = vpop.f32.mrf.mxu0
    %1695 = vdwg.mxu0
    %v1696 = vadd.f32 %v1622, %v1683
    %v1697 = vadd.f32 %v1623, %v1686
    %v1698 = vadd.f32 %v1624, %v1691
    %s1699 = scalar_lea.vmem %s3, 176
    %v1700 = vld [vmem:[%s1699] sm:$0xf]
    %v1701 = vld [vmem:[%s1699 + $0x4] sm:$0xf]
    %v1702 = vld [vmem:[%s1699 + $0x8] sm:$0xf]
    %v1703 = vld [vmem:[%s1699 + $0xc] sm:$0xf]
    %v1706 = vrot.slane %v857, 4
    %v1707 = vrot.slane %v858, 4
    %v1708 = vsel %vm876, %v1706, %v1707
    %v1713 = vunpack.c.l.b16 %v1700
    %v1714 = vunpack.c.l.b16 %v1701
    %v1715 = vunpack.c.l.b16 %v1702
    %v1716 = vunpack.c.l.b16 %v1703
    %v1717 = vpack.c.b16 %v1714, %v1713
    %v1718 = vpack.c.b16 %v1716, %v1715
    %v1722 = vsel %vm892, %v1708, 0
    %v1725 = vsel %vm892, %v1707, 0
    %1727 = vmatprep.subr.bf16.mxu0 0
    %1728 = vmatpush1.bf16.msra.mxu0 0
    %1729 = vmatprep.subr.bf16.mxu0 0
    %1730 = vmatpush1.bf16.msra.mxu0 0
    %1731 = vmatprep.subr.bf16.mxu0 0
    %1732 = vmatpush1.bf16.msra.mxu0 0
    %1733 = vmatprep.subr.bf16.mxu0 0
    %1734 = vmatpush1.bf16.msra.mxu0 0
    %1735 = vmatprep.subr.bf16.mxu0 0
    %1736 = vmatpush1.bf16.msra.mxu0 0
    %1737 = vmatprep.subr.bf16.mxu0 0
    %1738 = vmatpush1.bf16.msra.mxu0 0
    %1739 = vmatprep.subr.bf16.mxu0 0
    %1740 = vmatpush1.bf16.msra.mxu0 %v1718
    %1741 = vmatprep.subr.bf16.mxu0 0
    %1742 = vmatpush1.bf16.msra.mxu0 %v1717
    %1743 = vmatprep.subr.bf16.mxu0 0
    %1744 = vmatpush2.bf16.msra.mxu0 0
    %1745 = vmatprep.subr.bf16.mxu0 0
    %1746 = vmatpush2.bf16.msra.mxu0 0
    %1747 = vmatprep.subr.bf16.mxu0 0
    %1748 = vmatpush2.bf16.msra.mxu0 0
    %1749 = vmatprep.subr.bf16.mxu0 0
    %1750 = vmatpush2.bf16.msra.mxu0 0
    %1751 = vmatprep.subr.bf16.mxu0 0
    %1752 = vmatpush2.bf16.msra.mxu0 0
    %1753 = vmatprep.subr.bf16.mxu0 0
    %1754 = vmatpush2.bf16.msra.mxu0 0
    %1755 = vmatprep.subr.bf16.mxu0 0
    %1756 = vmatpush2.bf16.msra.mxu0 0
    %1757 = vmatprep.subr.bf16.mxu0 0
    %1758 = vmatpush2.bf16.msra.mxu0 0
    %1759 = vmatprep.mubr.bf16.mxu0 0
    %1760 = vmatmul.mubr.bf16.gmra.mxu0 %v1722
    %v1761 = vpop.f32.mrf.mxu0
    %v1762 = vadd.f32 0.0, %v1761
    %v1763 = vpop.f32.mrf.mxu0
    %v1764 = vpop.f32.mrf.mxu0
    %v1765 = vadd.f32 0.0, %v1764
    %v1766 = vpop.f32.mrf.mxu0
    %1767 = vmatprep.mubr.bf16.mxu0 0
    %1768 = vmatmul.mubr.bf16.gmra.mxu0 %v1725
    %v1769 = vpop.f32.mrf.mxu0
    %v1770 = vadd.f32 0.0, %v1769
    %v1771 = vpop.f32.mrf.mxu0
    %v1772 = vpop.f32.mrf.mxu0
    %v1773 = vpop.f32.mrf.mxu0
    %1774 = vdwg.mxu0
    %v1775 = vadd.f32 %v1696, %v1762
    %v1776 = vadd.f32 %v1697, %v1765
    %v1777 = vadd.f32 %v1698, %v1770
    %s1778 = scalar_lea.vmem %s3, 192
    %v1779 = vld [vmem:[%s1778] sm:$0xf]
    %v1780 = vld [vmem:[%s1778 + $0x4] sm:$0xf]
    %v1781 = vld [vmem:[%s1778 + $0x8] sm:$0xf]
    %v1782 = vld [vmem:[%s1778 + $0xc] sm:$0xf]
    %v1787 = vunpack.c.l.b16 %v1779
    %v1788 = vunpack.c.l.b16 %v1780
    %v1789 = vunpack.c.l.b16 %v1781
    %v1790 = vunpack.c.l.b16 %v1782
    %v1791 = vpack.c.b16 %v1788, %v1787
    %v1792 = vpack.c.b16 %v1790, %v1789
    %v1796 = vsel %vm892, %v859, 0
    %v1799 = vsel %vm892, %v860, 0
    %1801 = vmatprep.subr.bf16.mxu0 0
    %1802 = vmatpush1.bf16.msra.mxu0 0
    %1803 = vmatprep.subr.bf16.mxu0 0
    %1804 = vmatpush1.bf16.msra.mxu0 0
    %1805 = vmatprep.subr.bf16.mxu0 0
    %1806 = vmatpush1.bf16.msra.mxu0 0
    %1807 = vmatprep.subr.bf16.mxu0 0
    %1808 = vmatpush1.bf16.msra.mxu0 0
    %1809 = vmatprep.subr.bf16.mxu0 0
    %1810 = vmatpush1.bf16.msra.mxu0 0
    %1811 = vmatprep.subr.bf16.mxu0 0
    %1812 = vmatpush1.bf16.msra.mxu0 0
    %1813 = vmatprep.subr.bf16.mxu0 0
    %1814 = vmatpush1.bf16.msra.mxu0 %v1792
    %1815 = vmatprep.subr.bf16.mxu0 0
    %1816 = vmatpush1.bf16.msra.mxu0 %v1791
    %1817 = vmatprep.subr.bf16.mxu0 0
    %1818 = vmatpush2.bf16.msra.mxu0 0
    %1819 = vmatprep.subr.bf16.mxu0 0
    %1820 = vmatpush2.bf16.msra.mxu0 0
    %1821 = vmatprep.subr.bf16.mxu0 0
    %1822 = vmatpush2.bf16.msra.mxu0 0
    %1823 = vmatprep.subr.bf16.mxu0 0
    %1824 = vmatpush2.bf16.msra.mxu0 0
    %1825 = vmatprep.subr.bf16.mxu0 0
    %1826 = vmatpush2.bf16.msra.mxu0 0
    %1827 = vmatprep.subr.bf16.mxu0 0
    %1828 = vmatpush2.bf16.msra.mxu0 0
    %1829 = vmatprep.subr.bf16.mxu0 0
    %1830 = vmatpush2.bf16.msra.mxu0 0
    %1831 = vmatprep.subr.bf16.mxu0 0
    %1832 = vmatpush2.bf16.msra.mxu0 0
    %1833 = vmatprep.mubr.bf16.mxu0 0
    %1834 = vmatmul.mubr.bf16.gmra.mxu0 %v1796
    %v1835 = vpop.f32.mrf.mxu0
    %v1836 = vadd.f32 0.0, %v1835
    %v1837 = vpop.f32.mrf.mxu0
    %v1838 = vpop.f32.mrf.mxu0
    %v1839 = vadd.f32 0.0, %v1838
    %v1840 = vpop.f32.mrf.mxu0
    %1841 = vmatprep.mubr.bf16.mxu0 0
    %1842 = vmatmul.mubr.bf16.gmra.mxu0 %v1799
    %v1843 = vpop.f32.mrf.mxu0
    %v1844 = vadd.f32 0.0, %v1843
    %v1845 = vpop.f32.mrf.mxu0
    %v1846 = vpop.f32.mrf.mxu0
    %v1847 = vpop.f32.mrf.mxu0
    %1848 = vdwg.mxu0
    %v1849 = vadd.f32 %v1775, %v1836
    %v1850 = vadd.f32 %v1776, %v1839
    %v1851 = vadd.f32 %v1777, %v1844
    %s1852 = scalar_lea.vmem %s3, 208
    %v1853 = vld [vmem:[%s1852] sm:$0xf]
    %v1854 = vld [vmem:[%s1852 + $0x4] sm:$0xf]
    %v1855 = vld [vmem:[%s1852 + $0x8] sm:$0xf]
    %v1856 = vld [vmem:[%s1852 + $0xc] sm:$0xf]
    %v1859 = vrot.slane %v860, 4
    %v1860 = vrot.slane %v861, 4
    %v1861 = vsel %vm876, %v1859, %v1860
    %v1866 = vunpack.c.l.b16 %v1853
    %v1867 = vunpack.c.l.b16 %v1854
    %v1868 = vunpack.c.l.b16 %v1855
    %v1869 = vunpack.c.l.b16 %v1856
    %v1870 = vpack.c.b16 %v1867, %v1866
    %v1871 = vpack.c.b16 %v1869, %v1868
    %v1875 = vsel %vm892, %v1861, 0
    %v1878 = vsel %vm892, %v1860, 0
    %1880 = vmatprep.subr.bf16.mxu0 0
    %1881 = vmatpush1.bf16.msra.mxu0 0
    %1882 = vmatprep.subr.bf16.mxu0 0
    %1883 = vmatpush1.bf16.msra.mxu0 0
    %1884 = vmatprep.subr.bf16.mxu0 0
    %1885 = vmatpush1.bf16.msra.mxu0 0
    %1886 = vmatprep.subr.bf16.mxu0 0
    %1887 = vmatpush1.bf16.msra.mxu0 0
    %1888 = vmatprep.subr.bf16.mxu0 0
    %1889 = vmatpush1.bf16.msra.mxu0 0
    %1890 = vmatprep.subr.bf16.mxu0 0
    %1891 = vmatpush1.bf16.msra.mxu0 0
    %1892 = vmatprep.subr.bf16.mxu0 0
    %1893 = vmatpush1.bf16.msra.mxu0 %v1871
    %1894 = vmatprep.subr.bf16.mxu0 0
    %1895 = vmatpush1.bf16.msra.mxu0 %v1870
    %1896 = vmatprep.subr.bf16.mxu0 0
    %1897 = vmatpush2.bf16.msra.mxu0 0
    %1898 = vmatprep.subr.bf16.mxu0 0
    %1899 = vmatpush2.bf16.msra.mxu0 0
    %1900 = vmatprep.subr.bf16.mxu0 0
    %1901 = vmatpush2.bf16.msra.mxu0 0
    %1902 = vmatprep.subr.bf16.mxu0 0
    %1903 = vmatpush2.bf16.msra.mxu0 0
    %1904 = vmatprep.subr.bf16.mxu0 0
    %1905 = vmatpush2.bf16.msra.mxu0 0
    %1906 = vmatprep.subr.bf16.mxu0 0
    %1907 = vmatpush2.bf16.msra.mxu0 0
    %1908 = vmatprep.subr.bf16.mxu0 0
    %1909 = vmatpush2.bf16.msra.mxu0 0
    %1910 = vmatprep.subr.bf16.mxu0 0
    %1911 = vmatpush2.bf16.msra.mxu0 0
    %1912 = vmatprep.mubr.bf16.mxu0 0
    %1913 = vmatmul.mubr.bf16.gmra.mxu0 %v1875
    %v1914 = vpop.f32.mrf.mxu0
    %v1915 = vadd.f32 0.0, %v1914
    %v1916 = vpop.f32.mrf.mxu0
    %v1917 = vpop.f32.mrf.mxu0
    %v1918 = vadd.f32 0.0, %v1917
    %v1919 = vpop.f32.mrf.mxu0
    %1920 = vmatprep.mubr.bf16.mxu0 0
    %1921 = vmatmul.mubr.bf16.gmra.mxu0 %v1878
    %v1922 = vpop.f32.mrf.mxu0
    %v1923 = vadd.f32 0.0, %v1922
    %v1924 = vpop.f32.mrf.mxu0
    %v1925 = vpop.f32.mrf.mxu0
    %v1926 = vpop.f32.mrf.mxu0
    %1927 = vdwg.mxu0
    %v1928 = vadd.f32 %v1849, %v1915
    %v1929 = vadd.f32 %v1850, %v1918
    %v1930 = vadd.f32 %v1851, %v1923
    %s1931 = scalar_lea.vmem %s3, 224
    %v1932 = vld [vmem:[%s1931] sm:$0xf]
    %v1933 = vld [vmem:[%s1931 + $0x4] sm:$0xf]
    %v1934 = vld [vmem:[%s1931 + $0x8] sm:$0xf]
    %v1935 = vld [vmem:[%s1931 + $0xc] sm:$0xf]
    %v1940 = vunpack.c.l.b16 %v1932
    %v1941 = vunpack.c.l.b16 %v1933
    %v1942 = vunpack.c.l.b16 %v1934
    %v1943 = vunpack.c.l.b16 %v1935
    %v1944 = vpack.c.b16 %v1941, %v1940
    %v1945 = vpack.c.b16 %v1943, %v1942
    %v1949 = vsel %vm892, %v862, 0
    %v1952 = vsel %vm892, %v863, 0
    %1954 = vmatprep.subr.bf16.mxu0 0
    %1955 = vmatpush1.bf16.msra.mxu0 0
    %1956 = vmatprep.subr.bf16.mxu0 0
    %1957 = vmatpush1.bf16.msra.mxu0 0
    %1958 = vmatprep.subr.bf16.mxu0 0
    %1959 = vmatpush1.bf16.msra.mxu0 0
    %1960 = vmatprep.subr.bf16.mxu0 0
    %1961 = vmatpush1.bf16.msra.mxu0 0
    %1962 = vmatprep.subr.bf16.mxu0 0
    %1963 = vmatpush1.bf16.msra.mxu0 0
    %1964 = vmatprep.subr.bf16.mxu0 0
    %1965 = vmatpush1.bf16.msra.mxu0 0
    %1966 = vmatprep.subr.bf16.mxu0 0
    %1967 = vmatpush1.bf16.msra.mxu0 %v1945
    %1968 = vmatprep.subr.bf16.mxu0 0
    %1969 = vmatpush1.bf16.msra.mxu0 %v1944
    %1970 = vmatprep.subr.bf16.mxu0 0
    %1971 = vmatpush2.bf16.msra.mxu0 0
    %1972 = vmatprep.subr.bf16.mxu0 0
    %1973 = vmatpush2.bf16.msra.mxu0 0
    %1974 = vmatprep.subr.bf16.mxu0 0
    %1975 = vmatpush2.bf16.msra.mxu0 0
    %1976 = vmatprep.subr.bf16.mxu0 0
    %1977 = vmatpush2.bf16.msra.mxu0 0
    %1978 = vmatprep.subr.bf16.mxu0 0
    %1979 = vmatpush2.bf16.msra.mxu0 0
    %1980 = vmatprep.subr.bf16.mxu0 0
    %1981 = vmatpush2.bf16.msra.mxu0 0
    %1982 = vmatprep.subr.bf16.mxu0 0
    %1983 = vmatpush2.bf16.msra.mxu0 0
    %1984 = vmatprep.subr.bf16.mxu0 0
    %1985 = vmatpush2.bf16.msra.mxu0 0
    %1986 = vmatprep.mubr.bf16.mxu0 0
    %1987 = vmatmul.mubr.bf16.gmra.mxu0 %v1949
    %v1988 = vpop.f32.mrf.mxu0
    %v1989 = vadd.f32 0.0, %v1988
    %v1990 = vpop.f32.mrf.mxu0
    %v1991 = vpop.f32.mrf.mxu0
    %v1992 = vadd.f32 0.0, %v1991
    %v1993 = vpop.f32.mrf.mxu0
    %1994 = vmatprep.mubr.bf16.mxu0 0
    %1995 = vmatmul.mubr.bf16.gmra.mxu0 %v1952
    %v1996 = vpop.f32.mrf.mxu0
    %v1997 = vadd.f32 0.0, %v1996
    %v1998 = vpop.f32.mrf.mxu0
    %v1999 = vpop.f32.mrf.mxu0
    %v2000 = vpop.f32.mrf.mxu0
    %2001 = vdwg.mxu0
    %v2002 = vadd.f32 %v1928, %v1989
    %v2003 = vadd.f32 %v1929, %v1992
    %v2004 = vadd.f32 %v1930, %v1997
    %s2005 = scalar_lea.vmem %s3, 240
    %v2006 = vld [vmem:[%s2005] sm:$0xf]
    %v2007 = vld [vmem:[%s2005 + $0x4] sm:$0xf]
    %v2008 = vld [vmem:[%s2005 + $0x8] sm:$0xf]
    %v2009 = vld [vmem:[%s2005 + $0xc] sm:$0xf]
    %v2012 = vrot.slane %v863, 4
    %v2013 = vrot.slane %v864, 4
    %v2014 = vsel %vm876, %v2012, %v2013
    %v2019 = vunpack.c.l.b16 %v2006
    %v2020 = vunpack.c.l.b16 %v2007
    %v2021 = vunpack.c.l.b16 %v2008
    %v2022 = vunpack.c.l.b16 %v2009
    %v2023 = vpack.c.b16 %v2020, %v2019
    %v2024 = vpack.c.b16 %v2022, %v2021
    %v2028 = vsel %vm892, %v2014, 0
    %v2031 = vsel %vm892, %v2013, 0
    %2033 = vmatprep.subr.bf16.mxu0 0
    %2034 = vmatpush1.bf16.msra.mxu0 0
    %2035 = vmatprep.subr.bf16.mxu0 0
    %2036 = vmatpush1.bf16.msra.mxu0 0
    %2037 = vmatprep.subr.bf16.mxu0 0
    %2038 = vmatpush1.bf16.msra.mxu0 0
    %2039 = vmatprep.subr.bf16.mxu0 0
    %2040 = vmatpush1.bf16.msra.mxu0 0
    %2041 = vmatprep.subr.bf16.mxu0 0
    %2042 = vmatpush1.bf16.msra.mxu0 0
    %2043 = vmatprep.subr.bf16.mxu0 0
    %2044 = vmatpush1.bf16.msra.mxu0 0
    %2045 = vmatprep.subr.bf16.mxu0 0
    %2046 = vmatpush1.bf16.msra.mxu0 %v2024
    %2047 = vmatprep.subr.bf16.mxu0 0
    %2048 = vmatpush1.bf16.msra.mxu0 %v2023
    %2049 = vmatprep.subr.bf16.mxu0 0
    %2050 = vmatpush2.bf16.msra.mxu0 0
    %2051 = vmatprep.subr.bf16.mxu0 0
    %2052 = vmatpush2.bf16.msra.mxu0 0
    %2053 = vmatprep.subr.bf16.mxu0 0
    %2054 = vmatpush2.bf16.msra.mxu0 0
    %2055 = vmatprep.subr.bf16.mxu0 0
    %2056 = vmatpush2.bf16.msra.mxu0 0
    %2057 = vmatprep.subr.bf16.mxu0 0
    %2058 = vmatpush2.bf16.msra.mxu0 0
    %2059 = vmatprep.subr.bf16.mxu0 0
    %2060 = vmatpush2.bf16.msra.mxu0 0
    %2061 = vmatprep.subr.bf16.mxu0 0
    %2062 = vmatpush2.bf16.msra.mxu0 0
    %2063 = vmatprep.subr.bf16.mxu0 0
    %2064 = vmatpush2.bf16.msra.mxu0 0
    %2065 = vmatprep.mubr.bf16.mxu0 0
    %2066 = vmatmul.mubr.bf16.gmra.mxu0 %v2028
    %v2067 = vpop.f32.mrf.mxu0
    %v2068 = vadd.f32 0.0, %v2067
    %v2069 = vpop.f32.mrf.mxu0
    %v2070 = vpop.f32.mrf.mxu0
    %v2071 = vadd.f32 0.0, %v2070
    %v2072 = vpop.f32.mrf.mxu0
    %2073 = vmatprep.mubr.bf16.mxu0 0
    %2074 = vmatmul.mubr.bf16.gmra.mxu0 %v2031
    %v2075 = vpop.f32.mrf.mxu0
    %v2076 = vadd.f32 0.0, %v2075
    %v2077 = vpop.f32.mrf.mxu0
    %v2078 = vpop.f32.mrf.mxu0
    %v2079 = vpop.f32.mrf.mxu0
    %2080 = vdwg.mxu0
    %v2081 = vadd.f32 %v2002, %v2068
    %v2082 = vadd.f32 %v2003, %v2071
    %v2083 = vadd.f32 %v2004, %v2076
    %v2084 = vld [vmem:[%s4] sm:$0x1]
    %v2086 = vlaneseq
    %v2087 = vshrl.u32 %v2086, 7
    %v2088 = vsub.s32 0, %v2087
    %v2089 = vrot.slane %v2084, %v2088
    %v2091 = vadd.f32 %v2081, %v2089
    %v2092 = vadd.f32 %v2082, %v2089
    %v2093 = vadd.f32 %v2083, %v2089
    %vm2094 = vcmp.gt.f32.partialorder %v2091, 0.0
    %vm2095 = vcmp.gt.f32.partialorder %v2092, 0.0
    %vm2096 = vcmp.gt.f32.partialorder %v2093, 0.0
    %v2097 = vmul.f32 %v2091, 0.01
    %v2098 = vmul.f32 %v2092, 0.01
    %v2099 = vmul.f32 %v2093, 0.01
    %v2100 = vsel %vm2094, %v2091, %v2097
    %v2101 = vsel %vm2095, %v2092, %v2098
    %v2102 = vsel %vm2096, %v2093, %v2099
    %v2103 = vpack.c.bf16 %v2101, %v2100
    %v2104 = vpack.c.bf16 %v2102, %v2102
    %v2105 = vld [vmem:[%s5] sm:$0xf]
    %v2106 = vld [vmem:[%s5 + $0x4] sm:$0xf]
    %v2107 = vld [vmem:[%s5 + $0x8] sm:$0xf]
    %v2108 = vld [vmem:[%s5 + $0xc] sm:$0xf]
    %v2109 = vld [vmem:[%s5 + $0x10] sm:$0xf]
    %v2110 = vld [vmem:[%s5 + $0x14] sm:$0xf]
    %v2111 = vld [vmem:[%s5 + $0x18] sm:$0xf]
    %v2112 = vld [vmem:[%s5 + $0x1c] sm:$0xf]
    %s2113 = scalar_lea.vmem %s5, 32
    %v2114 = vld [vmem:[%s2113] sm:$0xf]
    %v2115 = vld [vmem:[%s2113 + $0x4] sm:$0xf]
    %v2116 = vld [vmem:[%s2113 + $0x8] sm:$0xf]
    %v2117 = vld [vmem:[%s2113 + $0xc] sm:$0xf]
    %v2118 = vld [vmem:[%s2113 + $0x10] sm:$0xf]
    %v2119 = vld [vmem:[%s2113 + $0x14] sm:$0xf]
    %v2120 = vld [vmem:[%s2113 + $0x18] sm:$0xf]
    %v2121 = vld [vmem:[%s2113 + $0x1c] sm:$0xf]
    %v2123 = vrot.slane %v2103, 1
    %v2132 = vunpack.c.l.b16 %v2114
    %v2133 = vunpack.c.l.b16 %v2115
    %v2134 = vunpack.c.l.b16 %v2116
    %v2135 = vunpack.c.l.b16 %v2117
    %v2136 = vunpack.c.l.b16 %v2118
    %v2137 = vunpack.c.l.b16 %v2119
    %v2138 = vunpack.c.l.b16 %v2120
    %v2139 = vunpack.c.l.b16 %v2121
    %v2140 = vpack.c.b16 %v2133, %v2132
    %v2141 = vpack.c.b16 %v2135, %v2134
    %v2142 = vpack.c.b16 %v2137, %v2136
    %v2143 = vpack.c.b16 %v2139, %v2138
    %vm2148 = vcmask 523264
    %v2150 = vsel %vm2148, %v2123, 0
    %2152 = vmatprep.subr.bf16.mxu0 0
    %2153 = vmatpush1.bf16.msra.mxu0 0
    %2154 = vmatprep.subr.bf16.mxu0 0
    %2155 = vmatpush1.bf16.msra.mxu0 0
    %2156 = vmatprep.subr.bf16.mxu0 0
    %2157 = vmatpush1.bf16.msra.mxu0 0
    %2158 = vmatprep.subr.bf16.mxu0 0
    %2159 = vmatpush1.bf16.msra.mxu0 0
    %2160 = vmatprep.subr.bf16.mxu0 0
    %2161 = vmatpush1.bf16.msra.mxu0 %v2143
    %2162 = vmatprep.subr.bf16.mxu0 0
    %2163 = vmatpush1.bf16.msra.mxu0 %v2142
    %2164 = vmatprep.subr.bf16.mxu0 0
    %2165 = vmatpush1.bf16.msra.mxu0 %v2141
    %2166 = vmatprep.subr.bf16.mxu0 0
    %2167 = vmatpush1.bf16.msra.mxu0 %v2140
    %2168 = vmatprep.subr.bf16.mxu0 0
    %2169 = vmatpush2.bf16.msra.mxu0 0
    %2170 = vmatprep.subr.bf16.mxu0 0
    %2171 = vmatpush2.bf16.msra.mxu0 0
    %2172 = vmatprep.subr.bf16.mxu0 0
    %2173 = vmatpush2.bf16.msra.mxu0 0
    %2174 = vmatprep.subr.bf16.mxu0 0
    %2175 = vmatpush2.bf16.msra.mxu0 0
    %2176 = vmatprep.subr.bf16.mxu0 0
    %2177 = vmatpush2.bf16.msra.mxu0 0
    %2178 = vmatprep.subr.bf16.mxu0 0
    %2179 = vmatpush2.bf16.msra.mxu0 0
    %2180 = vmatprep.subr.bf16.mxu0 0
    %2181 = vmatpush2.bf16.msra.mxu0 0
    %2182 = vmatprep.subr.bf16.mxu0 0
    %2183 = vmatpush2.bf16.msra.mxu0 0
    %2184 = vmatprep.mubr.bf16.mxu0 0
    %2185 = vmatmul.mubr.bf16.gmra.mxu0 %v2150
    %v2186 = vpop.f32.mrf.mxu0
    %v2187 = vadd.f32 0.0, %v2186
    %v2188 = vpop.f32.mrf.mxu0
    %v2189 = vpop.f32.mrf.mxu0
    %v2190 = vpop.f32.mrf.mxu0
    %2191 = vdwg.mxu0
    %v2200 = vunpack.c.l.b16 %v2105
    %v2201 = vunpack.c.l.b16 %v2106
    %v2202 = vunpack.c.l.b16 %v2107
    %v2203 = vunpack.c.l.b16 %v2108
    %v2204 = vunpack.c.l.b16 %v2109
    %v2205 = vunpack.c.l.b16 %v2110
    %v2206 = vunpack.c.l.b16 %v2111
    %v2207 = vunpack.c.l.b16 %v2112
    %v2208 = vpack.c.b16 %v2201, %v2200
    %v2209 = vpack.c.b16 %v2203, %v2202
    %v2210 = vpack.c.b16 %v2205, %v2204
    %v2211 = vpack.c.b16 %v2207, %v2206
    %v2217 = vsel %vm2148, %v2103, 0
    %2219 = vmatprep.subr.bf16.mxu0 0
    %2220 = vmatpush1.bf16.msra.mxu0 0
    %2221 = vmatprep.subr.bf16.mxu0 0
    %2222 = vmatpush1.bf16.msra.mxu0 0
    %2223 = vmatprep.subr.bf16.mxu0 0
    %2224 = vmatpush1.bf16.msra.mxu0 0
    %2225 = vmatprep.subr.bf16.mxu0 0
    %2226 = vmatpush1.bf16.msra.mxu0 0
    %2227 = vmatprep.subr.bf16.mxu0 0
    %2228 = vmatpush1.bf16.msra.mxu0 %v2211
    %2229 = vmatprep.subr.bf16.mxu0 0
    %2230 = vmatpush1.bf16.msra.mxu0 %v2210
    %2231 = vmatprep.subr.bf16.mxu0 0
    %2232 = vmatpush1.bf16.msra.mxu0 %v2209
    %2233 = vmatprep.subr.bf16.mxu0 0
    %2234 = vmatpush1.bf16.msra.mxu0 %v2208
    %2235 = vmatprep.subr.bf16.mxu0 0
    %2236 = vmatpush2.bf16.msra.mxu0 0
    %2237 = vmatprep.subr.bf16.mxu0 0
    %2238 = vmatpush2.bf16.msra.mxu0 0
    %2239 = vmatprep.subr.bf16.mxu0 0
    %2240 = vmatpush2.bf16.msra.mxu0 0
    %2241 = vmatprep.subr.bf16.mxu0 0
    %2242 = vmatpush2.bf16.msra.mxu0 0
    %2243 = vmatprep.subr.bf16.mxu0 0
    %2244 = vmatpush2.bf16.msra.mxu0 0
    %2245 = vmatprep.subr.bf16.mxu0 0
    %2246 = vmatpush2.bf16.msra.mxu0 0
    %2247 = vmatprep.subr.bf16.mxu0 0
    %2248 = vmatpush2.bf16.msra.mxu0 0
    %2249 = vmatprep.subr.bf16.mxu0 0
    %2250 = vmatpush2.bf16.msra.mxu0 0
    %2251 = vmatprep.mubr.bf16.mxu0 0
    %2252 = vmatmul.mubr.bf16.gmra.mxu0 %v2217
    %v2253 = vpop.f32.mrf.mxu0
    %v2254 = vadd.f32 %v2187, %v2253
    %v2255 = vpop.f32.mrf.mxu0
    %v2256 = vpop.f32.mrf.mxu0
    %v2257 = vpop.f32.mrf.mxu0
    %2258 = vdwg.mxu0
    %s2259 = scalar_lea.vmem %s5, 64
    %v2260 = vld [vmem:[%s2259] sm:$0xf]
    %v2261 = vld [vmem:[%s2259 + $0x4] sm:$0xf]
    %v2262 = vld [vmem:[%s2259 + $0x8] sm:$0xf]
    %v2263 = vld [vmem:[%s2259 + $0xc] sm:$0xf]
    %v2264 = vld [vmem:[%s2259 + $0x10] sm:$0xf]
    %v2265 = vld [vmem:[%s2259 + $0x14] sm:$0xf]
    %v2266 = vld [vmem:[%s2259 + $0x18] sm:$0xf]
    %v2267 = vld [vmem:[%s2259 + $0x1c] sm:$0xf]
    %v2268 = vrot.slane %v2103, 2
    %v2277 = vunpack.c.l.b16 %v2260
    %v2278 = vunpack.c.l.b16 %v2261
    %v2279 = vunpack.c.l.b16 %v2262
    %v2280 = vunpack.c.l.b16 %v2263
    %v2281 = vunpack.c.l.b16 %v2264
    %v2282 = vunpack.c.l.b16 %v2265
    %v2283 = vunpack.c.l.b16 %v2266
    %v2284 = vunpack.c.l.b16 %v2267
    %v2285 = vpack.c.b16 %v2278, %v2277
    %v2286 = vpack.c.b16 %v2280, %v2279
    %v2287 = vpack.c.b16 %v2282, %v2281
    %v2288 = vpack.c.b16 %v2284, %v2283
    %v2294 = vsel %vm2148, %v2268, 0
    %2296 = vmatprep.subr.bf16.mxu0 0
    %2297 = vmatpush1.bf16.msra.mxu0 0
    %2298 = vmatprep.subr.bf16.mxu0 0
    %2299 = vmatpush1.bf16.msra.mxu0 0
    %2300 = vmatprep.subr.bf16.mxu0 0
    %2301 = vmatpush1.bf16.msra.mxu0 0
    %2302 = vmatprep.subr.bf16.mxu0 0
    %2303 = vmatpush1.bf16.msra.mxu0 0
    %2304 = vmatprep.subr.bf16.mxu0 0
    %2305 = vmatpush1.bf16.msra.mxu0 %v2288
    %2306 = vmatprep.subr.bf16.mxu0 0
    %2307 = vmatpush1.bf16.msra.mxu0 %v2287
    %2308 = vmatprep.subr.bf16.mxu0 0
    %2309 = vmatpush1.bf16.msra.mxu0 %v2286
    %2310 = vmatprep.subr.bf16.mxu0 0
    %2311 = vmatpush1.bf16.msra.mxu0 %v2285
    %2312 = vmatprep.subr.bf16.mxu0 0
    %2313 = vmatpush2.bf16.msra.mxu0 0
    %2314 = vmatprep.subr.bf16.mxu0 0
    %2315 = vmatpush2.bf16.msra.mxu0 0
    %2316 = vmatprep.subr.bf16.mxu0 0
    %2317 = vmatpush2.bf16.msra.mxu0 0
    %2318 = vmatprep.subr.bf16.mxu0 0
    %2319 = vmatpush2.bf16.msra.mxu0 0
    %2320 = vmatprep.subr.bf16.mxu0 0
    %2321 = vmatpush2.bf16.msra.mxu0 0
    %2322 = vmatprep.subr.bf16.mxu0 0
    %2323 = vmatpush2.bf16.msra.mxu0 0
    %2324 = vmatprep.subr.bf16.mxu0 0
    %2325 = vmatpush2.bf16.msra.mxu0 0
    %2326 = vmatprep.subr.bf16.mxu0 0
    %2327 = vmatpush2.bf16.msra.mxu0 0
    %2328 = vmatprep.mubr.bf16.mxu0 0
    %2329 = vmatmul.mubr.bf16.gmra.mxu0 %v2294
    %v2330 = vpop.f32.mrf.mxu0
    %v2331 = vadd.f32 0.0, %v2330
    %v2332 = vpop.f32.mrf.mxu0
    %v2333 = vpop.f32.mrf.mxu0
    %v2334 = vpop.f32.mrf.mxu0
    %2335 = vdwg.mxu0
    %v2336 = vadd.f32 %v2254, %v2331
    %s2337 = scalar_lea.vmem %s5, 96
    %v2338 = vld [vmem:[%s2337] sm:$0xf]
    %v2339 = vld [vmem:[%s2337 + $0x4] sm:$0xf]
    %v2340 = vld [vmem:[%s2337 + $0x8] sm:$0xf]
    %v2341 = vld [vmem:[%s2337 + $0xc] sm:$0xf]
    %v2342 = vld [vmem:[%s2337 + $0x10] sm:$0xf]
    %v2343 = vld [vmem:[%s2337 + $0x14] sm:$0xf]
    %v2344 = vld [vmem:[%s2337 + $0x18] sm:$0xf]
    %v2345 = vld [vmem:[%s2337 + $0x1c] sm:$0xf]
    %v2346 = vrot.slane %v2103, 3
    %v2355 = vunpack.c.l.b16 %v2338
    %v2356 = vunpack.c.l.b16 %v2339
    %v2357 = vunpack.c.l.b16 %v2340
    %v2358 = vunpack.c.l.b16 %v2341
    %v2359 = vunpack.c.l.b16 %v2342
    %v2360 = vunpack.c.l.b16 %v2343
    %v2361 = vunpack.c.l.b16 %v2344
    %v2362 = vunpack.c.l.b16 %v2345
    %v2363 = vpack.c.b16 %v2356, %v2355
    %v2364 = vpack.c.b16 %v2358, %v2357
    %v2365 = vpack.c.b16 %v2360, %v2359
    %v2366 = vpack.c.b16 %v2362, %v2361
    %v2372 = vsel %vm2148, %v2346, 0
    %2374 = vmatprep.subr.bf16.mxu0 0
    %2375 = vmatpush1.bf16.msra.mxu0 0
    %2376 = vmatprep.subr.bf16.mxu0 0
    %2377 = vmatpush1.bf16.msra.mxu0 0
    %2378 = vmatprep.subr.bf16.mxu0 0
    %2379 = vmatpush1.bf16.msra.mxu0 0
    %2380 = vmatprep.subr.bf16.mxu0 0
    %2381 = vmatpush1.bf16.msra.mxu0 0
    %2382 = vmatprep.subr.bf16.mxu0 0
    %2383 = vmatpush1.bf16.msra.mxu0 %v2366
    %2384 = vmatprep.subr.bf16.mxu0 0
    %2385 = vmatpush1.bf16.msra.mxu0 %v2365
    %2386 = vmatprep.subr.bf16.mxu0 0
    %2387 = vmatpush1.bf16.msra.mxu0 %v2364
    %2388 = vmatprep.subr.bf16.mxu0 0
    %2389 = vmatpush1.bf16.msra.mxu0 %v2363
    %2390 = vmatprep.subr.bf16.mxu0 0
    %2391 = vmatpush2.bf16.msra.mxu0 0
    %2392 = vmatprep.subr.bf16.mxu0 0
    %2393 = vmatpush2.bf16.msra.mxu0 0
    %2394 = vmatprep.subr.bf16.mxu0 0
    %2395 = vmatpush2.bf16.msra.mxu0 0
    %2396 = vmatprep.subr.bf16.mxu0 0
    %2397 = vmatpush2.bf16.msra.mxu0 0
    %2398 = vmatprep.subr.bf16.mxu0 0
    %2399 = vmatpush2.bf16.msra.mxu0 0
    %2400 = vmatprep.subr.bf16.mxu0 0
    %2401 = vmatpush2.bf16.msra.mxu0 0
    %2402 = vmatprep.subr.bf16.mxu0 0
    %2403 = vmatpush2.bf16.msra.mxu0 0
    %2404 = vmatprep.subr.bf16.mxu0 0
    %2405 = vmatpush2.bf16.msra.mxu0 0
    %2406 = vmatprep.mubr.bf16.mxu0 0
    %2407 = vmatmul.mubr.bf16.gmra.mxu0 %v2372
    %v2408 = vpop.f32.mrf.mxu0
    %v2409 = vadd.f32 0.0, %v2408
    %v2410 = vpop.f32.mrf.mxu0
    %v2411 = vpop.f32.mrf.mxu0
    %v2412 = vpop.f32.mrf.mxu0
    %2413 = vdwg.mxu0
    %v2414 = vadd.f32 %v2336, %v2409
    %s2415 = scalar_lea.vmem %s5, 128
    %v2416 = vld [vmem:[%s2415] sm:$0xf]
    %v2417 = vld [vmem:[%s2415 + $0x4] sm:$0xf]
    %v2418 = vld [vmem:[%s2415 + $0x8] sm:$0xf]
    %v2419 = vld [vmem:[%s2415 + $0xc] sm:$0xf]
    %v2420 = vld [vmem:[%s2415 + $0x10] sm:$0xf]
    %v2421 = vld [vmem:[%s2415 + $0x14] sm:$0xf]
    %v2422 = vld [vmem:[%s2415 + $0x18] sm:$0xf]
    %v2423 = vld [vmem:[%s2415 + $0x1c] sm:$0xf]
    %v2424 = vrot.slane %v2103, 4
    %v2433 = vunpack.c.l.b16 %v2416
    %v2434 = vunpack.c.l.b16 %v2417
    %v2435 = vunpack.c.l.b16 %v2418
    %v2436 = vunpack.c.l.b16 %v2419
    %v2437 = vunpack.c.l.b16 %v2420
    %v2438 = vunpack.c.l.b16 %v2421
    %v2439 = vunpack.c.l.b16 %v2422
    %v2440 = vunpack.c.l.b16 %v2423
    %v2441 = vpack.c.b16 %v2434, %v2433
    %v2442 = vpack.c.b16 %v2436, %v2435
    %v2443 = vpack.c.b16 %v2438, %v2437
    %v2444 = vpack.c.b16 %v2440, %v2439
    %v2450 = vsel %vm2148, %v2424, 0
    %2452 = vmatprep.subr.bf16.mxu0 0
    %2453 = vmatpush1.bf16.msra.mxu0 0
    %2454 = vmatprep.subr.bf16.mxu0 0
    %2455 = vmatpush1.bf16.msra.mxu0 0
    %2456 = vmatprep.subr.bf16.mxu0 0
    %2457 = vmatpush1.bf16.msra.mxu0 0
    %2458 = vmatprep.subr.bf16.mxu0 0
    %2459 = vmatpush1.bf16.msra.mxu0 0
    %2460 = vmatprep.subr.bf16.mxu0 0
    %2461 = vmatpush1.bf16.msra.mxu0 %v2444
    %2462 = vmatprep.subr.bf16.mxu0 0
    %2463 = vmatpush1.bf16.msra.mxu0 %v2443
    %2464 = vmatprep.subr.bf16.mxu0 0
    %2465 = vmatpush1.bf16.msra.mxu0 %v2442
    %2466 = vmatprep.subr.bf16.mxu0 0
    %2467 = vmatpush1.bf16.msra.mxu0 %v2441
    %2468 = vmatprep.subr.bf16.mxu0 0
    %2469 = vmatpush2.bf16.msra.mxu0 0
    %2470 = vmatprep.subr.bf16.mxu0 0
    %2471 = vmatpush2.bf16.msra.mxu0 0
    %2472 = vmatprep.subr.bf16.mxu0 0
    %2473 = vmatpush2.bf16.msra.mxu0 0
    %2474 = vmatprep.subr.bf16.mxu0 0
    %2475 = vmatpush2.bf16.msra.mxu0 0
    %2476 = vmatprep.subr.bf16.mxu0 0
    %2477 = vmatpush2.bf16.msra.mxu0 0
    %2478 = vmatprep.subr.bf16.mxu0 0
    %2479 = vmatpush2.bf16.msra.mxu0 0
    %2480 = vmatprep.subr.bf16.mxu0 0
    %2481 = vmatpush2.bf16.msra.mxu0 0
    %2482 = vmatprep.subr.bf16.mxu0 0
    %2483 = vmatpush2.bf16.msra.mxu0 0
    %2484 = vmatprep.mubr.bf16.mxu0 0
    %2485 = vmatmul.mubr.bf16.gmra.mxu0 %v2450
    %v2486 = vpop.f32.mrf.mxu0
    %v2487 = vadd.f32 0.0, %v2486
    %v2488 = vpop.f32.mrf.mxu0
    %v2489 = vpop.f32.mrf.mxu0
    %v2490 = vpop.f32.mrf.mxu0
    %2491 = vdwg.mxu0
    %v2492 = vadd.f32 %v2414, %v2487
    %s2493 = scalar_lea.vmem %s5, 160
    %v2494 = vld [vmem:[%s2493] sm:$0xf]
    %v2495 = vld [vmem:[%s2493 + $0x4] sm:$0xf]
    %v2496 = vld [vmem:[%s2493 + $0x8] sm:$0xf]
    %v2497 = vld [vmem:[%s2493 + $0xc] sm:$0xf]
    %v2498 = vld [vmem:[%s2493 + $0x10] sm:$0xf]
    %v2499 = vld [vmem:[%s2493 + $0x14] sm:$0xf]
    %v2500 = vld [vmem:[%s2493 + $0x18] sm:$0xf]
    %v2501 = vld [vmem:[%s2493 + $0x1c] sm:$0xf]
    %v2502 = vrot.slane %v2103, 5
    %v2511 = vunpack.c.l.b16 %v2494
    %v2512 = vunpack.c.l.b16 %v2495
    %v2513 = vunpack.c.l.b16 %v2496
    %v2514 = vunpack.c.l.b16 %v2497
    %v2515 = vunpack.c.l.b16 %v2498
    %v2516 = vunpack.c.l.b16 %v2499
    %v2517 = vunpack.c.l.b16 %v2500
    %v2518 = vunpack.c.l.b16 %v2501
    %v2519 = vpack.c.b16 %v2512, %v2511
    %v2520 = vpack.c.b16 %v2514, %v2513
    %v2521 = vpack.c.b16 %v2516, %v2515
    %v2522 = vpack.c.b16 %v2518, %v2517
    %v2528 = vsel %vm2148, %v2502, 0
    %2530 = vmatprep.subr.bf16.mxu0 0
    %2531 = vmatpush1.bf16.msra.mxu0 0
    %2532 = vmatprep.subr.bf16.mxu0 0
    %2533 = vmatpush1.bf16.msra.mxu0 0
    %2534 = vmatprep.subr.bf16.mxu0 0
    %2535 = vmatpush1.bf16.msra.mxu0 0
    %2536 = vmatprep.subr.bf16.mxu0 0
    %2537 = vmatpush1.bf16.msra.mxu0 0
    %2538 = vmatprep.subr.bf16.mxu0 0
    %2539 = vmatpush1.bf16.msra.mxu0 %v2522
    %2540 = vmatprep.subr.bf16.mxu0 0
    %2541 = vmatpush1.bf16.msra.mxu0 %v2521
    %2542 = vmatprep.subr.bf16.mxu0 0
    %2543 = vmatpush1.bf16.msra.mxu0 %v2520
    %2544 = vmatprep.subr.bf16.mxu0 0
    %2545 = vmatpush1.bf16.msra.mxu0 %v2519
    %2546 = vmatprep.subr.bf16.mxu0 0
    %2547 = vmatpush2.bf16.msra.mxu0 0
    %2548 = vmatprep.subr.bf16.mxu0 0
    %2549 = vmatpush2.bf16.msra.mxu0 0
    %2550 = vmatprep.subr.bf16.mxu0 0
    %2551 = vmatpush2.bf16.msra.mxu0 0
    %2552 = vmatprep.subr.bf16.mxu0 0
    %2553 = vmatpush2.bf16.msra.mxu0 0
    %2554 = vmatprep.subr.bf16.mxu0 0
    %2555 = vmatpush2.bf16.msra.mxu0 0
    %2556 = vmatprep.subr.bf16.mxu0 0
    %2557 = vmatpush2.bf16.msra.mxu0 0
    %2558 = vmatprep.subr.bf16.mxu0 0
    %2559 = vmatpush2.bf16.msra.mxu0 0
    %2560 = vmatprep.subr.bf16.mxu0 0
    %2561 = vmatpush2.bf16.msra.mxu0 0
    %2562 = vmatprep.mubr.bf16.mxu0 0
    %2563 = vmatmul.mubr.bf16.gmra.mxu0 %v2528
    %v2564 = vpop.f32.mrf.mxu0
    %v2565 = vadd.f32 0.0, %v2564
    %v2566 = vpop.f32.mrf.mxu0
    %v2567 = vpop.f32.mrf.mxu0
    %v2568 = vpop.f32.mrf.mxu0
    %2569 = vdwg.mxu0
    %v2570 = vadd.f32 %v2492, %v2565
    %s2571 = scalar_lea.vmem %s5, 192
    %v2572 = vld [vmem:[%s2571] sm:$0xf]
    %v2573 = vld [vmem:[%s2571 + $0x4] sm:$0xf]
    %v2574 = vld [vmem:[%s2571 + $0x8] sm:$0xf]
    %v2575 = vld [vmem:[%s2571 + $0xc] sm:$0xf]
    %v2576 = vld [vmem:[%s2571 + $0x10] sm:$0xf]
    %v2577 = vld [vmem:[%s2571 + $0x14] sm:$0xf]
    %v2578 = vld [vmem:[%s2571 + $0x18] sm:$0xf]
    %v2579 = vld [vmem:[%s2571 + $0x1c] sm:$0xf]
    %v2580 = vrot.slane %v2103, 6
    %v2589 = vunpack.c.l.b16 %v2572
    %v2590 = vunpack.c.l.b16 %v2573
    %v2591 = vunpack.c.l.b16 %v2574
    %v2592 = vunpack.c.l.b16 %v2575
    %v2593 = vunpack.c.l.b16 %v2576
    %v2594 = vunpack.c.l.b16 %v2577
    %v2595 = vunpack.c.l.b16 %v2578
    %v2596 = vunpack.c.l.b16 %v2579
    %v2597 = vpack.c.b16 %v2590, %v2589
    %v2598 = vpack.c.b16 %v2592, %v2591
    %v2599 = vpack.c.b16 %v2594, %v2593
    %v2600 = vpack.c.b16 %v2596, %v2595
    %v2606 = vsel %vm2148, %v2580, 0
    %2608 = vmatprep.subr.bf16.mxu0 0
    %2609 = vmatpush1.bf16.msra.mxu0 0
    %2610 = vmatprep.subr.bf16.mxu0 0
    %2611 = vmatpush1.bf16.msra.mxu0 0
    %2612 = vmatprep.subr.bf16.mxu0 0
    %2613 = vmatpush1.bf16.msra.mxu0 0
    %2614 = vmatprep.subr.bf16.mxu0 0
    %2615 = vmatpush1.bf16.msra.mxu0 0
    %2616 = vmatprep.subr.bf16.mxu0 0
    %2617 = vmatpush1.bf16.msra.mxu0 %v2600
    %2618 = vmatprep.subr.bf16.mxu0 0
    %2619 = vmatpush1.bf16.msra.mxu0 %v2599
    %2620 = vmatprep.subr.bf16.mxu0 0
    %2621 = vmatpush1.bf16.msra.mxu0 %v2598
    %2622 = vmatprep.subr.bf16.mxu0 0
    %2623 = vmatpush1.bf16.msra.mxu0 %v2597
    %2624 = vmatprep.subr.bf16.mxu0 0
    %2625 = vmatpush2.bf16.msra.mxu0 0
    %2626 = vmatprep.subr.bf16.mxu0 0
    %2627 = vmatpush2.bf16.msra.mxu0 0
    %2628 = vmatprep.subr.bf16.mxu0 0
    %2629 = vmatpush2.bf16.msra.mxu0 0
    %2630 = vmatprep.subr.bf16.mxu0 0
    %2631 = vmatpush2.bf16.msra.mxu0 0
    %2632 = vmatprep.subr.bf16.mxu0 0
    %2633 = vmatpush2.bf16.msra.mxu0 0
    %2634 = vmatprep.subr.bf16.mxu0 0
    %2635 = vmatpush2.bf16.msra.mxu0 0
    %2636 = vmatprep.subr.bf16.mxu0 0
    %2637 = vmatpush2.bf16.msra.mxu0 0
    %2638 = vmatprep.subr.bf16.mxu0 0
    %2639 = vmatpush2.bf16.msra.mxu0 0
    %2640 = vmatprep.mubr.bf16.mxu0 0
    %2641 = vmatmul.mubr.bf16.gmra.mxu0 %v2606
    %v2642 = vpop.f32.mrf.mxu0
    %v2643 = vadd.f32 0.0, %v2642
    %v2644 = vpop.f32.mrf.mxu0
    %v2645 = vpop.f32.mrf.mxu0
    %v2646 = vpop.f32.mrf.mxu0
    %2647 = vdwg.mxu0
    %v2648 = vadd.f32 %v2570, %v2643
    %s2649 = scalar_lea.vmem %s5, 224
    %v2650 = vld [vmem:[%s2649] sm:$0xf]
    %v2651 = vld [vmem:[%s2649 + $0x4] sm:$0xf]
    %v2652 = vld [vmem:[%s2649 + $0x8] sm:$0xf]
    %v2653 = vld [vmem:[%s2649 + $0xc] sm:$0xf]
    %v2654 = vld [vmem:[%s2649 + $0x10] sm:$0xf]
    %v2655 = vld [vmem:[%s2649 + $0x14] sm:$0xf]
    %v2656 = vld [vmem:[%s2649 + $0x18] sm:$0xf]
    %v2657 = vld [vmem:[%s2649 + $0x1c] sm:$0xf]
    %v2658 = vrot.slane %v2103, 7
    %v2667 = vunpack.c.l.b16 %v2650
    %v2668 = vunpack.c.l.b16 %v2651
    %v2669 = vunpack.c.l.b16 %v2652
    %v2670 = vunpack.c.l.b16 %v2653
    %v2671 = vunpack.c.l.b16 %v2654
    %v2672 = vunpack.c.l.b16 %v2655
    %v2673 = vunpack.c.l.b16 %v2656
    %v2674 = vunpack.c.l.b16 %v2657
    %v2675 = vpack.c.b16 %v2668, %v2667
    %v2676 = vpack.c.b16 %v2670, %v2669
    %v2677 = vpack.c.b16 %v2672, %v2671
    %v2678 = vpack.c.b16 %v2674, %v2673
    %v2684 = vsel %vm2148, %v2658, 0
    %2686 = vmatprep.subr.bf16.mxu0 0
    %2687 = vmatpush1.bf16.msra.mxu0 0
    %2688 = vmatprep.subr.bf16.mxu0 0
    %2689 = vmatpush1.bf16.msra.mxu0 0
    %2690 = vmatprep.subr.bf16.mxu0 0
    %2691 = vmatpush1.bf16.msra.mxu0 0
    %2692 = vmatprep.subr.bf16.mxu0 0
    %2693 = vmatpush1.bf16.msra.mxu0 0
    %2694 = vmatprep.subr.bf16.mxu0 0
    %2695 = vmatpush1.bf16.msra.mxu0 %v2678
    %2696 = vmatprep.subr.bf16.mxu0 0
    %2697 = vmatpush1.bf16.msra.mxu0 %v2677
    %2698 = vmatprep.subr.bf16.mxu0 0
    %2699 = vmatpush1.bf16.msra.mxu0 %v2676
    %2700 = vmatprep.subr.bf16.mxu0 0
    %2701 = vmatpush1.bf16.msra.mxu0 %v2675
    %2702 = vmatprep.subr.bf16.mxu0 0
    %2703 = vmatpush2.bf16.msra.mxu0 0
    %2704 = vmatprep.subr.bf16.mxu0 0
    %2705 = vmatpush2.bf16.msra.mxu0 0
    %2706 = vmatprep.subr.bf16.mxu0 0
    %2707 = vmatpush2.bf16.msra.mxu0 0
    %2708 = vmatprep.subr.bf16.mxu0 0
    %2709 = vmatpush2.bf16.msra.mxu0 0
    %2710 = vmatprep.subr.bf16.mxu0 0
    %2711 = vmatpush2.bf16.msra.mxu0 0
    %2712 = vmatprep.subr.bf16.mxu0 0
    %2713 = vmatpush2.bf16.msra.mxu0 0
    %2714 = vmatprep.subr.bf16.mxu0 0
    %2715 = vmatpush2.bf16.msra.mxu0 0
    %2716 = vmatprep.subr.bf16.mxu0 0
    %2717 = vmatpush2.bf16.msra.mxu0 0
    %2718 = vmatprep.mubr.bf16.mxu0 0
    %2719 = vmatmul.mubr.bf16.gmra.mxu0 %v2684
    %v2720 = vpop.f32.mrf.mxu0
    %v2721 = vadd.f32 0.0, %v2720
    %v2722 = vpop.f32.mrf.mxu0
    %v2723 = vpop.f32.mrf.mxu0
    %v2724 = vpop.f32.mrf.mxu0
    %2725 = vdwg.mxu0
    %v2726 = vadd.f32 %v2648, %v2721
    %s2727 = scalar_lea.vmem %s5, 256
    %v2728 = vld [vmem:[%s2727] sm:$0xf]
    %v2729 = vld [vmem:[%s2727 + $0x4] sm:$0xf]
    %v2730 = vld [vmem:[%s2727 + $0x8] sm:$0xf]
    %v2731 = vld [vmem:[%s2727 + $0xc] sm:$0xf]
    %v2732 = vld [vmem:[%s2727 + $0x10] sm:$0xf]
    %v2733 = vld [vmem:[%s2727 + $0x14] sm:$0xf]
    %v2734 = vld [vmem:[%s2727 + $0x18] sm:$0xf]
    %v2735 = vld [vmem:[%s2727 + $0x1c] sm:$0xf]
    %v2744 = vunpack.c.l.b16 %v2728
    %v2745 = vunpack.c.l.b16 %v2729
    %v2746 = vunpack.c.l.b16 %v2730
    %v2747 = vunpack.c.l.b16 %v2731
    %v2748 = vunpack.c.l.b16 %v2732
    %v2749 = vunpack.c.l.b16 %v2733
    %v2750 = vunpack.c.l.b16 %v2734
    %v2751 = vunpack.c.l.b16 %v2735
    %v2752 = vpack.c.b16 %v2745, %v2744
    %v2753 = vpack.c.b16 %v2747, %v2746
    %v2754 = vpack.c.b16 %v2749, %v2748
    %v2755 = vpack.c.b16 %v2751, %v2750
    %v2761 = vsel %vm2148, %v2104, 0
    %2763 = vmatprep.subr.bf16.mxu0 0
    %2764 = vmatpush1.bf16.msra.mxu0 0
    %2765 = vmatprep.subr.bf16.mxu0 0
    %2766 = vmatpush1.bf16.msra.mxu0 0
    %2767 = vmatprep.subr.bf16.mxu0 0
    %2768 = vmatpush1.bf16.msra.mxu0 0
    %2769 = vmatprep.subr.bf16.mxu0 0
    %2770 = vmatpush1.bf16.msra.mxu0 0
    %2771 = vmatprep.subr.bf16.mxu0 0
    %2772 = vmatpush1.bf16.msra.mxu0 %v2755
    %2773 = vmatprep.subr.bf16.mxu0 0
    %2774 = vmatpush1.bf16.msra.mxu0 %v2754
    %2775 = vmatprep.subr.bf16.mxu0 0
    %2776 = vmatpush1.bf16.msra.mxu0 %v2753
    %2777 = vmatprep.subr.bf16.mxu0 0
    %2778 = vmatpush1.bf16.msra.mxu0 %v2752
    %2779 = vmatprep.subr.bf16.mxu0 0
    %2780 = vmatpush2.bf16.msra.mxu0 0
    %2781 = vmatprep.subr.bf16.mxu0 0
    %2782 = vmatpush2.bf16.msra.mxu0 0
    %2783 = vmatprep.subr.bf16.mxu0 0
    %2784 = vmatpush2.bf16.msra.mxu0 0
    %2785 = vmatprep.subr.bf16.mxu0 0
    %2786 = vmatpush2.bf16.msra.mxu0 0
    %2787 = vmatprep.subr.bf16.mxu0 0
    %2788 = vmatpush2.bf16.msra.mxu0 0
    %2789 = vmatprep.subr.bf16.mxu0 0
    %2790 = vmatpush2.bf16.msra.mxu0 0
    %2791 = vmatprep.subr.bf16.mxu0 0
    %2792 = vmatpush2.bf16.msra.mxu0 0
    %2793 = vmatprep.subr.bf16.mxu0 0
    %2794 = vmatpush2.bf16.msra.mxu0 0
    %2795 = vmatprep.mubr.bf16.mxu0 0
    %2796 = vmatmul.mubr.bf16.gmra.mxu0 %v2761
    %v2797 = vpop.f32.mrf.mxu0
    %v2798 = vadd.f32 0.0, %v2797
    %v2799 = vpop.f32.mrf.mxu0
    %v2800 = vpop.f32.mrf.mxu0
    %v2801 = vpop.f32.mrf.mxu0
    %2802 = vdwg.mxu0
    %v2803 = vadd.f32 %v2726, %v2798
    %v2804 = vld [vmem:[%s6] sm:$0x1]
    %v2806 = vlaneseq
    %v2807 = vshrl.u32 %v2806, 7
    %v2808 = vsub.s32 0, %v2807
    %v2809 = vrot.slane %v2804, %v2808
    %v2811 = vadd.f32 %v2803, %v2809
    %vm2812 = vcmp.gt.f32.partialorder %v2811, 0.0
    %v2813 = vmul.f32 %v2811, 0.01
    %v2814 = vsel %vm2812, %v2811, %v2813
    %v2815 = vpack.c.bf16 %v2814, %v2814
    %v2816 = vld [vmem:[%s7] sm:$0xff]
    %v2817 = vld [vmem:[%s7 + $0x8] sm:$0xff]
    %v2818 = vld [vmem:[%s7 + $0x10] sm:$0xff]
    %v2819 = vld [vmem:[%s7 + $0x18] sm:$0xff]
    %v2820 = vld [vmem:[%s7 + $0x20] sm:$0xff]
    %v2821 = vld [vmem:[%s7 + $0x28] sm:$0xff]
    %v2822 = vld [vmem:[%s7 + $0x30] sm:$0xff]
    %v2823 = vld [vmem:[%s7 + $0x38] sm:$0xff]
    %v2824 = vld [vmem:[%s7 + $0x40] sm:$0xff]
    %v2825 = vld [vmem:[%s7 + $0x48] sm:$0xff]
    %v2826 = vld [vmem:[%s7 + $0x50] sm:$0xff]
    %v2827 = vld [vmem:[%s7 + $0x58] sm:$0xff]
    %v2828 = vld [vmem:[%s7 + $0x60] sm:$0xff]
    %v2829 = vld [vmem:[%s7 + $0x68] sm:$0xff]
    %v2830 = vld [vmem:[%s7 + $0x70] sm:$0xff]
    %v2831 = vld [vmem:[%s7 + $0x78] sm:$0xff]
    %v2832 = vld [vmem:[%s7 + $0x80] sm:$0xff]
    %v2833 = vld [vmem:[%s7 + $0x88] sm:$0xff]
    %v2834 = vld [vmem:[%s7 + $0x90] sm:$0xff]
    %v2835 = vld [vmem:[%s7 + $0x98] sm:$0xff]
    %v2836 = vld [vmem:[%s7 + $0xa0] sm:$0xff]
    %v2837 = vld [vmem:[%s7 + $0xa8] sm:$0xff]
    %v2838 = vld [vmem:[%s7 + $0xb0] sm:$0xff]
    %v2839 = vld [vmem:[%s7 + $0xb8] sm:$0xff]
    %v2840 = vld [vmem:[%s7 + $0xc0] sm:$0xff]
    %v2841 = vld [vmem:[%s7 + $0xc8] sm:$0xff]
    %v2842 = vld [vmem:[%s7 + $0xd0] sm:$0xff]
    %v2843 = vld [vmem:[%s7 + $0xd8] sm:$0xff]
    %v2844 = vld [vmem:[%s7 + $0xe0] sm:$0xff]
    %v2845 = vld [vmem:[%s7 + $0xe8] sm:$0xff]
    %v2846 = vld [vmem:[%s7 + $0xf0] sm:$0xff]
    %v2847 = vld [vmem:[%s7 + $0xf8] sm:$0xff]
    %v2848 = vld [vmem:[%s8] sm:$0xff]
    %v2850 = vlaneseq
    %v2851 = vshrl.u32 %v2850, 7
    %v2852 = vsub.s32 0, %v2851
    %v2853 = vrot.slane %v2848, %v2852
    %v2854 = vlaneseq
    %v2855 = vshrl.u32 %v2854, 7
    %v2856 = vsub.s32 1, %v2855
    %v2857 = vrot.slane %v2848, %v2856
    %v2858 = vlaneseq
    %v2859 = vshrl.u32 %v2858, 7
    %v2860 = vsub.s32 2, %v2859
    %v2861 = vrot.slane %v2848, %v2860
    %v2862 = vlaneseq
    %v2863 = vshrl.u32 %v2862, 7
    %v2864 = vsub.s32 3, %v2863
    %v2865 = vrot.slane %v2848, %v2864
    %v2866 = vlaneseq
    %v2867 = vshrl.u32 %v2866, 7
    %v2868 = vsub.s32 4, %v2867
    %v2869 = vrot.slane %v2848, %v2868
    %v2870 = vlaneseq
    %v2871 = vshrl.u32 %v2870, 7
    %v2872 = vsub.s32 5, %v2871
    %v2873 = vrot.slane %v2848, %v2872
    %v2874 = vlaneseq
    %v2875 = vshrl.u32 %v2874, 7
    %v2876 = vsub.s32 6, %v2875
    %v2877 = vrot.slane %v2848, %v2876
    %v2878 = vlaneseq
    %v2879 = vshrl.u32 %v2878, 7
    %v2880 = vsub.s32 7, %v2879
    %v2881 = vrot.slane %v2848, %v2880
    %v2922 = vunpack.c.l.b16 %v2816
    %v2923 = vunpack.c.h.b16 %v2816
    %v2924 = vunpack.c.l.b16 %v2817
    %v2925 = vunpack.c.h.b16 %v2817
    %v2926 = vunpack.c.l.b16 %v2818
    %v2927 = vunpack.c.h.b16 %v2818
    %v2928 = vunpack.c.l.b16 %v2819
    %v2929 = vunpack.c.h.b16 %v2819
    %v2930 = vunpack.c.l.b16 %v2820
    %v2931 = vunpack.c.h.b16 %v2820
    %v2932 = vunpack.c.l.b16 %v2821
    %v2933 = vunpack.c.h.b16 %v2821
    %v2934 = vunpack.c.l.b16 %v2822
    %v2935 = vunpack.c.h.b16 %v2822
    %v2936 = vunpack.c.l.b16 %v2823
    %v2937 = vunpack.c.h.b16 %v2823
    %v2938 = vunpack.c.l.b16 %v2824
    %v2939 = vunpack.c.h.b16 %v2824
    %v2940 = vunpack.c.l.b16 %v2825
    %v2941 = vunpack.c.h.b16 %v2825
    %v2942 = vunpack.c.l.b16 %v2826
    %v2943 = vunpack.c.h.b16 %v2826
    %v2944 = vunpack.c.l.b16 %v2827
    %v2945 = vunpack.c.h.b16 %v2827
    %v2946 = vunpack.c.l.b16 %v2828
    %v2947 = vunpack.c.h.b16 %v2828
    %v2948 = vunpack.c.l.b16 %v2829
    %v2949 = vunpack.c.h.b16 %v2829
    %v2950 = vunpack.c.l.b16 %v2830
    %v2951 = vunpack.c.h.b16 %v2830
    %v2952 = vunpack.c.l.b16 %v2831
    %v2953 = vunpack.c.h.b16 %v2831
    %v2954 = vunpack.c.l.b16 %v2832
    %v2955 = vunpack.c.h.b16 %v2832
    %v2956 = vunpack.c.l.b16 %v2833
    %v2957 = vunpack.c.h.b16 %v2833
    %v2958 = vunpack.c.l.b16 %v2834
    %v2959 = vunpack.c.h.b16 %v2834
    %v2960 = vunpack.c.l.b16 %v2835
    %v2961 = vunpack.c.h.b16 %v2835
    %v2962 = vunpack.c.l.b16 %v2836
    %v2963 = vunpack.c.h.b16 %v2836
    %v2964 = vunpack.c.l.b16 %v2837
    %v2965 = vunpack.c.h.b16 %v2837
    %v2966 = vunpack.c.l.b16 %v2838
    %v2967 = vunpack.c.h.b16 %v2838
    %v2968 = vunpack.c.l.b16 %v2839
    %v2969 = vunpack.c.h.b16 %v2839
    %v2970 = vunpack.c.l.b16 %v2840
    %v2971 = vunpack.c.h.b16 %v2840
    %v2972 = vunpack.c.l.b16 %v2841
    %v2973 = vunpack.c.h.b16 %v2841
    %v2974 = vunpack.c.l.b16 %v2842
    %v2975 = vunpack.c.h.b16 %v2842
    %v2976 = vunpack.c.l.b16 %v2843
    %v2977 = vunpack.c.h.b16 %v2843
    %v2978 = vunpack.c.l.b16 %v2844
    %v2979 = vunpack.c.h.b16 %v2844
    %v2980 = vunpack.c.l.b16 %v2845
    %v2981 = vunpack.c.h.b16 %v2845
    %v2982 = vunpack.c.l.b16 %v2846
    %v2983 = vunpack.c.h.b16 %v2846
    %v2984 = vunpack.c.l.b16 %v2847
    %v2985 = vunpack.c.h.b16 %v2847
    %v2986 = vpack.c.b16 %v2930, %v2922
    %v2987 = vpack.c.b16 %v2931, %v2923
    %v2988 = vpack.c.b16 %v2932, %v2924
    %v2989 = vpack.c.b16 %v2933, %v2925
    %v2990 = vpack.c.b16 %v2934, %v2926
    %v2991 = vpack.c.b16 %v2935, %v2927
    %v2992 = vpack.c.b16 %v2936, %v2928
    %v2993 = vpack.c.b16 %v2937, %v2929
    %v2994 = vpack.c.b16 %v2946, %v2938
    %v2995 = vpack.c.b16 %v2947, %v2939
    %v2996 = vpack.c.b16 %v2948, %v2940
    %v2997 = vpack.c.b16 %v2949, %v2941
    %v2998 = vpack.c.b16 %v2950, %v2942
    %v2999 = vpack.c.b16 %v2951, %v2943
    %v3000 = vpack.c.b16 %v2952, %v2944
    %v3001 = vpack.c.b16 %v2953, %v2945
    %v3002 = vpack.c.b16 %v2962, %v2954
    %v3003 = vpack.c.b16 %v2963, %v2955
    %v3004 = vpack.c.b16 %v2964, %v2956
    %v3005 = vpack.c.b16 %v2965, %v2957
    %v3006 = vpack.c.b16 %v2966, %v2958
    %v3007 = vpack.c.b16 %v2967, %v2959
    %v3008 = vpack.c.b16 %v2968, %v2960
    %v3009 = vpack.c.b16 %v2969, %v2961
    %v3010 = vpack.c.b16 %v2978, %v2970
    %v3011 = vpack.c.b16 %v2979, %v2971
    %v3012 = vpack.c.b16 %v2980, %v2972
    %v3013 = vpack.c.b16 %v2981, %v2973
    %v3014 = vpack.c.b16 %v2982, %v2974
    %v3015 = vpack.c.b16 %v2983, %v2975
    %v3016 = vpack.c.b16 %v2984, %v2976
    %v3017 = vpack.c.b16 %v2985, %v2977
    %v3051 = vsel %vm2148, %v2815, 0
    %3053 = vmatprep.subr.bf16.mxu0 0
    %3054 = vmatpush1.bf16.msra.mxu0 0
    %3055 = vmatprep.subr.bf16.mxu0 0
    %3056 = vmatpush1.bf16.msra.mxu0 0
    %3057 = vmatprep.subr.bf16.mxu0 0
    %3058 = vmatpush1.bf16.msra.mxu0 0
    %3059 = vmatprep.subr.bf16.mxu0 0
    %3060 = vmatpush1.bf16.msra.mxu0 0
    %3061 = vmatprep.subr.bf16.mxu0 %v3011
    %3062 = vmatpush1.bf16.msra.mxu0 %v3010
    %3063 = vmatprep.subr.bf16.mxu0 %v3003
    %3064 = vmatpush1.bf16.msra.mxu0 %v3002
    %3065 = vmatprep.subr.bf16.mxu0 %v2995
    %3066 = vmatpush1.bf16.msra.mxu0 %v2994
    %3067 = vmatprep.subr.bf16.mxu0 %v2987
    %3068 = vmatpush1.bf16.msra.mxu0 %v2986
    %3069 = vmatprep.subr.bf16.mxu0 0
    %3070 = vmatpush2.bf16.msra.mxu0 0
    %3071 = vmatprep.subr.bf16.mxu0 0
    %3072 = vmatpush2.bf16.msra.mxu0 0
    %3073 = vmatprep.subr.bf16.mxu0 0
    %3074 = vmatpush2.bf16.msra.mxu0 0
    %3075 = vmatprep.subr.bf16.mxu0 0
    %3076 = vmatpush2.bf16.msra.mxu0 0
    %3077 = vmatprep.subr.bf16.mxu0 0
    %3078 = vmatpush2.bf16.msra.mxu0 0
    %3079 = vmatprep.subr.bf16.mxu0 0
    %3080 = vmatpush2.bf16.msra.mxu0 0
    %3081 = vmatprep.subr.bf16.mxu0 0
    %3082 = vmatpush2.bf16.msra.mxu0 0
    %3083 = vmatprep.subr.bf16.mxu0 0
    %3084 = vmatpush2.bf16.msra.mxu0 0
    %3085 = vmatprep.mubr.bf16.mxu0 0
    %3086 = vmatmul.mubr.bf16.gmra.mxu0 %v3051
    %v3087 = vpop.f32.mrf.mxu0
    %v3088 = vadd.f32 %v2853, %v3087
    %v3089 = vpop.f32.mrf.mxu0
    %v3090 = vadd.f32 %v2857, %v3089
    %v3091 = vpop.f32.mrf.mxu0
    %v3092 = vpop.f32.mrf.mxu0
    %3093 = vdwg.mxu0
    %3094 = vmatprep.subr.bf16.mxu0 0
    %3095 = vmatpush1.bf16.msra.mxu0 0
    %3096 = vmatprep.subr.bf16.mxu0 0
    %3097 = vmatpush1.bf16.msra.mxu0 0
    %3098 = vmatprep.subr.bf16.mxu0 0
    %3099 = vmatpush1.bf16.msra.mxu0 0
    %3100 = vmatprep.subr.bf16.mxu0 0
    %3101 = vmatpush1.bf16.msra.mxu0 0
    %3102 = vmatprep.subr.bf16.mxu0 %v3013
    %3103 = vmatpush1.bf16.msra.mxu0 %v3012
    %3104 = vmatprep.subr.bf16.mxu0 %v3005
    %3105 = vmatpush1.bf16.msra.mxu0 %v3004
    %3106 = vmatprep.subr.bf16.mxu0 %v2997
    %3107 = vmatpush1.bf16.msra.mxu0 %v2996
    %3108 = vmatprep.subr.bf16.mxu0 %v2989
    %3109 = vmatpush1.bf16.msra.mxu0 %v2988
    %3110 = vmatprep.subr.bf16.mxu0 0
    %3111 = vmatpush2.bf16.msra.mxu0 0
    %3112 = vmatprep.subr.bf16.mxu0 0
    %3113 = vmatpush2.bf16.msra.mxu0 0
    %3114 = vmatprep.subr.bf16.mxu0 0
    %3115 = vmatpush2.bf16.msra.mxu0 0
    %3116 = vmatprep.subr.bf16.mxu0 0
    %3117 = vmatpush2.bf16.msra.mxu0 0
    %3118 = vmatprep.subr.bf16.mxu0 0
    %3119 = vmatpush2.bf16.msra.mxu0 0
    %3120 = vmatprep.subr.bf16.mxu0 0
    %3121 = vmatpush2.bf16.msra.mxu0 0
    %3122 = vmatprep.subr.bf16.mxu0 0
    %3123 = vmatpush2.bf16.msra.mxu0 0
    %3124 = vmatprep.subr.bf16.mxu0 0
    %3125 = vmatpush2.bf16.msra.mxu0 0
    %3126 = vmatprep.mubr.bf16.mxu0 0
    %3127 = vmatmul.mubr.bf16.gmra.mxu0 %v3051
    %v3128 = vpop.f32.mrf.mxu0
    %v3129 = vadd.f32 %v2861, %v3128
    %v3130 = vpop.f32.mrf.mxu0
    %v3131 = vadd.f32 %v2865, %v3130
    %v3132 = vpop.f32.mrf.mxu0
    %v3133 = vpop.f32.mrf.mxu0
    %3134 = vdwg.mxu0
    %3135 = vmatprep.subr.bf16.mxu0 0
    %3136 = vmatpush1.bf16.msra.mxu0 0
    %3137 = vmatprep.subr.bf16.mxu0 0
    %3138 = vmatpush1.bf16.msra.mxu0 0
    %3139 = vmatprep.subr.bf16.mxu0 0
    %3140 = vmatpush1.bf16.msra.mxu0 0
    %3141 = vmatprep.subr.bf16.mxu0 0
    %3142 = vmatpush1.bf16.msra.mxu0 0
    %3143 = vmatprep.subr.bf16.mxu0 %v3015
    %3144 = vmatpush1.bf16.msra.mxu0 %v3014
    %3145 = vmatprep.subr.bf16.mxu0 %v3007
    %3146 = vmatpush1.bf16.msra.mxu0 %v3006
    %3147 = vmatprep.subr.bf16.mxu0 %v2999
    %3148 = vmatpush1.bf16.msra.mxu0 %v2998
    %3149 = vmatprep.subr.bf16.mxu0 %v2991
    %3150 = vmatpush1.bf16.msra.mxu0 %v2990
    %3151 = vmatprep.subr.bf16.mxu0 0
    %3152 = vmatpush2.bf16.msra.mxu0 0
    %3153 = vmatprep.subr.bf16.mxu0 0
    %3154 = vmatpush2.bf16.msra.mxu0 0
    %3155 = vmatprep.subr.bf16.mxu0 0
    %3156 = vmatpush2.bf16.msra.mxu0 0
    %3157 = vmatprep.subr.bf16.mxu0 0
    %3158 = vmatpush2.bf16.msra.mxu0 0
    %3159 = vmatprep.subr.bf16.mxu0 0
    %3160 = vmatpush2.bf16.msra.mxu0 0
    %3161 = vmatprep.subr.bf16.mxu0 0
    %3162 = vmatpush2.bf16.msra.mxu0 0
    %3163 = vmatprep.subr.bf16.mxu0 0
    %3164 = vmatpush2.bf16.msra.mxu0 0
    %3165 = vmatprep.subr.bf16.mxu0 0
    %3166 = vmatpush2.bf16.msra.mxu0 0
    %3167 = vmatprep.mubr.bf16.mxu0 0
    %3168 = vmatmul.mubr.bf16.gmra.mxu0 %v3051
    %v3169 = vpop.f32.mrf.mxu0
    %v3170 = vadd.f32 %v2869, %v3169
    %v3171 = vpop.f32.mrf.mxu0
    %v3172 = vadd.f32 %v2873, %v3171
    %v3173 = vpop.f32.mrf.mxu0
    %v3174 = vpop.f32.mrf.mxu0
    %3175 = vdwg.mxu0
    %3176 = vmatprep.subr.bf16.mxu0 0
    %3177 = vmatpush1.bf16.msra.mxu0 0
    %3178 = vmatprep.subr.bf16.mxu0 0
    %3179 = vmatpush1.bf16.msra.mxu0 0
    %3180 = vmatprep.subr.bf16.mxu0 0
    %3181 = vmatpush1.bf16.msra.mxu0 0
    %3182 = vmatprep.subr.bf16.mxu0 0
    %3183 = vmatpush1.bf16.msra.mxu0 0
    %3184 = vmatprep.subr.bf16.mxu0 %v3017
    %3185 = vmatpush1.bf16.msra.mxu0 %v3016
    %3186 = vmatprep.subr.bf16.mxu0 %v3009
    %3187 = vmatpush1.bf16.msra.mxu0 %v3008
    %3188 = vmatprep.subr.bf16.mxu0 %v3001
    %3189 = vmatpush1.bf16.msra.mxu0 %v3000
    %3190 = vmatprep.subr.bf16.mxu0 %v2993
    %3191 = vmatpush1.bf16.msra.mxu0 %v2992
    %3192 = vmatprep.subr.bf16.mxu0 0
    %3193 = vmatpush2.bf16.msra.mxu0 0
    %3194 = vmatprep.subr.bf16.mxu0 0
    %3195 = vmatpush2.bf16.msra.mxu0 0
    %3196 = vmatprep.subr.bf16.mxu0 0
    %3197 = vmatpush2.bf16.msra.mxu0 0
    %3198 = vmatprep.subr.bf16.mxu0 0
    %3199 = vmatpush2.bf16.msra.mxu0 0
    %3200 = vmatprep.subr.bf16.mxu0 0
    %3201 = vmatpush2.bf16.msra.mxu0 0
    %3202 = vmatprep.subr.bf16.mxu0 0
    %3203 = vmatpush2.bf16.msra.mxu0 0
    %3204 = vmatprep.subr.bf16.mxu0 0
    %3205 = vmatpush2.bf16.msra.mxu0 0
    %3206 = vmatprep.subr.bf16.mxu0 0
    %3207 = vmatpush2.bf16.msra.mxu0 0
    %3208 = vmatprep.mubr.bf16.mxu0 0
    %3209 = vmatmul.mubr.bf16.gmra.mxu0 %v3051
    %v3210 = vpop.f32.mrf.mxu0
    %v3211 = vadd.f32 %v2877, %v3210
    %v3212 = vpop.f32.mrf.mxu0
    %v3213 = vadd.f32 %v2881, %v3212
    %v3214 = vpop.f32.mrf.mxu0
    %v3215 = vpop.f32.mrf.mxu0
    %3216 = vdwg.mxu0
    %v3217 = vmax.f32 %v3088, 0.0
    %v3218 = vmax.f32 %v3090, 0.0
    %v3219 = vmax.f32 %v3129, 0.0
    %v3220 = vmax.f32 %v3131, 0.0
    %v3221 = vmax.f32 %v3170, 0.0
    %v3222 = vmax.f32 %v3172, 0.0
    %v3223 = vmax.f32 %v3211, 0.0
    %v3224 = vmax.f32 %v3213, 0.0
    %v3225 = vpack.c.bf16 %v3217, %v3217
    %v3226 = vpack.c.bf16 %v3218, %v3218
    %v3227 = vpack.c.bf16 %v3219, %v3219
    %v3228 = vpack.c.bf16 %v3220, %v3220
    %v3229 = vpack.c.bf16 %v3221, %v3221
    %v3230 = vpack.c.bf16 %v3222, %v3222
    %v3231 = vpack.c.bf16 %v3223, %v3223
    %v3232 = vpack.c.bf16 %v3224, %v3224
    %v3233 = vld [vmem:[%s9] sm:$0xf]
    %v3234 = vld [vmem:[%s9 + $0x4] sm:$0xf]
    %v3235 = vld [vmem:[%s9 + $0x8] sm:$0xf]
    %v3236 = vld [vmem:[%s9 + $0xc] sm:$0xf]
    %v3237 = vld [vmem:[%s9 + $0x10] sm:$0xf]
    %v3238 = vld [vmem:[%s9 + $0x14] sm:$0xf]
    %v3239 = vld [vmem:[%s9 + $0x18] sm:$0xf]
    %v3240 = vld [vmem:[%s9 + $0x1c] sm:$0xf]
    %v3241 = vld [vmem:[%s9 + $0x20] sm:$0xf]
    %v3242 = vld [vmem:[%s9 + $0x24] sm:$0xf]
    %v3243 = vld [vmem:[%s9 + $0x28] sm:$0xf]
    %v3244 = vld [vmem:[%s9 + $0x2c] sm:$0xf]
    %v3245 = vld [vmem:[%s9 + $0x30] sm:$0xf]
    %v3246 = vld [vmem:[%s9 + $0x34] sm:$0xf]
    %v3247 = vld [vmem:[%s9 + $0x38] sm:$0xf]
    %v3248 = vld [vmem:[%s9 + $0x3c] sm:$0xf]
    %v3249 = vld [vmem:[%s9 + $0x40] sm:$0xf]
    %v3250 = vld [vmem:[%s9 + $0x44] sm:$0xf]
    %v3251 = vld [vmem:[%s9 + $0x48] sm:$0xf]
    %v3252 = vld [vmem:[%s9 + $0x4c] sm:$0xf]
    %v3253 = vld [vmem:[%s9 + $0x50] sm:$0xf]
    %v3254 = vld [vmem:[%s9 + $0x54] sm:$0xf]
    %v3255 = vld [vmem:[%s9 + $0x58] sm:$0xf]
    %v3256 = vld [vmem:[%s9 + $0x5c] sm:$0xf]
    %v3257 = vld [vmem:[%s9 + $0x60] sm:$0xf]
    %v3258 = vld [vmem:[%s9 + $0x64] sm:$0xf]
    %v3259 = vld [vmem:[%s9 + $0x68] sm:$0xf]
    %v3260 = vld [vmem:[%s9 + $0x6c] sm:$0xf]
    %v3261 = vld [vmem:[%s9 + $0x70] sm:$0xf]
    %v3262 = vld [vmem:[%s9 + $0x74] sm:$0xf]
    %v3263 = vld [vmem:[%s9 + $0x78] sm:$0xf]
    %v3264 = vld [vmem:[%s9 + $0x7c] sm:$0xf]
    %v3265 = vld [vmem:[%s9 + $0x80] sm:$0xf]
    %v3266 = vld [vmem:[%s9 + $0x84] sm:$0xf]
    %v3267 = vld [vmem:[%s9 + $0x88] sm:$0xf]
    %v3268 = vld [vmem:[%s9 + $0x8c] sm:$0xf]
    %v3269 = vld [vmem:[%s9 + $0x90] sm:$0xf]
    %v3270 = vld [vmem:[%s9 + $0x94] sm:$0xf]
    %v3271 = vld [vmem:[%s9 + $0x98] sm:$0xf]
    %v3272 = vld [vmem:[%s9 + $0x9c] sm:$0xf]
    %v3273 = vld [vmem:[%s9 + $0xa0] sm:$0xf]
    %v3274 = vld [vmem:[%s9 + $0xa4] sm:$0xf]
    %v3275 = vld [vmem:[%s9 + $0xa8] sm:$0xf]
    %v3276 = vld [vmem:[%s9 + $0xac] sm:$0xf]
    %v3277 = vld [vmem:[%s9 + $0xb0] sm:$0xf]
    %v3278 = vld [vmem:[%s9 + $0xb4] sm:$0xf]
    %v3279 = vld [vmem:[%s9 + $0xb8] sm:$0xf]
    %v3280 = vld [vmem:[%s9 + $0xbc] sm:$0xf]
    %v3281 = vld [vmem:[%s9 + $0xc0] sm:$0xf]
    %v3282 = vld [vmem:[%s9 + $0xc4] sm:$0xf]
    %v3283 = vld [vmem:[%s9 + $0xc8] sm:$0xf]
    %v3284 = vld [vmem:[%s9 + $0xcc] sm:$0xf]
    %v3285 = vld [vmem:[%s9 + $0xd0] sm:$0xf]
    %v3286 = vld [vmem:[%s9 + $0xd4] sm:$0xf]
    %v3287 = vld [vmem:[%s9 + $0xd8] sm:$0xf]
    %v3288 = vld [vmem:[%s9 + $0xdc] sm:$0xf]
    %v3289 = vld [vmem:[%s9 + $0xe0] sm:$0xf]
    %v3290 = vld [vmem:[%s9 + $0xe4] sm:$0xf]
    %v3291 = vld [vmem:[%s9 + $0xe8] sm:$0xf]
    %v3292 = vld [vmem:[%s9 + $0xec] sm:$0xf]
    %v3293 = vld [vmem:[%s9 + $0xf0] sm:$0xf]
    %v3294 = vld [vmem:[%s9 + $0xf4] sm:$0xf]
    %v3295 = vld [vmem:[%s9 + $0xf8] sm:$0xf]
    %v3296 = vld [vmem:[%s9 + $0xfc] sm:$0xf]
    %v3297 = vld [vmem:[%s10] sm:$0x1]
    %v3299 = vlaneseq
    %v3300 = vshrl.u32 %v3299, 7
    %v3301 = vsub.s32 0, %v3300
    %v3302 = vrot.slane %v3297, %v3301
    %v3368 = vunpack.c.l.b16 %v3233
    %v3369 = vunpack.c.l.b16 %v3234
    %v3370 = vunpack.c.l.b16 %v3235
    %v3371 = vunpack.c.l.b16 %v3236
    %v3372 = vunpack.c.l.b16 %v3237
    %v3373 = vunpack.c.l.b16 %v3238
    %v3374 = vunpack.c.l.b16 %v3239
    %v3375 = vunpack.c.l.b16 %v3240
    %v3376 = vunpack.c.l.b16 %v3241
    %v3377 = vunpack.c.l.b16 %v3242
    %v3378 = vunpack.c.l.b16 %v3243
    %v3379 = vunpack.c.l.b16 %v3244
    %v3380 = vunpack.c.l.b16 %v3245
    %v3381 = vunpack.c.l.b16 %v3246
    %v3382 = vunpack.c.l.b16 %v3247
    %v3383 = vunpack.c.l.b16 %v3248
    %v3384 = vunpack.c.l.b16 %v3249
    %v3385 = vunpack.c.l.b16 %v3250
    %v3386 = vunpack.c.l.b16 %v3251
    %v3387 = vunpack.c.l.b16 %v3252
    %v3388 = vunpack.c.l.b16 %v3253
    %v3389 = vunpack.c.l.b16 %v3254
    %v3390 = vunpack.c.l.b16 %v3255
    %v3391 = vunpack.c.l.b16 %v3256
    %v3392 = vunpack.c.l.b16 %v3257
    %v3393 = vunpack.c.l.b16 %v3258
    %v3394 = vunpack.c.l.b16 %v3259
    %v3395 = vunpack.c.l.b16 %v3260
    %v3396 = vunpack.c.l.b16 %v3261
    %v3397 = vunpack.c.l.b16 %v3262
    %v3398 = vunpack.c.l.b16 %v3263
    %v3399 = vunpack.c.l.b16 %v3264
    %v3400 = vunpack.c.l.b16 %v3265
    %v3401 = vunpack.c.l.b16 %v3266
    %v3402 = vunpack.c.l.b16 %v3267
    %v3403 = vunpack.c.l.b16 %v3268
    %v3404 = vunpack.c.l.b16 %v3269
    %v3405 = vunpack.c.l.b16 %v3270
    %v3406 = vunpack.c.l.b16 %v3271
    %v3407 = vunpack.c.l.b16 %v3272
    %v3408 = vunpack.c.l.b16 %v3273
    %v3409 = vunpack.c.l.b16 %v3274
    %v3410 = vunpack.c.l.b16 %v3275
    %v3411 = vunpack.c.l.b16 %v3276
    %v3412 = vunpack.c.l.b16 %v3277
    %v3413 = vunpack.c.l.b16 %v3278
    %v3414 = vunpack.c.l.b16 %v3279
    %v3415 = vunpack.c.l.b16 %v3280
    %v3416 = vunpack.c.l.b16 %v3281
    %v3417 = vunpack.c.l.b16 %v3282
    %v3418 = vunpack.c.l.b16 %v3283
    %v3419 = vunpack.c.l.b16 %v3284
    %v3420 = vunpack.c.l.b16 %v3285
    %v3421 = vunpack.c.l.b16 %v3286
    %v3422 = vunpack.c.l.b16 %v3287
    %v3423 = vunpack.c.l.b16 %v3288
    %v3424 = vunpack.c.l.b16 %v3289
    %v3425 = vunpack.c.l.b16 %v3290
    %v3426 = vunpack.c.l.b16 %v3291
    %v3427 = vunpack.c.l.b16 %v3292
    %v3428 = vunpack.c.l.b16 %v3293
    %v3429 = vunpack.c.l.b16 %v3294
    %v3430 = vunpack.c.l.b16 %v3295
    %v3431 = vunpack.c.l.b16 %v3296
    %v3432 = vpack.c.b16 %v3369, %v3368
    %v3433 = vpack.c.b16 %v3371, %v3370
    %v3434 = vpack.c.b16 %v3373, %v3372
    %v3435 = vpack.c.b16 %v3375, %v3374
    %v3436 = vpack.c.b16 %v3377, %v3376
    %v3437 = vpack.c.b16 %v3379, %v3378
    %v3438 = vpack.c.b16 %v3381, %v3380
    %v3439 = vpack.c.b16 %v3383, %v3382
    %v3440 = vpack.c.b16 %v3385, %v3384
    %v3441 = vpack.c.b16 %v3387, %v3386
    %v3442 = vpack.c.b16 %v3389, %v3388
    %v3443 = vpack.c.b16 %v3391, %v3390
    %v3444 = vpack.c.b16 %v3393, %v3392
    %v3445 = vpack.c.b16 %v3395, %v3394
    %v3446 = vpack.c.b16 %v3397, %v3396
    %v3447 = vpack.c.b16 %v3399, %v3398
    %v3448 = vpack.c.b16 %v3401, %v3400
    %v3449 = vpack.c.b16 %v3403, %v3402
    %v3450 = vpack.c.b16 %v3405, %v3404
    %v3451 = vpack.c.b16 %v3407, %v3406
    %v3452 = vpack.c.b16 %v3409, %v3408
    %v3453 = vpack.c.b16 %v3411, %v3410
    %v3454 = vpack.c.b16 %v3413, %v3412
    %v3455 = vpack.c.b16 %v3415, %v3414
    %v3456 = vpack.c.b16 %v3417, %v3416
    %v3457 = vpack.c.b16 %v3419, %v3418
    %v3458 = vpack.c.b16 %v3421, %v3420
    %v3459 = vpack.c.b16 %v3423, %v3422
    %v3460 = vpack.c.b16 %v3425, %v3424
    %v3461 = vpack.c.b16 %v3427, %v3426
    %v3462 = vpack.c.b16 %v3429, %v3428
    %v3463 = vpack.c.b16 %v3431, %v3430
    %3496 = vmatprep.subr.bf16.mxu0 0
    %3497 = vmatpush1.bf16.msra.mxu0 %v3439
    %3498 = vmatprep.subr.bf16.mxu0 0
    %3499 = vmatpush1.bf16.msra.mxu0 %v3438
    %3500 = vmatprep.subr.bf16.mxu0 0
    %3501 = vmatpush1.bf16.msra.mxu0 %v3437
    %3502 = vmatprep.subr.bf16.mxu0 0
    %3503 = vmatpush1.bf16.msra.mxu0 %v3436
    %3504 = vmatprep.subr.bf16.mxu0 0
    %3505 = vmatpush1.bf16.msra.mxu0 %v3435
    %3506 = vmatprep.subr.bf16.mxu0 0
    %3507 = vmatpush1.bf16.msra.mxu0 %v3434
    %3508 = vmatprep.subr.bf16.mxu0 0
    %3509 = vmatpush1.bf16.msra.mxu0 %v3433
    %3510 = vmatprep.subr.bf16.mxu0 0
    %3511 = vmatpush1.bf16.msra.mxu0 %v3432
    %3512 = vmatprep.subr.bf16.mxu0 0
    %3513 = vmatpush2.bf16.msra.mxu0 %v3447
    %3514 = vmatprep.subr.bf16.mxu0 0
    %3515 = vmatpush2.bf16.msra.mxu0 %v3446
    %3516 = vmatprep.subr.bf16.mxu0 0
    %3517 = vmatpush2.bf16.msra.mxu0 %v3445
    %3518 = vmatprep.subr.bf16.mxu0 0
    %3519 = vmatpush2.bf16.msra.mxu0 %v3444
    %3520 = vmatprep.subr.bf16.mxu0 0
    %3521 = vmatpush2.bf16.msra.mxu0 %v3443
    %3522 = vmatprep.subr.bf16.mxu0 0
    %3523 = vmatpush2.bf16.msra.mxu0 %v3442
    %3524 = vmatprep.subr.bf16.mxu0 0
    %3525 = vmatpush2.bf16.msra.mxu0 %v3441
    %3526 = vmatprep.subr.bf16.mxu0 0
    %3527 = vmatpush2.bf16.msra.mxu0 %v3440
    %3528 = vmatprep.mubr.bf16.mxu0 %v3226
    %3529 = vmatmul.mubr.bf16.gmra.mxu0 %v3225
    %v3530 = vpop.f32.mrf.mxu0
    %v3531 = vadd.f32 %v3302, %v3530
    %v3532 = vpop.f32.mrf.mxu0
    %v3533 = vpop.f32.mrf.mxu0
    %v3534 = vpop.f32.mrf.mxu0
    %3535 = vdwg.mxu0
    %3536 = vmatprep.subr.bf16.mxu0 0
    %3537 = vmatpush1.bf16.msra.mxu0 %v3455
    %3538 = vmatprep.subr.bf16.mxu0 0
    %3539 = vmatpush1.bf16.msra.mxu0 %v3454
    %3540 = vmatprep.subr.bf16.mxu0 0
    %3541 = vmatpush1.bf16.msra.mxu0 %v3453
    %3542 = vmatprep.subr.bf16.mxu0 0
    %3543 = vmatpush1.bf16.msra.mxu0 %v3452
    %3544 = vmatprep.subr.bf16.mxu0 0
    %3545 = vmatpush1.bf16.msra.mxu0 %v3451
    %3546 = vmatprep.subr.bf16.mxu0 0
    %3547 = vmatpush1.bf16.msra.mxu0 %v3450
    %3548 = vmatprep.subr.bf16.mxu0 0
    %3549 = vmatpush1.bf16.msra.mxu0 %v3449
    %3550 = vmatprep.subr.bf16.mxu0 0
    %3551 = vmatpush1.bf16.msra.mxu0 %v3448
    %3552 = vmatprep.subr.bf16.mxu0 0
    %3553 = vmatpush2.bf16.msra.mxu0 %v3463
    %3554 = vmatprep.subr.bf16.mxu0 0
    %3555 = vmatpush2.bf16.msra.mxu0 %v3462
    %3556 = vmatprep.subr.bf16.mxu0 0
    %3557 = vmatpush2.bf16.msra.mxu0 %v3461
    %3558 = vmatprep.subr.bf16.mxu0 0
    %3559 = vmatpush2.bf16.msra.mxu0 %v3460
    %3560 = vmatprep.subr.bf16.mxu0 0
    %3561 = vmatpush2.bf16.msra.mxu0 %v3459
    %3562 = vmatprep.subr.bf16.mxu0 0
    %3563 = vmatpush2.bf16.msra.mxu0 %v3458
    %3564 = vmatprep.subr.bf16.mxu0 0
    %3565 = vmatpush2.bf16.msra.mxu0 %v3457
    %3566 = vmatprep.subr.bf16.mxu0 0
    %3567 = vmatpush2.bf16.msra.mxu0 %v3456
    %3568 = vmatprep.mubr.bf16.mxu0 %v3228
    %3569 = vmatmul.mubr.bf16.gmra.mxu0 %v3227
    %v3570 = vpop.f32.mrf.mxu0
    %v3571 = vadd.f32 %v3531, %v3570
    %v3572 = vpop.f32.mrf.mxu0
    %v3573 = vpop.f32.mrf.mxu0
    %v3574 = vpop.f32.mrf.mxu0
    %3575 = vdwg.mxu0
    %v3576 = vld [vmem:[%s11] sm:$0xff]
    %v3577 = vld [vmem:[%s11 + $0x8] sm:$0xff]
    %v3578 = vld [vmem:[%s11 + $0x10] sm:$0xff]
    %v3579 = vld [vmem:[%s11 + $0x18] sm:$0xff]
    %v3580 = vld [vmem:[%s11 + $0x20] sm:$0xff]
    %v3581 = vld [vmem:[%s11 + $0x28] sm:$0xff]
    %v3582 = vld [vmem:[%s11 + $0x30] sm:$0xff]
    %v3583 = vld [vmem:[%s11 + $0x38] sm:$0xff]
    %v3584 = vld [vmem:[%s11 + $0x40] sm:$0xff]
    %v3585 = vld [vmem:[%s11 + $0x48] sm:$0xff]
    %v3586 = vld [vmem:[%s11 + $0x50] sm:$0xff]
    %v3587 = vld [vmem:[%s11 + $0x58] sm:$0xff]
    %v3588 = vld [vmem:[%s11 + $0x60] sm:$0xff]
    %v3589 = vld [vmem:[%s11 + $0x68] sm:$0xff]
    %v3590 = vld [vmem:[%s11 + $0x70] sm:$0xff]
    %v3591 = vld [vmem:[%s11 + $0x78] sm:$0xff]
    %v3592 = vld [vmem:[%s11 + $0x80] sm:$0xff]
    %v3593 = vld [vmem:[%s11 + $0x88] sm:$0xff]
    %v3594 = vld [vmem:[%s11 + $0x90] sm:$0xff]
    %v3595 = vld [vmem:[%s11 + $0x98] sm:$0xff]
    %v3596 = vld [vmem:[%s11 + $0xa0] sm:$0xff]
    %v3597 = vld [vmem:[%s11 + $0xa8] sm:$0xff]
    %v3598 = vld [vmem:[%s11 + $0xb0] sm:$0xff]
    %v3599 = vld [vmem:[%s11 + $0xb8] sm:$0xff]
    %v3600 = vld [vmem:[%s11 + $0xc0] sm:$0xff]
    %v3601 = vld [vmem:[%s11 + $0xc8] sm:$0xff]
    %v3602 = vld [vmem:[%s11 + $0xd0] sm:$0xff]
    %v3603 = vld [vmem:[%s11 + $0xd8] sm:$0xff]
    %v3604 = vld [vmem:[%s11 + $0xe0] sm:$0xff]
    %v3605 = vld [vmem:[%s11 + $0xe8] sm:$0xff]
    %v3606 = vld [vmem:[%s11 + $0xf0] sm:$0xff]
    %v3607 = vld [vmem:[%s11 + $0xf8] sm:$0xff]
    %v3608 = vld [vmem:[%s11 + $0x100] sm:$0xff]
    %v3609 = vld [vmem:[%s11 + $0x108] sm:$0xff]
    %v3610 = vld [vmem:[%s11 + $0x110] sm:$0xff]
    %v3611 = vld [vmem:[%s11 + $0x118] sm:$0xff]
    %v3612 = vld [vmem:[%s11 + $0x120] sm:$0xff]
    %v3613 = vld [vmem:[%s11 + $0x128] sm:$0xff]
    %v3614 = vld [vmem:[%s11 + $0x130] sm:$0xff]
    %v3615 = vld [vmem:[%s11 + $0x138] sm:$0xff]
    %v3616 = vld [vmem:[%s11 + $0x140] sm:$0xff]
    %v3617 = vld [vmem:[%s11 + $0x148] sm:$0xff]
    %v3618 = vld [vmem:[%s11 + $0x150] sm:$0xff]
    %v3619 = vld [vmem:[%s11 + $0x158] sm:$0xff]
    %v3620 = vld [vmem:[%s11 + $0x160] sm:$0xff]
    %v3621 = vld [vmem:[%s11 + $0x168] sm:$0xff]
    %v3622 = vld [vmem:[%s11 + $0x170] sm:$0xff]
    %v3623 = vld [vmem:[%s11 + $0x178] sm:$0xff]
    %v3624 = vld [vmem:[%s11 + $0x180] sm:$0xff]
    %v3625 = vld [vmem:[%s11 + $0x188] sm:$0xff]
    %v3626 = vld [vmem:[%s11 + $0x190] sm:$0xff]
    %v3627 = vld [vmem:[%s11 + $0x198] sm:$0xff]
    %v3628 = vld [vmem:[%s11 + $0x1a0] sm:$0xff]
    %v3629 = vld [vmem:[%s11 + $0x1a8] sm:$0xff]
    %v3630 = vld [vmem:[%s11 + $0x1b0] sm:$0xff]
    %v3631 = vld [vmem:[%s11 + $0x1b8] sm:$0xff]
    %v3632 = vld [vmem:[%s11 + $0x1c0] sm:$0xff]
    %v3633 = vld [vmem:[%s11 + $0x1c8] sm:$0xff]
    %v3634 = vld [vmem:[%s11 + $0x1d0] sm:$0xff]
    %v3635 = vld [vmem:[%s11 + $0x1d8] sm:$0xff]
    %v3636 = vld [vmem:[%s11 + $0x1e0] sm:$0xff]
    %v3637 = vld [vmem:[%s11 + $0x1e8] sm:$0xff]
    %v3638 = vld [vmem:[%s11 + $0x1f0] sm:$0xff]
    %v3639 = vld [vmem:[%s11 + $0x1f8] sm:$0xff]
    %v3640 = vld [vmem:[%s11 + $0x200] sm:$0xff]
    %v3641 = vld [vmem:[%s11 + $0x208] sm:$0xff]
    %v3642 = vld [vmem:[%s11 + $0x210] sm:$0xff]
    %v3643 = vld [vmem:[%s11 + $0x218] sm:$0xff]
    %v3644 = vld [vmem:[%s11 + $0x220] sm:$0xff]
    %v3645 = vld [vmem:[%s11 + $0x228] sm:$0xff]
    %v3646 = vld [vmem:[%s11 + $0x230] sm:$0xff]
    %v3647 = vld [vmem:[%s11 + $0x238] sm:$0xff]
    %v3648 = vld [vmem:[%s11 + $0x240] sm:$0xff]
    %v3649 = vld [vmem:[%s11 + $0x248] sm:$0xff]
    %v3650 = vld [vmem:[%s11 + $0x250] sm:$0xff]
    %v3651 = vld [vmem:[%s11 + $0x258] sm:$0xff]
    %v3652 = vld [vmem:[%s11 + $0x260] sm:$0xff]
    %v3653 = vld [vmem:[%s11 + $0x268] sm:$0xff]
    %v3654 = vld [vmem:[%s11 + $0x270] sm:$0xff]
    %v3655 = vld [vmem:[%s11 + $0x278] sm:$0xff]
    %v3656 = vld [vmem:[%s11 + $0x280] sm:$0xff]
    %v3657 = vld [vmem:[%s11 + $0x288] sm:$0xff]
    %v3658 = vld [vmem:[%s11 + $0x290] sm:$0xff]
    %v3659 = vld [vmem:[%s11 + $0x298] sm:$0xff]
    %v3660 = vld [vmem:[%s11 + $0x2a0] sm:$0xff]
    %v3661 = vld [vmem:[%s11 + $0x2a8] sm:$0xff]
    %v3662 = vld [vmem:[%s11 + $0x2b0] sm:$0xff]
    %v3663 = vld [vmem:[%s11 + $0x2b8] sm:$0xff]
    %v3664 = vld [vmem:[%s11 + $0x2c0] sm:$0xff]
    %v3665 = vld [vmem:[%s11 + $0x2c8] sm:$0xff]
    %v3666 = vld [vmem:[%s11 + $0x2d0] sm:$0xff]
    %v3667 = vld [vmem:[%s11 + $0x2d8] sm:$0xff]
    %v3668 = vld [vmem:[%s11 + $0x2e0] sm:$0xff]
    %v3669 = vld [vmem:[%s11 + $0x2e8] sm:$0xff]
    %v3670 = vld [vmem:[%s11 + $0x2f0] sm:$0xff]
    %v3671 = vld [vmem:[%s11 + $0x2f8] sm:$0xff]
    %v3672 = vld [vmem:[%s11 + $0x300] sm:$0xff]
    %v3673 = vld [vmem:[%s11 + $0x308] sm:$0xff]
    %v3674 = vld [vmem:[%s11 + $0x310] sm:$0xff]
    %v3675 = vld [vmem:[%s11 + $0x318] sm:$0xff]
    %v3676 = vld [vmem:[%s11 + $0x320] sm:$0xff]
    %v3677 = vld [vmem:[%s11 + $0x328] sm:$0xff]
    %v3678 = vld [vmem:[%s11 + $0x330] sm:$0xff]
    %v3679 = vld [vmem:[%s11 + $0x338] sm:$0xff]
    %v3680 = vld [vmem:[%s11 + $0x340] sm:$0xff]
    %v3681 = vld [vmem:[%s11 + $0x348] sm:$0xff]
    %v3682 = vld [vmem:[%s11 + $0x350] sm:$0xff]
    %v3683 = vld [vmem:[%s11 + $0x358] sm:$0xff]
    %v3684 = vld [vmem:[%s11 + $0x360] sm:$0xff]
    %v3685 = vld [vmem:[%s11 + $0x368] sm:$0xff]
    %v3686 = vld [vmem:[%s11 + $0x370] sm:$0xff]
    %v3687 = vld [vmem:[%s11 + $0x378] sm:$0xff]
    %v3688 = vld [vmem:[%s11 + $0x380] sm:$0xff]
    %v3689 = vld [vmem:[%s11 + $0x388] sm:$0xff]
    %v3690 = vld [vmem:[%s11 + $0x390] sm:$0xff]
    %v3691 = vld [vmem:[%s11 + $0x398] sm:$0xff]
    %v3692 = vld [vmem:[%s11 + $0x3a0] sm:$0xff]
    %v3693 = vld [vmem:[%s11 + $0x3a8] sm:$0xff]
    %v3694 = vld [vmem:[%s11 + $0x3b0] sm:$0xff]
    %v3695 = vld [vmem:[%s11 + $0x3b8] sm:$0xff]
    %v3696 = vld [vmem:[%s11 + $0x3c0] sm:$0xff]
    %v3697 = vld [vmem:[%s11 + $0x3c8] sm:$0xff]
    %v3698 = vld [vmem:[%s11 + $0x3d0] sm:$0xff]
    %v3699 = vld [vmem:[%s11 + $0x3d8] sm:$0xff]
    %v3700 = vld [vmem:[%s11 + $0x3e0] sm:$0xff]
    %v3701 = vld [vmem:[%s11 + $0x3e8] sm:$0xff]
    %v3702 = vld [vmem:[%s11 + $0x3f0] sm:$0xff]
    %v3703 = vld [vmem:[%s11 + $0x3f8] sm:$0xff]
    %v3704 = vld [vmem:[%s11 + $0x400] sm:$0xff]
    %v3705 = vld [vmem:[%s11 + $0x408] sm:$0xff]
    %v3706 = vld [vmem:[%s11 + $0x410] sm:$0xff]
    %v3707 = vld [vmem:[%s11 + $0x418] sm:$0xff]
    %v3708 = vld [vmem:[%s11 + $0x420] sm:$0xff]
    %v3709 = vld [vmem:[%s11 + $0x428] sm:$0xff]
    %v3710 = vld [vmem:[%s11 + $0x430] sm:$0xff]
    %v3711 = vld [vmem:[%s11 + $0x438] sm:$0xff]
    %v3712 = vld [vmem:[%s11 + $0x440] sm:$0xff]
    %v3713 = vld [vmem:[%s11 + $0x448] sm:$0xff]
    %v3714 = vld [vmem:[%s11 + $0x450] sm:$0xff]
    %v3715 = vld [vmem:[%s11 + $0x458] sm:$0xff]
    %v3716 = vld [vmem:[%s11 + $0x460] sm:$0xff]
    %v3717 = vld [vmem:[%s11 + $0x468] sm:$0xff]
    %v3718 = vld [vmem:[%s11 + $0x470] sm:$0xff]
    %v3719 = vld [vmem:[%s11 + $0x478] sm:$0xff]
    %v3720 = vld [vmem:[%s11 + $0x480] sm:$0xff]
    %v3721 = vld [vmem:[%s11 + $0x488] sm:$0xff]
    %v3722 = vld [vmem:[%s11 + $0x490] sm:$0xff]
    %v3723 = vld [vmem:[%s11 + $0x498] sm:$0xff]
    %v3724 = vld [vmem:[%s11 + $0x4a0] sm:$0xff]
    %v3725 = vld [vmem:[%s11 + $0x4a8] sm:$0xff]
    %v3726 = vld [vmem:[%s11 + $0x4b0] sm:$0xff]
    %v3727 = vld [vmem:[%s11 + $0x4b8] sm:$0xff]
    %v3728 = vld [vmem:[%s11 + $0x4c0] sm:$0xff]
    %v3729 = vld [vmem:[%s11 + $0x4c8] sm:$0xff]
    %v3730 = vld [vmem:[%s11 + $0x4d0] sm:$0xff]
    %v3731 = vld [vmem:[%s11 + $0x4d8] sm:$0xff]
    %v3732 = vld [vmem:[%s11 + $0x4e0] sm:$0xff]
    %v3733 = vld [vmem:[%s11 + $0x4e8] sm:$0xff]
    %v3734 = vld [vmem:[%s11 + $0x4f0] sm:$0xff]
    %v3735 = vld [vmem:[%s11 + $0x4f8] sm:$0xff]
    %v3736 = vld [vmem:[%s11 + $0x500] sm:$0xff]
    %v3737 = vld [vmem:[%s11 + $0x508] sm:$0xff]
    %v3738 = vld [vmem:[%s11 + $0x510] sm:$0xff]
    %v3739 = vld [vmem:[%s11 + $0x518] sm:$0xff]
    %v3740 = vld [vmem:[%s11 + $0x520] sm:$0xff]
    %v3741 = vld [vmem:[%s11 + $0x528] sm:$0xff]
    %v3742 = vld [vmem:[%s11 + $0x530] sm:$0xff]
    %v3743 = vld [vmem:[%s11 + $0x538] sm:$0xff]
    %v3744 = vld [vmem:[%s11 + $0x540] sm:$0xff]
    %v3745 = vld [vmem:[%s11 + $0x548] sm:$0xff]
    %v3746 = vld [vmem:[%s11 + $0x550] sm:$0xff]
    %v3747 = vld [vmem:[%s11 + $0x558] sm:$0xff]
    %v3748 = vld [vmem:[%s11 + $0x560] sm:$0xff]
    %v3749 = vld [vmem:[%s11 + $0x568] sm:$0xff]
    %v3750 = vld [vmem:[%s11 + $0x570] sm:$0xff]
    %v3751 = vld [vmem:[%s11 + $0x578] sm:$0xff]
    %v3752 = vld [vmem:[%s11 + $0x580] sm:$0xff]
    %v3753 = vld [vmem:[%s11 + $0x588] sm:$0xff]
    %v3754 = vld [vmem:[%s11 + $0x590] sm:$0xff]
    %v3755 = vld [vmem:[%s11 + $0x598] sm:$0xff]
    %v3756 = vld [vmem:[%s11 + $0x5a0] sm:$0xff]
    %v3757 = vld [vmem:[%s11 + $0x5a8] sm:$0xff]
    %v3758 = vld [vmem:[%s11 + $0x5b0] sm:$0xff]
    %v3759 = vld [vmem:[%s11 + $0x5b8] sm:$0xff]
    %v3760 = vld [vmem:[%s11 + $0x5c0] sm:$0xff]
    %v3761 = vld [vmem:[%s11 + $0x5c8] sm:$0xff]
    %v3762 = vld [vmem:[%s11 + $0x5d0] sm:$0xff]
    %v3763 = vld [vmem:[%s11 + $0x5d8] sm:$0xff]
    %v3764 = vld [vmem:[%s11 + $0x5e0] sm:$0xff]
    %v3765 = vld [vmem:[%s11 + $0x5e8] sm:$0xff]
    %v3766 = vld [vmem:[%s11 + $0x5f0] sm:$0xff]
    %v3767 = vld [vmem:[%s11 + $0x5f8] sm:$0xff]
    %v3768 = vld [vmem:[%s12] sm:$0x3f]
    %v3770 = vlaneseq
    %v3771 = vshrl.u32 %v3770, 7
    %v3772 = vsub.s32 0, %v3771
    %v3773 = vrot.slane %v3768, %v3772
    %v3774 = vlaneseq
    %v3775 = vshrl.u32 %v3774, 7
    %v3776 = vsub.s32 1, %v3775
    %v3777 = vrot.slane %v3768, %v3776
    %v3778 = vlaneseq
    %v3779 = vshrl.u32 %v3778, 7
    %v3780 = vsub.s32 2, %v3779
    %v3781 = vrot.slane %v3768, %v3780
    %v3782 = vlaneseq
    %v3783 = vshrl.u32 %v3782, 7
    %v3784 = vsub.s32 3, %v3783
    %v3785 = vrot.slane %v3768, %v3784
    %v3786 = vlaneseq
    %v3787 = vshrl.u32 %v3786, 7
    %v3788 = vsub.s32 4, %v3787
    %v3789 = vrot.slane %v3768, %v3788
    %v3790 = vlaneseq
    %v3791 = vshrl.u32 %v3790, 7
    %v3792 = vsub.s32 5, %v3791
    %v3793 = vrot.slane %v3768, %v3792
    %v3992 = vunpack.c.l.b16 %v3576
    %v3993 = vunpack.c.h.b16 %v3576
    %v3994 = vunpack.c.l.b16 %v3577
    %v3995 = vunpack.c.h.b16 %v3577
    %v3996 = vunpack.c.l.b16 %v3578
    %v3997 = vunpack.c.h.b16 %v3578
    %v3998 = vunpack.c.l.b16 %v3579
    %v3999 = vunpack.c.h.b16 %v3579
    %v4000 = vunpack.c.l.b16 %v3580
    %v4001 = vunpack.c.h.b16 %v3580
    %v4002 = vunpack.c.l.b16 %v3581
    %v4003 = vunpack.c.h.b16 %v3581
    %v4004 = vunpack.c.l.b16 %v3582
    %v4005 = vunpack.c.h.b16 %v3582
    %v4006 = vunpack.c.l.b16 %v3583
    %v4007 = vunpack.c.h.b16 %v3583
    %v4008 = vunpack.c.l.b16 %v3584
    %v4009 = vunpack.c.h.b16 %v3584
    %v4010 = vunpack.c.l.b16 %v3585
    %v4011 = vunpack.c.h.b16 %v3585
    %v4012 = vunpack.c.l.b16 %v3586
    %v4013 = vunpack.c.h.b16 %v3586
    %v4014 = vunpack.c.l.b16 %v3587
    %v4015 = vunpack.c.h.b16 %v3587
    %v4016 = vunpack.c.l.b16 %v3588
    %v4017 = vunpack.c.h.b16 %v3588
    %v4018 = vunpack.c.l.b16 %v3589
    %v4019 = vunpack.c.h.b16 %v3589
    %v4020 = vunpack.c.l.b16 %v3590
    %v4021 = vunpack.c.h.b16 %v3590
    %v4022 = vunpack.c.l.b16 %v3591
    %v4023 = vunpack.c.h.b16 %v3591
    %v4024 = vunpack.c.l.b16 %v3592
    %v4025 = vunpack.c.h.b16 %v3592
    %v4026 = vunpack.c.l.b16 %v3593
    %v4027 = vunpack.c.h.b16 %v3593
    %v4028 = vunpack.c.l.b16 %v3594
    %v4029 = vunpack.c.h.b16 %v3594
    %v4030 = vunpack.c.l.b16 %v3595
    %v4031 = vunpack.c.h.b16 %v3595
    %v4032 = vunpack.c.l.b16 %v3596
    %v4033 = vunpack.c.h.b16 %v3596
    %v4034 = vunpack.c.l.b16 %v3597
    %v4035 = vunpack.c.h.b16 %v3597
    %v4036 = vunpack.c.l.b16 %v3598
    %v4037 = vunpack.c.h.b16 %v3598
    %v4038 = vunpack.c.l.b16 %v3599
    %v4039 = vunpack.c.h.b16 %v3599
    %v4040 = vunpack.c.l.b16 %v3600
    %v4041 = vunpack.c.h.b16 %v3600
    %v4042 = vunpack.c.l.b16 %v3601
    %v4043 = vunpack.c.h.b16 %v3601
    %v4044 = vunpack.c.l.b16 %v3602
    %v4045 = vunpack.c.h.b16 %v3602
    %v4046 = vunpack.c.l.b16 %v3603
    %v4047 = vunpack.c.h.b16 %v3603
    %v4048 = vunpack.c.l.b16 %v3604
    %v4049 = vunpack.c.h.b16 %v3604
    %v4050 = vunpack.c.l.b16 %v3605
    %v4051 = vunpack.c.h.b16 %v3605
    %v4052 = vunpack.c.l.b16 %v3606
    %v4053 = vunpack.c.h.b16 %v3606
    %v4054 = vunpack.c.l.b16 %v3607
    %v4055 = vunpack.c.h.b16 %v3607
    %v4056 = vunpack.c.l.b16 %v3608
    %v4057 = vunpack.c.h.b16 %v3608
    %v4058 = vunpack.c.l.b16 %v3609
    %v4059 = vunpack.c.h.b16 %v3609
    %v4060 = vunpack.c.l.b16 %v3610
    %v4061 = vunpack.c.h.b16 %v3610
    %v4062 = vunpack.c.l.b16 %v3611
    %v4063 = vunpack.c.h.b16 %v3611
    %v4064 = vunpack.c.l.b16 %v3612
    %v4065 = vunpack.c.h.b16 %v3612
    %v4066 = vunpack.c.l.b16 %v3613
    %v4067 = vunpack.c.h.b16 %v3613
    %v4068 = vunpack.c.l.b16 %v3614
    %v4069 = vunpack.c.h.b16 %v3614
    %v4070 = vunpack.c.l.b16 %v3615
    %v4071 = vunpack.c.h.b16 %v3615
    %v4072 = vunpack.c.l.b16 %v3616
    %v4073 = vunpack.c.h.b16 %v3616
    %v4074 = vunpack.c.l.b16 %v3617
    %v4075 = vunpack.c.h.b16 %v3617
    %v4076 = vunpack.c.l.b16 %v3618
    %v4077 = vunpack.c.h.b16 %v3618
    %v4078 = vunpack.c.l.b16 %v3619
    %v4079 = vunpack.c.h.b16 %v3619
    %v4080 = vunpack.c.l.b16 %v3620
    %v4081 = vunpack.c.h.b16 %v3620
    %v4082 = vunpack.c.l.b16 %v3621
    %v4083 = vunpack.c.h.b16 %v3621
    %v4084 = vunpack.c.l.b16 %v3622
    %v4085 = vunpack.c.h.b16 %v3622
    %v4086 = vunpack.c.l.b16 %v3623
    %v4087 = vunpack.c.h.b16 %v3623
    %v4088 = vunpack.c.l.b16 %v3624
    %v4089 = vunpack.c.h.b16 %v3624
    %v4090 = vunpack.c.l.b16 %v3625
    %v4091 = vunpack.c.h.b16 %v3625
    %v4092 = vunpack.c.l.b16 %v3626
    %v4093 = vunpack.c.h.b16 %v3626
    %v4094 = vunpack.c.l.b16 %v3627
    %v4095 = vunpack.c.h.b16 %v3627
    %v4096 = vunpack.c.l.b16 %v3628
    %v4097 = vunpack.c.h.b16 %v3628
    %v4098 = vunpack.c.l.b16 %v3629
    %v4099 = vunpack.c.h.b16 %v3629
    %v4100 = vunpack.c.l.b16 %v3630
    %v4101 = vunpack.c.h.b16 %v3630
    %v4102 = vunpack.c.l.b16 %v3631
    %v4103 = vunpack.c.h.b16 %v3631
    %v4104 = vunpack.c.l.b16 %v3632
    %v4105 = vunpack.c.h.b16 %v3632
    %v4106 = vunpack.c.l.b16 %v3633
    %v4107 = vunpack.c.h.b16 %v3633
    %v4108 = vunpack.c.l.b16 %v3634
    %v4109 = vunpack.c.h.b16 %v3634
    %v4110 = vunpack.c.l.b16 %v3635
    %v4111 = vunpack.c.h.b16 %v3635
    %v4112 = vunpack.c.l.b16 %v3636
    %v4113 = vunpack.c.h.b16 %v3636
    %v4114 = vunpack.c.l.b16 %v3637
    %v4115 = vunpack.c.h.b16 %v3637
    %v4116 = vunpack.c.l.b16 %v3638
    %v4117 = vunpack.c.h.b16 %v3638
    %v4118 = vunpack.c.l.b16 %v3639
    %v4119 = vunpack.c.h.b16 %v3639
    %v4120 = vunpack.c.l.b16 %v3640
    %v4121 = vunpack.c.h.b16 %v3640
    %v4122 = vunpack.c.l.b16 %v3641
    %v4123 = vunpack.c.h.b16 %v3641
    %v4124 = vunpack.c.l.b16 %v3642
    %v4125 = vunpack.c.h.b16 %v3642
    %v4126 = vunpack.c.l.b16 %v3643
    %v4127 = vunpack.c.h.b16 %v3643
    %v4128 = vunpack.c.l.b16 %v3644
    %v4129 = vunpack.c.h.b16 %v3644
    %v4130 = vunpack.c.l.b16 %v3645
    %v4131 = vunpack.c.h.b16 %v3645
    %v4132 = vunpack.c.l.b16 %v3646
    %v4133 = vunpack.c.h.b16 %v3646
    %v4134 = vunpack.c.l.b16 %v3647
    %v4135 = vunpack.c.h.b16 %v3647
    %v4136 = vunpack.c.l.b16 %v3648
    %v4137 = vunpack.c.h.b16 %v3648
    %v4138 = vunpack.c.l.b16 %v3649
    %v4139 = vunpack.c.h.b16 %v3649
    %v4140 = vunpack.c.l.b16 %v3650
    %v4141 = vunpack.c.h.b16 %v3650
    %v4142 = vunpack.c.l.b16 %v3651
    %v4143 = vunpack.c.h.b16 %v3651
    %v4144 = vunpack.c.l.b16 %v3652
    %v4145 = vunpack.c.h.b16 %v3652
    %v4146 = vunpack.c.l.b16 %v3653
    %v4147 = vunpack.c.h.b16 %v3653
    %v4148 = vunpack.c.l.b16 %v3654
    %v4149 = vunpack.c.h.b16 %v3654
    %v4150 = vunpack.c.l.b16 %v3655
    %v4151 = vunpack.c.h.b16 %v3655
    %v4152 = vunpack.c.l.b16 %v3656
    %v4153 = vunpack.c.h.b16 %v3656
    %v4154 = vunpack.c.l.b16 %v3657
    %v4155 = vunpack.c.h.b16 %v3657
    %v4156 = vunpack.c.l.b16 %v3658
    %v4157 = vunpack.c.h.b16 %v3658
    %v4158 = vunpack.c.l.b16 %v3659
    %v4159 = vunpack.c.h.b16 %v3659
    %v4160 = vunpack.c.l.b16 %v3660
    %v4161 = vunpack.c.h.b16 %v3660
    %v4162 = vunpack.c.l.b16 %v3661
    %v4163 = vunpack.c.h.b16 %v3661
    %v4164 = vunpack.c.l.b16 %v3662
    %v4165 = vunpack.c.h.b16 %v3662
    %v4166 = vunpack.c.l.b16 %v3663
    %v4167 = vunpack.c.h.b16 %v3663
    %v4168 = vunpack.c.l.b16 %v3664
    %v4169 = vunpack.c.h.b16 %v3664
    %v4170 = vunpack.c.l.b16 %v3665
    %v4171 = vunpack.c.h.b16 %v3665
    %v4172 = vunpack.c.l.b16 %v3666
    %v4173 = vunpack.c.h.b16 %v3666
    %v4174 = vunpack.c.l.b16 %v3667
    %v4175 = vunpack.c.h.b16 %v3667
    %v4176 = vunpack.c.l.b16 %v3668
    %v4177 = vunpack.c.h.b16 %v3668
    %v4178 = vunpack.c.l.b16 %v3669
    %v4179 = vunpack.c.h.b16 %v3669
    %v4180 = vunpack.c.l.b16 %v3670
    %v4181 = vunpack.c.h.b16 %v3670
    %v4182 = vunpack.c.l.b16 %v3671
    %v4183 = vunpack.c.h.b16 %v3671
    %v4184 = vunpack.c.l.b16 %v3672
    %v4185 = vunpack.c.h.b16 %v3672
    %v4186 = vunpack.c.l.b16 %v3673
    %v4187 = vunpack.c.h.b16 %v3673
    %v4188 = vunpack.c.l.b16 %v3674
    %v4189 = vunpack.c.h.b16 %v3674
    %v4190 = vunpack.c.l.b16 %v3675
    %v4191 = vunpack.c.h.b16 %v3675
    %v4192 = vunpack.c.l.b16 %v3676
    %v4193 = vunpack.c.h.b16 %v3676
    %v4194 = vunpack.c.l.b16 %v3677
    %v4195 = vunpack.c.h.b16 %v3677
    %v4196 = vunpack.c.l.b16 %v3678
    %v4197 = vunpack.c.h.b16 %v3678
    %v4198 = vunpack.c.l.b16 %v3679
    %v4199 = vunpack.c.h.b16 %v3679
    %v4200 = vunpack.c.l.b16 %v3680
    %v4201 = vunpack.c.h.b16 %v3680
    %v4202 = vunpack.c.l.b16 %v3681
    %v4203 = vunpack.c.h.b16 %v3681
    %v4204 = vunpack.c.l.b16 %v3682
    %v4205 = vunpack.c.h.b16 %v3682
    %v4206 = vunpack.c.l.b16 %v3683
    %v4207 = vunpack.c.h.b16 %v3683
    %v4208 = vunpack.c.l.b16 %v3684
    %v4209 = vunpack.c.h.b16 %v3684
    %v4210 = vunpack.c.l.b16 %v3685
    %v4211 = vunpack.c.h.b16 %v3685
    %v4212 = vunpack.c.l.b16 %v3686
    %v4213 = vunpack.c.h.b16 %v3686
    %v4214 = vunpack.c.l.b16 %v3687
    %v4215 = vunpack.c.h.b16 %v3687
    %v4216 = vunpack.c.l.b16 %v3688
    %v4217 = vunpack.c.h.b16 %v3688
    %v4218 = vunpack.c.l.b16 %v3689
    %v4219 = vunpack.c.h.b16 %v3689
    %v4220 = vunpack.c.l.b16 %v3690
    %v4221 = vunpack.c.h.b16 %v3690
    %v4222 = vunpack.c.l.b16 %v3691
    %v4223 = vunpack.c.h.b16 %v3691
    %v4224 = vunpack.c.l.b16 %v3692
    %v4225 = vunpack.c.h.b16 %v3692
    %v4226 = vunpack.c.l.b16 %v3693
    %v4227 = vunpack.c.h.b16 %v3693
    %v4228 = vunpack.c.l.b16 %v3694
    %v4229 = vunpack.c.h.b16 %v3694
    %v4230 = vunpack.c.l.b16 %v3695
    %v4231 = vunpack.c.h.b16 %v3695
    %v4232 = vunpack.c.l.b16 %v3696
    %v4233 = vunpack.c.h.b16 %v3696
    %v4234 = vunpack.c.l.b16 %v3697
    %v4235 = vunpack.c.h.b16 %v3697
    %v4236 = vunpack.c.l.b16 %v3698
    %v4237 = vunpack.c.h.b16 %v3698
    %v4238 = vunpack.c.l.b16 %v3699
    %v4239 = vunpack.c.h.b16 %v3699
    %v4240 = vunpack.c.l.b16 %v3700
    %v4241 = vunpack.c.h.b16 %v3700
    %v4242 = vunpack.c.l.b16 %v3701
    %v4243 = vunpack.c.h.b16 %v3701
    %v4244 = vunpack.c.l.b16 %v3702
    %v4245 = vunpack.c.h.b16 %v3702
    %v4246 = vunpack.c.l.b16 %v3703
    %v4247 = vunpack.c.h.b16 %v3703
    %v4248 = vunpack.c.l.b16 %v3704
    %v4249 = vunpack.c.h.b16 %v3704
    %v4250 = vunpack.c.l.b16 %v3705
    %v4251 = vunpack.c.h.b16 %v3705
    %v4252 = vunpack.c.l.b16 %v3706
    %v4253 = vunpack.c.h.b16 %v3706
    %v4254 = vunpack.c.l.b16 %v3707
    %v4255 = vunpack.c.h.b16 %v3707
    %v4256 = vunpack.c.l.b16 %v3708
    %v4257 = vunpack.c.h.b16 %v3708
    %v4258 = vunpack.c.l.b16 %v3709
    %v4259 = vunpack.c.h.b16 %v3709
    %v4260 = vunpack.c.l.b16 %v3710
    %v4261 = vunpack.c.h.b16 %v3710
    %v4262 = vunpack.c.l.b16 %v3711
    %v4263 = vunpack.c.h.b16 %v3711
    %v4264 = vunpack.c.l.b16 %v3712
    %v4265 = vunpack.c.h.b16 %v3712
    %v4266 = vunpack.c.l.b16 %v3713
    %v4267 = vunpack.c.h.b16 %v3713
    %v4268 = vunpack.c.l.b16 %v3714
    %v4269 = vunpack.c.h.b16 %v3714
    %v4270 = vunpack.c.l.b16 %v3715
    %v4271 = vunpack.c.h.b16 %v3715
    %v4272 = vunpack.c.l.b16 %v3716
    %v4273 = vunpack.c.h.b16 %v3716
    %v4274 = vunpack.c.l.b16 %v3717
    %v4275 = vunpack.c.h.b16 %v3717
    %v4276 = vunpack.c.l.b16 %v3718
    %v4277 = vunpack.c.h.b16 %v3718
    %v4278 = vunpack.c.l.b16 %v3719
    %v4279 = vunpack.c.h.b16 %v3719
    %v4280 = vunpack.c.l.b16 %v3720
    %v4281 = vunpack.c.h.b16 %v3720
    %v4282 = vunpack.c.l.b16 %v3721
    %v4283 = vunpack.c.h.b16 %v3721
    %v4284 = vunpack.c.l.b16 %v3722
    %v4285 = vunpack.c.h.b16 %v3722
    %v4286 = vunpack.c.l.b16 %v3723
    %v4287 = vunpack.c.h.b16 %v3723
    %v4288 = vunpack.c.l.b16 %v3724
    %v4289 = vunpack.c.h.b16 %v3724
    %v4290 = vunpack.c.l.b16 %v3725
    %v4291 = vunpack.c.h.b16 %v3725
    %v4292 = vunpack.c.l.b16 %v3726
    %v4293 = vunpack.c.h.b16 %v3726
    %v4294 = vunpack.c.l.b16 %v3727
    %v4295 = vunpack.c.h.b16 %v3727
    %v4296 = vunpack.c.l.b16 %v3728
    %v4297 = vunpack.c.h.b16 %v3728
    %v4298 = vunpack.c.l.b16 %v3729
    %v4299 = vunpack.c.h.b16 %v3729
    %v4300 = vunpack.c.l.b16 %v3730
    %v4301 = vunpack.c.h.b16 %v3730
    %v4302 = vunpack.c.l.b16 %v3731
    %v4303 = vunpack.c.h.b16 %v3731
    %v4304 = vunpack.c.l.b16 %v3732
    %v4305 = vunpack.c.h.b16 %v3732
    %v4306 = vunpack.c.l.b16 %v3733
    %v4307 = vunpack.c.h.b16 %v3733
    %v4308 = vunpack.c.l.b16 %v3734
    %v4309 = vunpack.c.h.b16 %v3734
    %v4310 = vunpack.c.l.b16 %v3735
    %v4311 = vunpack.c.h.b16 %v3735
    %v4312 = vunpack.c.l.b16 %v3736
    %v4313 = vunpack.c.h.b16 %v3736
    %v4314 = vunpack.c.l.b16 %v3737
    %v4315 = vunpack.c.h.b16 %v3737
    %v4316 = vunpack.c.l.b16 %v3738
    %v4317 = vunpack.c.h.b16 %v3738
    %v4318 = vunpack.c.l.b16 %v3739
    %v4319 = vunpack.c.h.b16 %v3739
    %v4320 = vunpack.c.l.b16 %v3740
    %v4321 = vunpack.c.h.b16 %v3740
    %v4322 = vunpack.c.l.b16 %v3741
    %v4323 = vunpack.c.h.b16 %v3741
    %v4324 = vunpack.c.l.b16 %v3742
    %v4325 = vunpack.c.h.b16 %v3742
    %v4326 = vunpack.c.l.b16 %v3743
    %v4327 = vunpack.c.h.b16 %v3743
    %v4328 = vunpack.c.l.b16 %v3744
    %v4329 = vunpack.c.h.b16 %v3744
    %v4330 = vunpack.c.l.b16 %v3745
    %v4331 = vunpack.c.h.b16 %v3745
    %v4332 = vunpack.c.l.b16 %v3746
    %v4333 = vunpack.c.h.b16 %v3746
    %v4334 = vunpack.c.l.b16 %v3747
    %v4335 = vunpack.c.h.b16 %v3747
    %v4336 = vunpack.c.l.b16 %v3748
    %v4337 = vunpack.c.h.b16 %v3748
    %v4338 = vunpack.c.l.b16 %v3749
    %v4339 = vunpack.c.h.b16 %v3749
    %v4340 = vunpack.c.l.b16 %v3750
    %v4341 = vunpack.c.h.b16 %v3750
    %v4342 = vunpack.c.l.b16 %v3751
    %v4343 = vunpack.c.h.b16 %v3751
    %v4344 = vunpack.c.l.b16 %v3752
    %v4345 = vunpack.c.h.b16 %v3752
    %v4346 = vunpack.c.l.b16 %v3753
    %v4347 = vunpack.c.h.b16 %v3753
    %v4348 = vunpack.c.l.b16 %v3754
    %v4349 = vunpack.c.h.b16 %v3754
    %v4350 = vunpack.c.l.b16 %v3755
    %v4351 = vunpack.c.h.b16 %v3755
    %v4352 = vunpack.c.l.b16 %v3756
    %v4353 = vunpack.c.h.b16 %v3756
    %v4354 = vunpack.c.l.b16 %v3757
    %v4355 = vunpack.c.h.b16 %v3757
    %v4356 = vunpack.c.l.b16 %v3758
    %v4357 = vunpack.c.h.b16 %v3758
    %v4358 = vunpack.c.l.b16 %v3759
    %v4359 = vunpack.c.h.b16 %v3759
    %v4360 = vunpack.c.l.b16 %v3760
    %v4361 = vunpack.c.h.b16 %v3760
    %v4362 = vunpack.c.l.b16 %v3761
    %v4363 = vunpack.c.h.b16 %v3761
    %v4364 = vunpack.c.l.b16 %v3762
    %v4365 = vunpack.c.h.b16 %v3762
    %v4366 = vunpack.c.l.b16 %v3763
    %v4367 = vunpack.c.h.b16 %v3763
    %v4368 = vunpack.c.l.b16 %v3764
    %v4369 = vunpack.c.h.b16 %v3764
    %v4370 = vunpack.c.l.b16 %v3765
    %v4371 = vunpack.c.h.b16 %v3765
    %v4372 = vunpack.c.l.b16 %v3766
    %v4373 = vunpack.c.h.b16 %v3766
    %v4374 = vunpack.c.l.b16 %v3767
    %v4375 = vunpack.c.h.b16 %v3767
    %v4376 = vpack.c.b16 %v3998, %v3992
    %v4377 = vpack.c.b16 %v3999, %v3993
    %v4378 = vpack.c.b16 %v4000, %v3994
    %v4379 = vpack.c.b16 %v4001, %v3995
    %v4380 = vpack.c.b16 %v4002, %v3996
    %v4381 = vpack.c.b16 %v4003, %v3997
    %v4382 = vpack.c.b16 %v4010, %v4004
    %v4383 = vpack.c.b16 %v4011, %v4005
    %v4384 = vpack.c.b16 %v4012, %v4006
    %v4385 = vpack.c.b16 %v4013, %v4007
    %v4386 = vpack.c.b16 %v4014, %v4008
    %v4387 = vpack.c.b16 %v4015, %v4009
    %v4388 = vpack.c.b16 %v4022, %v4016
    %v4389 = vpack.c.b16 %v4023, %v4017
    %v4390 = vpack.c.b16 %v4024, %v4018
    %v4391 = vpack.c.b16 %v4025, %v4019
    %v4392 = vpack.c.b16 %v4026, %v4020
    %v4393 = vpack.c.b16 %v4027, %v4021
    %v4394 = vpack.c.b16 %v4034, %v4028
    %v4395 = vpack.c.b16 %v4035, %v4029
    %v4396 = vpack.c.b16 %v4036, %v4030
    %v4397 = vpack.c.b16 %v4037, %v4031
    %v4398 = vpack.c.b16 %v4038, %v4032
    %v4399 = vpack.c.b16 %v4039, %v4033
    %v4400 = vpack.c.b16 %v4046, %v4040
    %v4401 = vpack.c.b16 %v4047, %v4041
    %v4402 = vpack.c.b16 %v4048, %v4042
    %v4403 = vpack.c.b16 %v4049, %v4043
    %v4404 = vpack.c.b16 %v4050, %v4044
    %v4405 = vpack.c.b16 %v4051, %v4045
    %v4406 = vpack.c.b16 %v4058, %v4052
    %v4407 = vpack.c.b16 %v4059, %v4053
    %v4408 = vpack.c.b16 %v4060, %v4054
    %v4409 = vpack.c.b16 %v4061, %v4055
    %v4410 = vpack.c.b16 %v4062, %v4056
    %v4411 = vpack.c.b16 %v4063, %v4057
    %v4412 = vpack.c.b16 %v4070, %v4064
    %v4413 = vpack.c.b16 %v4071, %v4065
    %v4414 = vpack.c.b16 %v4072, %v4066
    %v4415 = vpack.c.b16 %v4073, %v4067
    %v4416 = vpack.c.b16 %v4074, %v4068
    %v4417 = vpack.c.b16 %v4075, %v4069
    %v4418 = vpack.c.b16 %v4082, %v4076
    %v4419 = vpack.c.b16 %v4083, %v4077
    %v4420 = vpack.c.b16 %v4084, %v4078
    %v4421 = vpack.c.b16 %v4085, %v4079
    %v4422 = vpack.c.b16 %v4086, %v4080
    %v4423 = vpack.c.b16 %v4087, %v4081
    %v4424 = vpack.c.b16 %v4094, %v4088
    %v4425 = vpack.c.b16 %v4095, %v4089
    %v4426 = vpack.c.b16 %v4096, %v4090
    %v4427 = vpack.c.b16 %v4097, %v4091
    %v4428 = vpack.c.b16 %v4098, %v4092
    %v4429 = vpack.c.b16 %v4099, %v4093
    %v4430 = vpack.c.b16 %v4106, %v4100
    %v4431 = vpack.c.b16 %v4107, %v4101
    %v4432 = vpack.c.b16 %v4108, %v4102
    %v4433 = vpack.c.b16 %v4109, %v4103
    %v4434 = vpack.c.b16 %v4110, %v4104
    %v4435 = vpack.c.b16 %v4111, %v4105
    %v4436 = vpack.c.b16 %v4118, %v4112
    %v4437 = vpack.c.b16 %v4119, %v4113
    %v4438 = vpack.c.b16 %v4120, %v4114
    %v4439 = vpack.c.b16 %v4121, %v4115
    %v4440 = vpack.c.b16 %v4122, %v4116
    %v4441 = vpack.c.b16 %v4123, %v4117
    %v4442 = vpack.c.b16 %v4130, %v4124
    %v4443 = vpack.c.b16 %v4131, %v4125
    %v4444 = vpack.c.b16 %v4132, %v4126
    %v4445 = vpack.c.b16 %v4133, %v4127
    %v4446 = vpack.c.b16 %v4134, %v4128
    %v4447 = vpack.c.b16 %v4135, %v4129
    %v4448 = vpack.c.b16 %v4142, %v4136
    %v4449 = vpack.c.b16 %v4143, %v4137
    %v4450 = vpack.c.b16 %v4144, %v4138
    %v4451 = vpack.c.b16 %v4145, %v4139
    %v4452 = vpack.c.b16 %v4146, %v4140
    %v4453 = vpack.c.b16 %v4147, %v4141
    %v4454 = vpack.c.b16 %v4154, %v4148
    %v4455 = vpack.c.b16 %v4155, %v4149
    %v4456 = vpack.c.b16 %v4156, %v4150
    %v4457 = vpack.c.b16 %v4157, %v4151
    %v4458 = vpack.c.b16 %v4158, %v4152
    %v4459 = vpack.c.b16 %v4159, %v4153
    %v4460 = vpack.c.b16 %v4166, %v4160
    %v4461 = vpack.c.b16 %v4167, %v4161
    %v4462 = vpack.c.b16 %v4168, %v4162
    %v4463 = vpack.c.b16 %v4169, %v4163
    %v4464 = vpack.c.b16 %v4170, %v4164
    %v4465 = vpack.c.b16 %v4171, %v4165
    %v4466 = vpack.c.b16 %v4178, %v4172
    %v4467 = vpack.c.b16 %v4179, %v4173
    %v4468 = vpack.c.b16 %v4180, %v4174
    %v4469 = vpack.c.b16 %v4181, %v4175
    %v4470 = vpack.c.b16 %v4182, %v4176
    %v4471 = vpack.c.b16 %v4183, %v4177
    %v4472 = vpack.c.b16 %v4190, %v4184
    %v4473 = vpack.c.b16 %v4191, %v4185
    %v4474 = vpack.c.b16 %v4192, %v4186
    %v4475 = vpack.c.b16 %v4193, %v4187
    %v4476 = vpack.c.b16 %v4194, %v4188
    %v4477 = vpack.c.b16 %v4195, %v4189
    %v4478 = vpack.c.b16 %v4202, %v4196
    %v4479 = vpack.c.b16 %v4203, %v4197
    %v4480 = vpack.c.b16 %v4204, %v4198
    %v4481 = vpack.c.b16 %v4205, %v4199
    %v4482 = vpack.c.b16 %v4206, %v4200
    %v4483 = vpack.c.b16 %v4207, %v4201
    %v4484 = vpack.c.b16 %v4214, %v4208
    %v4485 = vpack.c.b16 %v4215, %v4209
    %v4486 = vpack.c.b16 %v4216, %v4210
    %v4487 = vpack.c.b16 %v4217, %v4211
    %v4488 = vpack.c.b16 %v4218, %v4212
    %v4489 = vpack.c.b16 %v4219, %v4213
    %v4490 = vpack.c.b16 %v4226, %v4220
    %v4491 = vpack.c.b16 %v4227, %v4221
    %v4492 = vpack.c.b16 %v4228, %v4222
    %v4493 = vpack.c.b16 %v4229, %v4223
    %v4494 = vpack.c.b16 %v4230, %v4224
    %v4495 = vpack.c.b16 %v4231, %v4225
    %v4496 = vpack.c.b16 %v4238, %v4232
    %v4497 = vpack.c.b16 %v4239, %v4233
    %v4498 = vpack.c.b16 %v4240, %v4234
    %v4499 = vpack.c.b16 %v4241, %v4235
    %v4500 = vpack.c.b16 %v4242, %v4236
    %v4501 = vpack.c.b16 %v4243, %v4237
    %v4502 = vpack.c.b16 %v4250, %v4244
    %v4503 = vpack.c.b16 %v4251, %v4245
    %v4504 = vpack.c.b16 %v4252, %v4246
    %v4505 = vpack.c.b16 %v4253, %v4247
    %v4506 = vpack.c.b16 %v4254, %v4248
    %v4507 = vpack.c.b16 %v4255, %v4249
    %v4508 = vpack.c.b16 %v4262, %v4256
    %v4509 = vpack.c.b16 %v4263, %v4257
    %v4510 = vpack.c.b16 %v4264, %v4258
    %v4511 = vpack.c.b16 %v4265, %v4259
    %v4512 = vpack.c.b16 %v4266, %v4260
    %v4513 = vpack.c.b16 %v4267, %v4261
    %v4514 = vpack.c.b16 %v4274, %v4268
    %v4515 = vpack.c.b16 %v4275, %v4269
    %v4516 = vpack.c.b16 %v4276, %v4270
    %v4517 = vpack.c.b16 %v4277, %v4271
    %v4518 = vpack.c.b16 %v4278, %v4272
    %v4519 = vpack.c.b16 %v4279, %v4273
    %v4520 = vpack.c.b16 %v4286, %v4280
    %v4521 = vpack.c.b16 %v4287, %v4281
    %v4522 = vpack.c.b16 %v4288, %v4282
    %v4523 = vpack.c.b16 %v4289, %v4283
    %v4524 = vpack.c.b16 %v4290, %v4284
    %v4525 = vpack.c.b16 %v4291, %v4285
    %v4526 = vpack.c.b16 %v4298, %v4292
    %v4527 = vpack.c.b16 %v4299, %v4293
    %v4528 = vpack.c.b16 %v4300, %v4294
    %v4529 = vpack.c.b16 %v4301, %v4295
    %v4530 = vpack.c.b16 %v4302, %v4296
    %v4531 = vpack.c.b16 %v4303, %v4297
    %v4532 = vpack.c.b16 %v4310, %v4304
    %v4533 = vpack.c.b16 %v4311, %v4305
    %v4534 = vpack.c.b16 %v4312, %v4306
    %v4535 = vpack.c.b16 %v4313, %v4307
    %v4536 = vpack.c.b16 %v4314, %v4308
    %v4537 = vpack.c.b16 %v4315, %v4309
    %v4538 = vpack.c.b16 %v4322, %v4316
    %v4539 = vpack.c.b16 %v4323, %v4317
    %v4540 = vpack.c.b16 %v4324, %v4318
    %v4541 = vpack.c.b16 %v4325, %v4319
    %v4542 = vpack.c.b16 %v4326, %v4320
    %v4543 = vpack.c.b16 %v4327, %v4321
    %v4544 = vpack.c.b16 %v4334, %v4328
    %v4545 = vpack.c.b16 %v4335, %v4329
    %v4546 = vpack.c.b16 %v4336, %v4330
    %v4547 = vpack.c.b16 %v4337, %v4331
    %v4548 = vpack.c.b16 %v4338, %v4332
    %v4549 = vpack.c.b16 %v4339, %v4333
    %v4550 = vpack.c.b16 %v4346, %v4340
    %v4551 = vpack.c.b16 %v4347, %v4341
    %v4552 = vpack.c.b16 %v4348, %v4342
    %v4553 = vpack.c.b16 %v4349, %v4343
    %v4554 = vpack.c.b16 %v4350, %v4344
    %v4555 = vpack.c.b16 %v4351, %v4345
    %v4556 = vpack.c.b16 %v4358, %v4352
    %v4557 = vpack.c.b16 %v4359, %v4353
    %v4558 = vpack.c.b16 %v4360, %v4354
    %v4559 = vpack.c.b16 %v4361, %v4355
    %v4560 = vpack.c.b16 %v4362, %v4356
    %v4561 = vpack.c.b16 %v4363, %v4357
    %v4562 = vpack.c.b16 %v4370, %v4364
    %v4563 = vpack.c.b16 %v4371, %v4365
    %v4564 = vpack.c.b16 %v4372, %v4366
    %v4565 = vpack.c.b16 %v4373, %v4367
    %v4566 = vpack.c.b16 %v4374, %v4368
    %v4567 = vpack.c.b16 %v4375, %v4369
    %4760 = vmatprep.subr.bf16.mxu0 %v4419
    %4761 = vmatpush1.bf16.msra.mxu0 %v4418
    %4762 = vmatprep.subr.bf16.mxu0 %v4413
    %4763 = vmatpush1.bf16.msra.mxu0 %v4412
    %4764 = vmatprep.subr.bf16.mxu0 %v4407
    %4765 = vmatpush1.bf16.msra.mxu0 %v4406
    %4766 = vmatprep.subr.bf16.mxu0 %v4401
    %4767 = vmatpush1.bf16.msra.mxu0 %v4400
    %4768 = vmatprep.subr.bf16.mxu0 %v4395
    %4769 = vmatpush1.bf16.msra.mxu0 %v4394
    %4770 = vmatprep.subr.bf16.mxu0 %v4389
    %4771 = vmatpush1.bf16.msra.mxu0 %v4388
    %4772 = vmatprep.subr.bf16.mxu0 %v4383
    %4773 = vmatpush1.bf16.msra.mxu0 %v4382
    %4774 = vmatprep.subr.bf16.mxu0 %v4377
    %4775 = vmatpush1.bf16.msra.mxu0 %v4376
    %4776 = vmatprep.subr.bf16.mxu0 %v4467
    %4777 = vmatpush2.bf16.msra.mxu0 %v4466
    %4778 = vmatprep.subr.bf16.mxu0 %v4461
    %4779 = vmatpush2.bf16.msra.mxu0 %v4460
    %4780 = vmatprep.subr.bf16.mxu0 %v4455
    %4781 = vmatpush2.bf16.msra.mxu0 %v4454
    %4782 = vmatprep.subr.bf16.mxu0 %v4449
    %4783 = vmatpush2.bf16.msra.mxu0 %v4448
    %4784 = vmatprep.subr.bf16.mxu0 %v4443
    %4785 = vmatpush2.bf16.msra.mxu0 %v4442
    %4786 = vmatprep.subr.bf16.mxu0 %v4437
    %4787 = vmatpush2.bf16.msra.mxu0 %v4436
    %4788 = vmatprep.subr.bf16.mxu0 %v4431
    %4789 = vmatpush2.bf16.msra.mxu0 %v4430
    %4790 = vmatprep.subr.bf16.mxu0 %v4425
    %4791 = vmatpush2.bf16.msra.mxu0 %v4424
    %4792 = vmatprep.mubr.bf16.mxu0 %v3230
    %4793 = vmatmul.mubr.bf16.gmra.mxu0 %v3229
    %v4794 = vpop.f32.mrf.mxu0
    %v4795 = vadd.f32 %v3773, %v4794
    %v4796 = vpop.f32.mrf.mxu0
    %v4797 = vadd.f32 %v3777, %v4796
    %v4798 = vpop.f32.mrf.mxu0
    %v4799 = vpop.f32.mrf.mxu0
    %4800 = vdwg.mxu0
    %4801 = vmatprep.subr.bf16.mxu0 %v4515
    %4802 = vmatpush1.bf16.msra.mxu0 %v4514
    %4803 = vmatprep.subr.bf16.mxu0 %v4509
    %4804 = vmatpush1.bf16.msra.mxu0 %v4508
    %4805 = vmatprep.subr.bf16.mxu0 %v4503
    %4806 = vmatpush1.bf16.msra.mxu0 %v4502
    %4807 = vmatprep.subr.bf16.mxu0 %v4497
    %4808 = vmatpush1.bf16.msra.mxu0 %v4496
    %4809 = vmatprep.subr.bf16.mxu0 %v4491
    %4810 = vmatpush1.bf16.msra.mxu0 %v4490
    %4811 = vmatprep.subr.bf16.mxu0 %v4485
    %4812 = vmatpush1.bf16.msra.mxu0 %v4484
    %4813 = vmatprep.subr.bf16.mxu0 %v4479
    %4814 = vmatpush1.bf16.msra.mxu0 %v4478
    %4815 = vmatprep.subr.bf16.mxu0 %v4473
    %4816 = vmatpush1.bf16.msra.mxu0 %v4472
    %4817 = vmatprep.subr.bf16.mxu0 %v4563
    %4818 = vmatpush2.bf16.msra.mxu0 %v4562
    %4819 = vmatprep.subr.bf16.mxu0 %v4557
    %4820 = vmatpush2.bf16.msra.mxu0 %v4556
    %4821 = vmatprep.subr.bf16.mxu0 %v4551
    %4822 = vmatpush2.bf16.msra.mxu0 %v4550
    %4823 = vmatprep.subr.bf16.mxu0 %v4545
    %4824 = vmatpush2.bf16.msra.mxu0 %v4544
    %4825 = vmatprep.subr.bf16.mxu0 %v4539
    %4826 = vmatpush2.bf16.msra.mxu0 %v4538
    %4827 = vmatprep.subr.bf16.mxu0 %v4533
    %4828 = vmatpush2.bf16.msra.mxu0 %v4532
    %4829 = vmatprep.subr.bf16.mxu0 %v4527
    %4830 = vmatpush2.bf16.msra.mxu0 %v4526
    %4831 = vmatprep.subr.bf16.mxu0 %v4521
    %4832 = vmatpush2.bf16.msra.mxu0 %v4520
    %4833 = vmatprep.mubr.bf16.mxu0 %v3232
    %4834 = vmatmul.mubr.bf16.gmra.mxu0 %v3231
    %v4835 = vpop.f32.mrf.mxu0
    %v4836 = vadd.f32 %v4795, %v4835
    %v4837 = vpop.f32.mrf.mxu0
    %v4838 = vadd.f32 %v4797, %v4837
    %v4839 = vpop.f32.mrf.mxu0
    %v4840 = vpop.f32.mrf.mxu0
    %4841 = vdwg.mxu0
    %4842 = vmatprep.subr.bf16.mxu0 %v4421
    %4843 = vmatpush1.bf16.msra.mxu0 %v4420
    %4844 = vmatprep.subr.bf16.mxu0 %v4415
    %4845 = vmatpush1.bf16.msra.mxu0 %v4414
    %4846 = vmatprep.subr.bf16.mxu0 %v4409
    %4847 = vmatpush1.bf16.msra.mxu0 %v4408
    %4848 = vmatprep.subr.bf16.mxu0 %v4403
    %4849 = vmatpush1.bf16.msra.mxu0 %v4402
    %4850 = vmatprep.subr.bf16.mxu0 %v4397
    %4851 = vmatpush1.bf16.msra.mxu0 %v4396
    %4852 = vmatprep.subr.bf16.mxu0 %v4391
    %4853 = vmatpush1.bf16.msra.mxu0 %v4390
    %4854 = vmatprep.subr.bf16.mxu0 %v4385
    %4855 = vmatpush1.bf16.msra.mxu0 %v4384
    %4856 = vmatprep.subr.bf16.mxu0 %v4379
    %4857 = vmatpush1.bf16.msra.mxu0 %v4378
    %4858 = vmatprep.subr.bf16.mxu0 %v4469
    %4859 = vmatpush2.bf16.msra.mxu0 %v4468
    %4860 = vmatprep.subr.bf16.mxu0 %v4463
    %4861 = vmatpush2.bf16.msra.mxu0 %v4462
    %4862 = vmatprep.subr.bf16.mxu0 %v4457
    %4863 = vmatpush2.bf16.msra.mxu0 %v4456
    %4864 = vmatprep.subr.bf16.mxu0 %v4451
    %4865 = vmatpush2.bf16.msra.mxu0 %v4450
    %4866 = vmatprep.subr.bf16.mxu0 %v4445
    %4867 = vmatpush2.bf16.msra.mxu0 %v4444
    %4868 = vmatprep.subr.bf16.mxu0 %v4439
    %4869 = vmatpush2.bf16.msra.mxu0 %v4438
    %4870 = vmatprep.subr.bf16.mxu0 %v4433
    %4871 = vmatpush2.bf16.msra.mxu0 %v4432
    %4872 = vmatprep.subr.bf16.mxu0 %v4427
    %4873 = vmatpush2.bf16.msra.mxu0 %v4426
    %4874 = vmatprep.mubr.bf16.mxu0 %v3230
    %4875 = vmatmul.mubr.bf16.gmra.mxu0 %v3229
    %v4876 = vpop.f32.mrf.mxu0
    %v4877 = vadd.f32 %v3781, %v4876
    %v4878 = vpop.f32.mrf.mxu0
    %v4879 = vadd.f32 %v3785, %v4878
    %v4880 = vpop.f32.mrf.mxu0
    %v4881 = vpop.f32.mrf.mxu0
    %4882 = vdwg.mxu0
    %4883 = vmatprep.subr.bf16.mxu0 %v4517
    %4884 = vmatpush1.bf16.msra.mxu0 %v4516
    %4885 = vmatprep.subr.bf16.mxu0 %v4511
    %4886 = vmatpush1.bf16.msra.mxu0 %v4510
    %4887 = vmatprep.subr.bf16.mxu0 %v4505
    %4888 = vmatpush1.bf16.msra.mxu0 %v4504
    %4889 = vmatprep.subr.bf16.mxu0 %v4499
    %4890 = vmatpush1.bf16.msra.mxu0 %v4498
    %4891 = vmatprep.subr.bf16.mxu0 %v4493
    %4892 = vmatpush1.bf16.msra.mxu0 %v4492
    %4893 = vmatprep.subr.bf16.mxu0 %v4487
    %4894 = vmatpush1.bf16.msra.mxu0 %v4486
    %4895 = vmatprep.subr.bf16.mxu0 %v4481
    %4896 = vmatpush1.bf16.msra.mxu0 %v4480
    %4897 = vmatprep.subr.bf16.mxu0 %v4475
    %4898 = vmatpush1.bf16.msra.mxu0 %v4474
    %4899 = vmatprep.subr.bf16.mxu0 %v4565
    %4900 = vmatpush2.bf16.msra.mxu0 %v4564
    %4901 = vmatprep.subr.bf16.mxu0 %v4559
    %4902 = vmatpush2.bf16.msra.mxu0 %v4558
    %4903 = vmatprep.subr.bf16.mxu0 %v4553
    %4904 = vmatpush2.bf16.msra.mxu0 %v4552
    %4905 = vmatprep.subr.bf16.mxu0 %v4547
    %4906 = vmatpush2.bf16.msra.mxu0 %v4546
    %4907 = vmatprep.subr.bf16.mxu0 %v4541
    %4908 = vmatpush2.bf16.msra.mxu0 %v4540
    %4909 = vmatprep.subr.bf16.mxu0 %v4535
    %4910 = vmatpush2.bf16.msra.mxu0 %v4534
    %4911 = vmatprep.subr.bf16.mxu0 %v4529
    %4912 = vmatpush2.bf16.msra.mxu0 %v4528
    %4913 = vmatprep.subr.bf16.mxu0 %v4523
    %4914 = vmatpush2.bf16.msra.mxu0 %v4522
    %4915 = vmatprep.mubr.bf16.mxu0 %v3232
    %4916 = vmatmul.mubr.bf16.gmra.mxu0 %v3231
    %v4917 = vpop.f32.mrf.mxu0
    %v4918 = vadd.f32 %v4877, %v4917
    %v4919 = vpop.f32.mrf.mxu0
    %v4920 = vadd.f32 %v4879, %v4919
    %v4921 = vpop.f32.mrf.mxu0
    %v4922 = vpop.f32.mrf.mxu0
    %4923 = vdwg.mxu0
    %4924 = vmatprep.subr.bf16.mxu0 %v4423
    %4925 = vmatpush1.bf16.msra.mxu0 %v4422
    %4926 = vmatprep.subr.bf16.mxu0 %v4417
    %4927 = vmatpush1.bf16.msra.mxu0 %v4416
    %4928 = vmatprep.subr.bf16.mxu0 %v4411
    %4929 = vmatpush1.bf16.msra.mxu0 %v4410
    %4930 = vmatprep.subr.bf16.mxu0 %v4405
    %4931 = vmatpush1.bf16.msra.mxu0 %v4404
    %4932 = vmatprep.subr.bf16.mxu0 %v4399
    %4933 = vmatpush1.bf16.msra.mxu0 %v4398
    %4934 = vmatprep.subr.bf16.mxu0 %v4393
    %4935 = vmatpush1.bf16.msra.mxu0 %v4392
    %4936 = vmatprep.subr.bf16.mxu0 %v4387
    %4937 = vmatpush1.bf16.msra.mxu0 %v4386
    %4938 = vmatprep.subr.bf16.mxu0 %v4381
    %4939 = vmatpush1.bf16.msra.mxu0 %v4380
    %4940 = vmatprep.subr.bf16.mxu0 %v4471
    %4941 = vmatpush2.bf16.msra.mxu0 %v4470
    %4942 = vmatprep.subr.bf16.mxu0 %v4465
    %4943 = vmatpush2.bf16.msra.mxu0 %v4464
    %4944 = vmatprep.subr.bf16.mxu0 %v4459
    %4945 = vmatpush2.bf16.msra.mxu0 %v4458
    %4946 = vmatprep.subr.bf16.mxu0 %v4453
    %4947 = vmatpush2.bf16.msra.mxu0 %v4452
    %4948 = vmatprep.subr.bf16.mxu0 %v4447
    %4949 = vmatpush2.bf16.msra.mxu0 %v4446
    %4950 = vmatprep.subr.bf16.mxu0 %v4441
    %4951 = vmatpush2.bf16.msra.mxu0 %v4440
    %4952 = vmatprep.subr.bf16.mxu0 %v4435
    %4953 = vmatpush2.bf16.msra.mxu0 %v4434
    %4954 = vmatprep.subr.bf16.mxu0 %v4429
    %4955 = vmatpush2.bf16.msra.mxu0 %v4428
    %4956 = vmatprep.mubr.bf16.mxu0 %v3230
    %4957 = vmatmul.mubr.bf16.gmra.mxu0 %v3229
    %v4958 = vpop.f32.mrf.mxu0
    %v4959 = vadd.f32 %v3789, %v4958
    %v4960 = vpop.f32.mrf.mxu0
    %v4961 = vadd.f32 %v3793, %v4960
    %v4962 = vpop.f32.mrf.mxu0
    %v4963 = vpop.f32.mrf.mxu0
    %4964 = vdwg.mxu0
    %4965 = vmatprep.subr.bf16.mxu0 %v4519
    %4966 = vmatpush1.bf16.msra.mxu0 %v4518
    %4967 = vmatprep.subr.bf16.mxu0 %v4513
    %4968 = vmatpush1.bf16.msra.mxu0 %v4512
    %4969 = vmatprep.subr.bf16.mxu0 %v4507
    %4970 = vmatpush1.bf16.msra.mxu0 %v4506
    %4971 = vmatprep.subr.bf16.mxu0 %v4501
    %4972 = vmatpush1.bf16.msra.mxu0 %v4500
    %4973 = vmatprep.subr.bf16.mxu0 %v4495
    %4974 = vmatpush1.bf16.msra.mxu0 %v4494
    %4975 = vmatprep.subr.bf16.mxu0 %v4489
    %4976 = vmatpush1.bf16.msra.mxu0 %v4488
    %4977 = vmatprep.subr.bf16.mxu0 %v4483
    %4978 = vmatpush1.bf16.msra.mxu0 %v4482
    %4979 = vmatprep.subr.bf16.mxu0 %v4477
    %4980 = vmatpush1.bf16.msra.mxu0 %v4476
    %4981 = vmatprep.subr.bf16.mxu0 %v4567
    %4982 = vmatpush2.bf16.msra.mxu0 %v4566
    %4983 = vmatprep.subr.bf16.mxu0 %v4561
    %4984 = vmatpush2.bf16.msra.mxu0 %v4560
    %4985 = vmatprep.subr.bf16.mxu0 %v4555
    %4986 = vmatpush2.bf16.msra.mxu0 %v4554
    %4987 = vmatprep.subr.bf16.mxu0 %v4549
    %4988 = vmatpush2.bf16.msra.mxu0 %v4548
    %4989 = vmatprep.subr.bf16.mxu0 %v4543
    %4990 = vmatpush2.bf16.msra.mxu0 %v4542
    %4991 = vmatprep.subr.bf16.mxu0 %v4537
    %4992 = vmatpush2.bf16.msra.mxu0 %v4536
    %4993 = vmatprep.subr.bf16.mxu0 %v4531
    %4994 = vmatpush2.bf16.msra.mxu0 %v4530
    %4995 = vmatprep.subr.bf16.mxu0 %v4525
    %4996 = vmatpush2.bf16.msra.mxu0 %v4524
    %4997 = vmatprep.mubr.bf16.mxu0 %v3232
    %4998 = vmatmul.mubr.bf16.gmra.mxu0 %v3231
    %v4999 = vpop.f32.mrf.mxu0
    %v5000 = vadd.f32 %v4959, %v4999
    %v5001 = vpop.f32.mrf.mxu0
    %v5002 = vadd.f32 %v4961, %v5001
    %v5003 = vpop.f32.mrf.mxu0
    %v5004 = vpop.f32.mrf.mxu0
    %5005 = vdwg.mxu0
    %v5008 = vunpack.c.l.s4 1966171168
    %v5009 = vunpack.c.0.s8 %v5008
    %v5010 = vlaneseq
    %v5011 = vshrl.u32 %v5010, 7
    %v5012 = vsub.s32 %v5009, %v5011
    %v5013 = vrot.slane %v4836, %v5012
    %v5014 = vcombine.high %v5013, %v5013
    %v5016 = vunpack.c.l.s4 1966171168
    %v5017 = vunpack.c.0.s8 %v5016
    %v5018 = vlaneseq
    %v5019 = vshrl.u32 %v5018, 7
    %v5020 = vsub.s32 %v5017, %v5019
    %v5021 = vrot.slane %v5013, %v5020
    %v5023 = vunpack.c.l.s4 1966171168
    %v5024 = vunpack.c.0.s8 %v5023
    %v5025 = vlaneseq
    %v5026 = vshrl.u32 %v5025, 7
    %v5027 = vsub.s32 %v5024, %v5026
    %v5028 = vrot.slane %v5014, %v5027
    %v5033 = vunpack.c.l.s4 1966171168
    %v5034 = vunpack.c.0.s8 %v5033
    %v5035 = vlaneseq
    %v5036 = vshrl.u32 %v5035, 7
    %v5037 = vsub.s32 %v5034, %v5036
    %v5038 = vrot.slane %v4838, %v5037
    %v5039 = vcombine.high %v5038, %v5038
    %v5041 = vunpack.c.l.s4 1966171168
    %v5042 = vunpack.c.0.s8 %v5041
    %v5043 = vlaneseq
    %v5044 = vshrl.u32 %v5043, 7
    %v5045 = vsub.s32 %v5042, %v5044
    %v5046 = vrot.slane %v5038, %v5045
    %v5048 = vunpack.c.l.s4 1966171168
    %v5049 = vunpack.c.0.s8 %v5048
    %v5050 = vlaneseq
    %v5051 = vshrl.u32 %v5050, 7
    %v5052 = vsub.s32 %v5049, %v5051
    %v5053 = vrot.slane %v5039, %v5052
    %v5056 = vunpack.c.l.s4 1966171168
    %v5057 = vunpack.c.0.s8 %v5056
    %v5058 = vlaneseq
    %v5059 = vshrl.u32 %v5058, 7
    %v5060 = vsub.s32 %v5057, %v5059
    %v5061 = vrot.slane %v4918, %v5060
    %v5062 = vcombine.high %v5061, %v5061
    %v5064 = vunpack.c.l.s4 1966171168
    %v5065 = vunpack.c.0.s8 %v5064
    %v5066 = vlaneseq
    %v5067 = vshrl.u32 %v5066, 7
    %v5068 = vsub.s32 %v5065, %v5067
    %v5069 = vrot.slane %v5061, %v5068
    %v5071 = vunpack.c.l.s4 1966171168
    %v5072 = vunpack.c.0.s8 %v5071
    %v5073 = vlaneseq
    %v5074 = vshrl.u32 %v5073, 7
    %v5075 = vsub.s32 %v5072, %v5074
    %v5076 = vrot.slane %v5062, %v5075
    %v5079 = vunpack.c.l.s4 1966171168
    %v5080 = vunpack.c.0.s8 %v5079
    %v5081 = vlaneseq
    %v5082 = vshrl.u32 %v5081, 7
    %v5083 = vsub.s32 %v5080, %v5082
    %v5084 = vrot.slane %v4920, %v5083
    %v5085 = vcombine.high %v5084, %v5084
    %v5087 = vunpack.c.l.s4 1966171168
    %v5088 = vunpack.c.0.s8 %v5087
    %v5089 = vlaneseq
    %v5090 = vshrl.u32 %v5089, 7
    %v5091 = vsub.s32 %v5088, %v5090
    %v5092 = vrot.slane %v5084, %v5091
    %v5094 = vunpack.c.l.s4 1966171168
    %v5095 = vunpack.c.0.s8 %v5094
    %v5096 = vlaneseq
    %v5097 = vshrl.u32 %v5096, 7
    %v5098 = vsub.s32 %v5095, %v5097
    %v5099 = vrot.slane %v5085, %v5098
    %v5102 = vunpack.c.l.s4 1966171168
    %v5103 = vunpack.c.0.s8 %v5102
    %v5104 = vlaneseq
    %v5105 = vshrl.u32 %v5104, 7
    %v5106 = vsub.s32 %v5103, %v5105
    %v5107 = vrot.slane %v5000, %v5106
    %v5108 = vcombine.high %v5107, %v5107
    %v5110 = vunpack.c.l.s4 1966171168
    %v5111 = vunpack.c.0.s8 %v5110
    %v5112 = vlaneseq
    %v5113 = vshrl.u32 %v5112, 7
    %v5114 = vsub.s32 %v5111, %v5113
    %v5115 = vrot.slane %v5107, %v5114
    %v5117 = vunpack.c.l.s4 1966171168
    %v5118 = vunpack.c.0.s8 %v5117
    %v5119 = vlaneseq
    %v5120 = vshrl.u32 %v5119, 7
    %v5121 = vsub.s32 %v5118, %v5120
    %v5122 = vrot.slane %v5108, %v5121
    %v5125 = vunpack.c.l.s4 1966171168
    %v5126 = vunpack.c.0.s8 %v5125
    %v5127 = vlaneseq
    %v5128 = vshrl.u32 %v5127, 7
    %v5129 = vsub.s32 %v5126, %v5128
    %v5130 = vrot.slane %v5002, %v5129
    %v5131 = vcombine.high %v5130, %v5130
    %v5133 = vunpack.c.l.s4 1966171168
    %v5134 = vunpack.c.0.s8 %v5133
    %v5135 = vlaneseq
    %v5136 = vshrl.u32 %v5135, 7
    %v5137 = vsub.s32 %v5134, %v5136
    %v5138 = vrot.slane %v5130, %v5137
    %v5140 = vunpack.c.l.s4 1966171168
    %v5141 = vunpack.c.0.s8 %v5140
    %v5142 = vlaneseq
    %v5143 = vshrl.u32 %v5142, 7
    %v5144 = vsub.s32 %v5141, %v5143
    %v5145 = vrot.slane %v5131, %v5144
    %v5146 = vlaneseq
    %v5147 = vshrl.u32 %v5146, 7
    %v5148 = vsub.s32 0, %v5147
    %v5149 = vrot.slane %v5046, %v5148
    %v5150 = vlaneseq
    %v5151 = vshrl.u32 %v5150, 7
    %v5152 = vsub.s32 0, %v5151
    %v5153 = vrot.slane %v5053, %v5152
    %v5156 = vlaneseq
    %v5157 = vshrl.u32 %v5156, 7
    %v5158 = vsub.s32 0, %v5157
    %v5159 = vrot.slane %v5069, %v5158
    %v5160 = vlaneseq
    %v5161 = vshrl.u32 %v5160, 7
    %v5162 = vsub.s32 0, %v5161
    %v5163 = vrot.slane %v5076, %v5162
    %v5166 = vlaneseq
    %v5167 = vshrl.u32 %v5166, 7
    %v5168 = vsub.s32 0, %v5167
    %v5169 = vrot.slane %v5092, %v5168
    %v5170 = vlaneseq
    %v5171 = vshrl.u32 %v5170, 7
    %v5172 = vsub.s32 0, %v5171
    %v5173 = vrot.slane %v5099, %v5172
    %v5176 = vlaneseq
    %v5177 = vshrl.u32 %v5176, 7
    %v5178 = vsub.s32 0, %v5177
    %v5179 = vrot.slane %v5115, %v5178
    %v5180 = vlaneseq
    %v5181 = vshrl.u32 %v5180, 7
    %v5182 = vsub.s32 0, %v5181
    %v5183 = vrot.slane %v5122, %v5182
    %v5186 = vlaneseq
    %v5187 = vshrl.u32 %v5186, 7
    %v5188 = vsub.s32 0, %v5187
    %v5189 = vrot.slane %v5138, %v5188
    %v5190 = vlaneseq
    %v5191 = vshrl.u32 %v5190, 7
    %v5192 = vsub.s32 0, %v5191
    %v5193 = vrot.slane %v5145, %v5192
    %vm5196 = vcmask 1040384
    %v5197 = vsel %vm5196, %v5021, %v5149
    %v5198 = vsel %vm5196, %v5028, %v5153
    %vm5199 = vcmask 1041408
    %v5200 = vsel %vm5199, %v5197, %v5159
    %v5201 = vsel %vm5199, %v5198, %v5163
    %vm5202 = vcmask 1042432
    %v5203 = vsel %vm5202, %v5200, %v5169
    %v5204 = vsel %vm5202, %v5201, %v5173
    %vm5205 = vcmask 1043456
    %v5206 = vsel %vm5205, %v5203, %v5179
    %v5207 = vsel %vm5205, %v5204, %v5183
    %vm5208 = vcmask 1044480
    %v5209 = vsel %vm5208, %v5206, %v5189
    %v5210 = vsel %vm5208, %v5207, %v5193
    %vm5211 = vcmask 1045504
    %v5212 = vsel %vm5211, %v5209, 0.0
    %v5213 = vrot.slane %v5212, 4
    %v5214 = vadd.f32 %v5212, %v5213
    %v5215 = vrot.slane %v5214, 2
    %v5216 = vadd.f32 %v5214, %v5215
    %v5217 = vrot.slane %v5216, 1
    %v5218 = vadd.f32 %v5216, %v5217
    %v5219 = vsel %vm5211, %v5210, 0.0
    %v5220 = vrot.slane %v5219, 4
    %v5221 = vadd.f32 %v5219, %v5220
    %v5222 = vrot.slane %v5221, 2
    %v5223 = vadd.f32 %v5221, %v5222
    %v5224 = vrot.slane %v5223, 1
    %v5225 = vadd.f32 %v5223, %v5224
    %v5226 = vrcp.pop 6.0
    %v5227 = vmul.f32 %v5218, %v5226
    %v5228 = vmul.f32 %v5225, %v5226
    %v5231 = vunpack.c.l.s4 1966171168
    %v5232 = vunpack.c.0.s8 %v5231
    %v5233 = vlaneseq
    %v5234 = vshrl.u32 %v5233, 7
    %v5235 = vsub.s32 %v5232, %v5234
    %v5236 = vrot.slane %v3571, %v5235
    %v5237 = vcombine.high %v5236, %v5236
    %v5239 = vunpack.c.l.s4 1966171168
    %v5240 = vunpack.c.0.s8 %v5239
    %v5241 = vlaneseq
    %v5242 = vshrl.u32 %v5241, 7
    %v5243 = vsub.s32 %v5240, %v5242
    %v5244 = vrot.slane %v5236, %v5243
    %v5246 = vunpack.c.l.s4 1966171168
    %v5247 = vunpack.c.0.s8 %v5246
    %v5248 = vlaneseq
    %v5249 = vshrl.u32 %v5248, 7
    %v5250 = vsub.s32 %v5247, %v5249
    %v5251 = vrot.slane %v5237, %v5250
    %v5252 = vlaneseq
    %v5253 = vshrl.u32 %v5252, 7
    %v5254 = vsub.s32 0, %v5253
    %v5255 = vrot.slane %v5244, %v5254
    %v5256 = vlaneseq
    %v5257 = vshrl.u32 %v5256, 7
    %v5258 = vsub.s32 0, %v5257
    %v5259 = vrot.slane %v5251, %v5258
    %v5262 = vadd.f32 %v5255, %v5209
    %v5263 = vadd.f32 %v5259, %v5210
    %v5264 = vsub.f32 %v5262, %v5227
    %v5265 = vsub.f32 %v5263, %v5228
    %v5266 = vlaneseq
    %v5267 = vand.u32 %v5266, 127
    %vm5268 = vcmp.lt.s32.totalorder %v5267, 51
    %v5269 = vsel %vm5268, 1, 0
    %vm5270 = vcmp.eq.s32.totalorder %v5269, 1
    %v5271 = vsel %vm5270, %v5264, -1e+30
    %v5272 = vsel %vm5270, %v5265, -1e+30
    %v5273 = vsel %vm5211, %v5271, -inf
    %5274 = vmax.xlane.f32.xlu0 %v5273
    %v5275 = vpop.xlane.xlu0 %5274
    %v5276 = vsel %vm5211, %v5272, -inf
    %5277 = vmax.xlane.f32.xlu0 %v5276
    %v5278 = vpop.xlane.xlu0 %5277
    %v5279 = vsub.f32 %v5271, %v5275
    %v5280 = vsub.f32 %v5272, %v5278
    %v5281 = vmul.f32 %v5279, 1.442695
    %v5282 = vpow.pop %v5281
    %v5283 = vmul.f32 %v5280, 1.442695
    %v5284 = vpow.pop %v5283
    %v5285 = vsel %vm5211, %v5282, 0.0
    %5286 = vadd.xlane.f32.xlu0 %v5285
    %v5287 = vpop.xlane.xlu0 %5286
    %v5288 = vsel %vm5211, %v5284, 0.0
    %5289 = vadd.xlane.f32.xlu0 %v5288
    %v5290 = vpop.xlane.xlu0 %5289
    %v5291 = vrcp.pop %v5287
    %v5292 = vrcp.pop %v5290
    %v5293 = vmul.f32 %v5282, %v5291
    %v5294 = vmul.f32 %v5284, %v5292
    %v5295 = vmax.f32 %v5293, 0.001
    %v5296 = vmax.f32 %v5294, 0.001
    %v5297 = vld [vmem:[%s13] sm:$0x1]
    %v5299 = vlaneseq
    %v5300 = vshrl.u32 %v5299, 7
    %v5301 = vsub.s32 0, %v5300
    %v5302 = vrot.slane %v5297, %v5301
    %v5304 = vmul.f32 %v5295, %v5302
    %v5305 = vmul.f32 %v5296, %v5302
    %v5306 = vsel %vm5211, %v5304, 0.0
    %5307 = vadd.xlane.f32.xlu0 %v5306
    %v5308 = vpop.xlane.xlu0 %5307
    %v5309 = vsel %vm5211, %v5305, 0.0
    %5310 = vadd.xlane.f32.xlu0 %v5309
    %v5311 = vpop.xlane.xlu0 %5310
    %v5314 = vlaneseq
    %v5315 = vshrl.u32 %v5314, 7
    %v5316 = vsub.s32 %v5267, %v5315
    %v5317 = vrot.slane %v5308, %v5316
    %v5318 = vlaneseq
    %v5319 = vshrl.u32 %v5318, 7
    %v5320 = vsub.s32 %v5267, %v5319
    %v5321 = vrot.slane %v5311, %v5320
    %vm5322 = vcmask 1041409
    %v5323 = vsel %vm5322, %v5321, %v5317
    %vm5325 = vcmask 41984
    %5326 = vst.msk [vmem:[#allocation2] sm:$0x3] %vm5325, %v5323
    // Predicated region
    $region58: #{rainbow_forward.1} parent=1 // pred_check
      _
    $region59: #{rainbow_forward.1} parent=1 // pred_check_branch
      %5328 = sbr.rel (0) target = $region61
    $region60: #{rainbow_forward.1} parent=1 // pred_region
      %s5330 = ssub.s32 32, 32
      %5331 = vsyncadd [#allocation3], %s5330
      %s5333 = sshll.u32 [#allocation2], 4
      %s5334 = int_to_ptr.vmem [resolvable:$true] %s5333
      %5336 = dma.vmem_to_hbm [thread:$0]  %s5334, 32, %s14, [#allocation3]
    $region61: #{rainbow_forward.1} parent=1 // pred_fallthru
      _
    // Predicated region
    $region62: #{rainbow_forward.1} parent=1 // pred_check
      _
    $region63: #{rainbow_forward.1} parent=1 // pred_check_branch
      %5338 = sbr.rel (0) target = $region65
    $region64: #{rainbow_forward.1} parent=1 // pred_region
      %5339 = dma.done [#allocation3], 32
    $region65: #{rainbow_forward.1} parent=1 // pred_fallthru
      _
    %5340 = vsyncpa [#allocation3], 1

</llo_original>
